<compile_context>
chip_gen: v5e
topology: v5e:2x2
jax: 0.10.0
libtpu: 0.0.40
codegen_flags: <defaults>
</compile_context>

<pallas_src>
import functools

import jax
import jax.numpy as jnp
import numpy as np
from jax import lax
from jax.experimental import pallas as pl
from jax.experimental.pallas import tpu as pltpu


# ---------------------------------------------------------------------------
# Pallas kernel: streamed MSA mean + fusion + row-tiled bilinear heads
# ---------------------------------------------------------------------------
def _fusion_heads_kernel(feature_fusion, inv_s, tq, *refs):
    if feature_fusion:
        (ref_ref, msa_ref, proj_w_ref, proj_b_ref, wcd_ref, bcd_ref,
         contact_ref, dist_ref, acc_ref, fused_ref) = refs
    else:
        (ref_ref, msa_ref, wcd_ref, bcd_ref,
         contact_ref, dist_ref, acc_ref, fused_ref) = refs
        proj_w_ref = proj_b_ref = None

    s = pl.program_id(1)
    num_s = pl.num_programs(1)

    # ---- streaming S reduction: bf16 DMA stream, f32 accumulation ----------
    @pl.when(s == 0)
    def _():
        acc_ref[...] = jnp.zeros_like(acc_ref)

    acc_ref[...] += jnp.sum(msa_ref[0].astype(jnp.float32), axis=0)   # (Lpad, dpad)

    # ---- fusion + bilinear heads, once per batch element --------------------
    @pl.when(s == num_s - 1)
    def _():
        mm_dtype = wcd_ref.dtype                 # bf16 for the MXU, f32 otherwise
        Lpad, dpad = fused_ref.shape
        ref = ref_ref[0]                         # (Lpad, dpad), stream dtype

        if feature_fusion:
            msa_mean = acc_ref[...] * inv_s
            # concat([ref, mean], -1) @ W + b, without the concat:
            #   ref @ W[:dpad] + mean @ W[dpad:]   (dpad is 128-aligned)
            fused = (jnp.dot(ref.astype(mm_dtype), proj_w_ref[:dpad, :],
                             preferred_element_type=jnp.float32)
                     + jnp.dot(msa_mean.astype(mm_dtype), proj_w_ref[dpad:, :],
                               preferred_element_type=jnp.float32)
                     + proj_b_ref[...])                       # (Lpad, dpad) f32
        else:
            # (ref + mean)/2 with the 1/S and 1/2 folded into two scales.
            fused = ref.astype(jnp.float32) * 0.5 + acc_ref[...] * (0.5 * inv_s)

        fused_ref[...] = fused.astype(mm_dtype)               # shared NT RHS

        num_q = Lpad // tq

        # Row-tiled epilogue: only (2*tq, Lpad) f32 logits live at once.
        @pl.loop(0, num_q)
        def _(qi):
            r0 = pl.multiple_of(qi * tq, tq)
            f_tile = fused_ref[pl.ds(r0, tq), :]              # (tq, dpad)
            # Fused head projections: one (dpad, 2*dpad) matmul for both heads.
            ycd = jnp.dot(f_tile, wcd_ref[...],
                          preferred_element_type=jnp.float32)  # (tq, 2*dpad)
            # Stack contact/distance rows -> one NT matmul, RHS pushed once.
            y_stack = jnp.concatenate([ycd[:, :dpad], ycd[:, dpad:]],
                                      axis=0).astype(mm_dtype)  # (2*tq, dpad)
            # nn.Bilinear(d, d, 1): logits[i, j] = fused[i] @ W @ fused[j] + b.
            logits = lax.dot_general(
                y_stack, fused_ref[...], (((1,), (1,)), ((), ())),
                preferred_element_type=jnp.float32)             # (2*tq, Lpad)
            contact_ref[0, pl.ds(r0, tq), :] = jax.nn.sigmoid(
                logits[:tq, :] + bcd_ref[0])
            dist_ref[0, pl.ds(r0, tq), :] = jnp.maximum(
                logits[tq:, :] + bcd_ref[1], 0.0)


# ---------------------------------------------------------------------------
# Sizing helpers
# ---------------------------------------------------------------------------
def _round_up(x, m):
    return ((x + m - 1) // m) * m


def _vmem_capacity_bytes():
    try:
        return int(pltpu.get_tpu_info().vmem_capacity_bytes)
    except Exception:
        return 128 * 1024 * 1024            # conservative default (v5e/v6e)


def _pick_s_tile(S, Lpad, dpad, budget_bytes, itemsize):
    """Largest divisor of S whose double-buffered (tile, Lpad, dpad) slab fits."""
    bytes_per_seq = 2 * Lpad * dpad * itemsize       # x2: double-buffered input
    max_tile = max(1, budget_bytes // bytes_per_seq)
    tile = 1
    for cand in range(1, S + 1):
        if S % cand == 0 and cand <= max_tile:
            tile = cand
    return tile


def _out_block_spec(Lpad, single_buffer):
    """(1, Lpad, Lpad) output spec; single-buffered when supported."""
    kwargs = {}
    if single_buffer and hasattr(pl, "Buffered"):
        kwargs["pipeline_mode"] = pl.Buffered(1)
    try:
        return pl.BlockSpec((1, Lpad, Lpad), lambda b, s: (b, 0, 0), **kwargs)
    except TypeError:
        return pl.BlockSpec((1, Lpad, Lpad), lambda b, s: (b, 0, 0))


# ---------------------------------------------------------------------------
# Wrapper
# ---------------------------------------------------------------------------
def contact_distance_pallas(ref_emb, msa_emb, params, *, feature_fusion=False,
                            use_bf16=True, s_tile=None):
    """Pallas forward: returns (contact_probs, distance_preds), each (B, Lp2, Lp2)."""
    B, Lp2, d = ref_emb.shape
    S = msa_emb.shape[1]

    # Pad sequence (lane-dense pairwise outputs) and hidden dims (lane-dense,
    # MXU-aligned features). Pads are zero and cropped below; valid rows are
    # unaffected since output (i,j) only depends on fused[i], fused[j].
    Lpad = max(128, _round_up(Lp2, 128))
    dpad = _round_up(d, 128)
    stream_dtype = jnp.bfloat16 if use_bf16 else jnp.float32
    itemsize = 2 if use_bf16 else 4

    ref_p = jnp.pad(ref_emb, ((0, 0), (0, Lpad - Lp2), (0, dpad - d))
                    ).astype(stream_dtype)
    msa_p = jnp.pad(msa_emb, ((0, 0), (0, 0), (0, Lpad - Lp2), (0, dpad - d))
                    ).astype(stream_dtype)

    # Head weights: zero-pad consistently, fuse wc|wd into one (dpad, 2*dpad).
    wc = jnp.pad(params["wc"], ((0, dpad - d), (0, dpad - d)))
    wd = jnp.pad(params["wd"], ((0, dpad - d), (0, dpad - d)))
    wcd = jnp.concatenate([wc, wd], axis=1).astype(stream_dtype)
    bcd = jnp.concatenate([params["bc"].reshape(-1),
                           params["bd"].reshape(-1)]).astype(jnp.float32)

    if feature_fusion:
        pw = params["proj_w"]                      # (2d, d): rows = [ref | msa]
        pw_ref = jnp.pad(pw[:d, :], ((0, dpad - d), (0, dpad - d)))
        pw_msa = jnp.pad(pw[d:, :], ((0, dpad - d), (0, dpad - d)))
        proj_w_p = jnp.concatenate([pw_ref, pw_msa], axis=0).astype(stream_dtype)
        proj_b_p = jnp.pad(params["proj_b"],
                           ((0, 0), (0, dpad - d))).astype(jnp.float32)

    # ---- generation-aware VMEM budgets --------------------------------------
    vmem_cap = _vmem_capacity_bytes()
    vmem_limit = (vmem_cap * 3) // 4        # ~96 MiB on 128 MiB parts, ~48 MiB on v7x

    tq = 256 if Lpad % 256 == 0 else 128    # epilogue query-row tile
    tq = min(tq, Lpad)

    resident = (
        2 * Lpad * Lpad * 4                          # contact + distance blocks
        + Lpad * dpad * 4                            # f32 S accumulator
        + Lpad * dpad * itemsize                     # fused-embedding scratch
        + 2 * Lpad * dpad * itemsize                 # double-buffered ref block
        + 2 * dpad * 2 * dpad * itemsize             # double-buffered wc|wd
        + (2 * (2 * dpad * dpad * itemsize + dpad * 4) if feature_fusion else 0)
        + 4 * tq * Lpad * 4                          # epilogue logits/activations
    )
    msa_budget = max(2 * Lpad * dpad * itemsize,
                     vmem_limit - resident - (4 << 20))

    if s_tile is None:
        s_tile = _pick_s_tile(S, Lpad, dpad, msa_budget, itemsize)
    assert S % s_tile == 0, "s_tile must divide the number of MSA sequences"
    num_s = S // s_tile

    # ---- specs / call --------------------------------------------------------
    in_specs = [
        pl.BlockSpec((1, Lpad, dpad), lambda b, s: (b, 0, 0)),              # ref
        pl.BlockSpec((1, s_tile, Lpad, dpad), lambda b, s: (b, s, 0, 0)),   # msa tile
    ]
    args = [ref_p, msa_p]
    if feature_fusion:
        in_specs += [
            pl.BlockSpec((2 * dpad, dpad), lambda b, s: (0, 0)),            # proj_w
            pl.BlockSpec((1, dpad), lambda b, s: (0, 0)),                   # proj_b
        ]
        args += [proj_w_p, proj_b_p]
    in_specs += [
        pl.BlockSpec((dpad, 2 * dpad), lambda b, s: (0, 0)),                # wc|wd
        pl.BlockSpec(memory_space=pltpu.MemorySpace.SMEM),                  # biases
    ]
    args += [wcd, bcd]

    kernel = functools.partial(_fusion_heads_kernel, feature_fusion, 1.0 / S, tq)
    out_shape = (jax.ShapeDtypeStruct((B, Lpad, Lpad), jnp.float32),
                 jax.ShapeDtypeStruct((B, Lpad, Lpad), jnp.float32))

    def build(single_buffer_out):
        return pl.pallas_call(
            kernel,
            out_shape=out_shape,
            grid_spec=pltpu.PrefetchScalarGridSpec(
                num_scalar_prefetch=0,
                grid=(B, num_s),
                in_specs=in_specs,
                out_specs=[_out_block_spec(Lpad, single_buffer_out),
                           _out_block_spec(Lpad, single_buffer_out)],
                scratch_shapes=[pltpu.VMEM((Lpad, dpad), jnp.float32),   # S accum
                                pltpu.VMEM((Lpad, dpad), stream_dtype)], # fused
            ),
            compiler_params=pltpu.CompilerParams(
                # batch axis shards across TensorCores (v7x megacore);
                # the S reduction axis must stay "arbitrary" for the accumulator.
                dimension_semantics=("parallel", "arbitrary"),
                vmem_limit_bytes=int(vmem_limit)),
        )

    try:
        contact, dist = build(True)(*args)
    except Exception:
        # Fallback: double-buffered outputs if single-buffering is unsupported.
        contact, dist = build(False)(*args)

    return contact[:, :Lp2, :Lp2], dist[:, :Lp2, :Lp2]


# ---------------------------------------------------------------------------
# Pure-JAX reference (same math, f32) for correctness checking
# ---------------------------------------------------------------------------
def reference_forward(ref_emb, msa_emb, params, *, feature_fusion=False):
    msa_mean = jnp.mean(msa_emb, axis=1)
    if feature_fusion:
        fused = (jnp.concatenate([ref_emb, msa_mean], axis=-1)
                 @ params["proj_w"] + params["proj_b"][0])
    else:
        fused = (ref_emb + msa_mean) * 0.5
    yc = jnp.einsum('bld,de->ble', fused, params["wc"])
    contact_logits = jnp.einsum('bie,bje->bij', yc, fused) + params["bc"][0, 0]
    yd = jnp.einsum('bld,de->ble', fused, params["wd"])
    distance_logits = jnp.einsum('bie,bje->bij', yd, fused) + params["bd"][0, 0]
    return jax.nn.sigmoid(contact_logits), jax.nn.relu(distance_logits)


# ---------------------------------------------------------------------------
# Main
# ---------------------------------------------------------------------------
if __name__ == "__main__":
    key = jax.random.PRNGKey(0)
    B, S, L, D = 2, 4, 14, 32          # batch, num MSA seqs, seq len, hidden
    Lp2 = L + 2                        # +BOS/+EOS, as in the module
    VOCAB = 33                         # ESM alphabet size

    keys = jax.random.split(key, 10)

    # Token inputs (the module's (ref_tokens, msa_tokens) tuple).
    ref_tokens = jax.random.randint(keys[0], (B, Lp2), 0, VOCAB, dtype=jnp.int32)
    msa_tokens = jax.random.randint(keys[1], (B, S, Lp2), 0, VOCAB, dtype=jnp.int32)

    # TODO(synk): pretrained ESM2 / MSA-transformer encoders replaced by a
    # deterministic embedding-table stand-in; only the post-backbone math is
    # the Pallas hot path.
    embed_table = 0.1 * jax.random.normal(keys[2], (VOCAB, D), jnp.float32)
    ref_emb = embed_table[ref_tokens]              # (B, Lp2, D)
    msa_emb = embed_table[msa_tokens]              # (B, S, Lp2, D)

    # Deterministic synthetic parameters (shapes follow the module __init__).
    params = {
        # nn.Linear(2D, D) — stored pre-transposed: maps (..., 2D) -> (..., D)
        "proj_w": (1.0 / np.sqrt(2 * D)) *
                  jax.random.normal(keys[3], (2 * D, D), jnp.float32),
        "proj_b": 0.01 * jax.random.normal(keys[4], (1, D), jnp.float32),
        # nn.Bilinear(D, D, 1) weights: torch shape (1, D, D) -> (D, D)
        "wc": (1.0 / D) * jax.random.normal(keys[5], (D, D), jnp.float32),
        "bc": 0.01 * jax.random.normal(keys[6], (1, 1), jnp.float32),
        "wd": (1.0 / D) * jax.random.normal(keys[7], (D, D), jnp.float32),
        "bd": 0.01 * jax.random.normal(keys[8], (1, 1), jnp.float32),
    }

    ok = True
    for feature_fusion in (False, True):           # default module config is False
        contact_ref_np, dist_ref_np = reference_forward(
            ref_emb, msa_emb, params, feature_fusion=feature_fusion)
        # s_tile=2 exercises the multi-step streaming S reduction; None = auto.
        for s_tile in (None, 2):
            contact, dist = contact_distance_pallas(
                ref_emb, msa_emb, params,
                feature_fusion=feature_fusion, use_bf16=True, s_tile=s_tile)
            contact = jax.block_until_ready(contact)
            dist = jax.block_until_ready(dist)

            assert contact.shape == (B, Lp2, Lp2) and dist.shape == (B, Lp2, Lp2)
            # bf16 streaming + bf16 MXU inputs (f32 accumulation) vs f32
            # reference -> loosen tolerance.
            ok &= bool(np.allclose(np.asarray(contact), np.asarray(contact_ref_np),
                                   rtol=5e-3, atol=5e-3))
            ok &= bool(np.allclose(np.asarray(dist), np.asarray(dist_ref_np),
                                   rtol=5e-3, atol=5e-3))

    if ok:
        print("KERNEL_OK")
    else:
        print("KERNEL_MISMATCH")
</pallas_src>

<mosaic_0001>
module attributes {stable_mosaic.version = 11 : i64} {
  func.func @_fusion_heads_kernel(%arg0: i32, %arg1: i32, %arg2: memref<1x128x128xbf16, #tpu.memory_space<vmem>>, %arg3: memref<1x4x128x128xbf16, #tpu.memory_space<vmem>>, %arg4: memref<128x256xbf16, #tpu.memory_space<vmem>>, %arg5: memref<2xf32, #tpu.memory_space<smem>>, %arg6: memref<1x128x128xf32, #tpu.memory_space<vmem>>, %arg7: memref<1x128x128xf32, #tpu.memory_space<vmem>>, %arg8: memref<128x128xf32, #tpu.memory_space<vmem>>, %arg9: memref<128x128xbf16, #tpu.memory_space<vmem>>) attributes {dimension_semantics = [#tpu.dimension_semantics<parallel>, #tpu.dimension_semantics<arbitrary>], iteration_bounds = array<i64: 2, 1>, scalar_prefetch = 0 : i64, scratch_operands = 2 : i64, tpu.core_type = #tpu.core_type<tc>, window_params = [{transform_indices = @transform_0, window_bounds = array<i64: 1, 128, 128>}, {transform_indices = @transform_1, window_bounds = array<i64: 1, 4, 128, 128>}, {pipeline_mode = #tpu.pipeline_mode<synchronous>, transform_indices = @transform_2, window_bounds = array<i64: 128, 256>}, {transform_indices = @transform_3, window_bounds = array<i64: 2>}, {pipeline_mode = #tpu.pipeline_mode<synchronous>, transform_indices = @transform_4, window_bounds = array<i64: 1, 128, 128>}, {pipeline_mode = #tpu.pipeline_mode<synchronous>, transform_indices = @transform_5, window_bounds = array<i64: 1, 128, 128>}]} {
    %c0_i32 = arith.constant 0 : i32
    %0 = arith.cmpi eq, %arg1, %c0_i32 : i32
    %1 = arith.extui %0 : i1 to i32
    %c0_i32_0 = arith.constant 0 : i32
    %2 = arith.cmpi ne, %1, %c0_i32_0 : i32
    scf.if %2 {
      %cst_10 = arith.constant 0.000000e+00 : f32
      %13 = vector.broadcast %cst_10 : f32 to vector<128x128xf32>
      %c0_11 = arith.constant 0 : index
      %c0_12 = arith.constant 0 : index
      %14 = vector.load %arg8[%c0_11, %c0_12] : memref<128x128xf32, #tpu.memory_space<vmem>>, vector<128x128xf32>
      tpu.vector_store %arg8[%c0_11, %c0_12], %13 {strides = array<i32>} : memref<128x128xf32, #tpu.memory_space<vmem>>, vector<128x128xf32>,
    } else {
    }
    %c0 = arith.constant 0 : index
    %c0_1 = arith.constant 0 : index
    %3 = vector.load %arg8[%c0, %c0_1] : memref<128x128xf32, #tpu.memory_space<vmem>>, vector<128x128xf32>
    %c0_2 = arith.constant 0 : index
    %c0_3 = arith.constant 0 : index
    %c0_4 = arith.constant 0 : index
    %c0_5 = arith.constant 0 : index
    %4 = vector.load %arg3[%c0_2, %c0_3, %c0_4, %c0_5] : memref<1x4x128x128xbf16, #tpu.memory_space<vmem>>, vector<1x4x128x128xbf16>
    %5 = vector.shape_cast %4 : vector<1x4x128x128xbf16> to vector<4x128x128xbf16>
    %6 = arith.extf %5 : vector<4x128x128xbf16> to vector<4x128x128xf32>
    %cst = arith.constant dense<0.000000e+00> : vector<128x128xf32>
    %7 = vector.multi_reduction <add>, %6, %cst [0] : vector<4x128x128xf32> to vector<128x128xf32>
    %8 = arith.addf %3, %7 : vector<128x128xf32>
    %c0_6 = arith.constant 0 : index
    %c0_7 = arith.constant 0 : index
    %9 = vector.load %arg8[%c0_6, %c0_7] : memref<128x128xf32, #tpu.memory_space<vmem>>, vector<128x128xf32>
    tpu.vector_store %arg8[%c0_6, %c0_7], %8 {strides = array<i32>} : memref<128x128xf32, #tpu.memory_space<vmem>>, vector<128x128xf32>,
    %c0_i32_8 = arith.constant 0 : i32
    %10 = arith.cmpi eq, %arg1, %c0_i32_8 : i32
    %11 = arith.extui %10 : i1 to i32
    %c0_i32_9 = arith.constant 0 : i32
    %12 = arith.cmpi ne, %11, %c0_i32_9 : i32
    scf.if %12 {
      %c0_10 = arith.constant 0 : index
      %c0_11 = arith.constant 0 : index
      %c0_12 = arith.constant 0 : index
      %13 = vector.load %arg2[%c0_10, %c0_11, %c0_12] : memref<1x128x128xbf16, #tpu.memory_space<vmem>>, vector<1x128x128xbf16>
      %14 = vector.shape_cast %13 : vector<1x128x128xbf16> to vector<128x128xbf16>
      %15 = arith.extf %14 : vector<128x128xbf16> to vector<128x128xf32>
      %cst_13 = arith.constant 5.000000e-01 : f32
      %16 = vector.broadcast %cst_13 : f32 to vector<128x128xf32>
      %17 = arith.mulf %15, %16 : vector<128x128xf32>
      %c0_14 = arith.constant 0 : index
      %c0_15 = arith.constant 0 : index
      %18 = vector.load %arg8[%c0_14, %c0_15] : memref<128x128xf32, #tpu.memory_space<vmem>>, vector<128x128xf32>
      %cst_16 = arith.constant 1.250000e-01 : f32
      %19 = vector.broadcast %cst_16 : f32 to vector<128x128xf32>
      %20 = arith.mulf %18, %19 : vector<128x128xf32>
      %21 = arith.addf %17, %20 : vector<128x128xf32>
      %22 = arith.truncf %21 : vector<128x128xf32> to vector<128x128xbf16>
      %c0_17 = arith.constant 0 : index
      %c0_18 = arith.constant 0 : index
      %23 = vector.load %arg9[%c0_17, %c0_18] : memref<128x128xbf16, #tpu.memory_space<vmem>>, vector<128x128xbf16>
      tpu.vector_store %arg9[%c0_17, %c0_18], %22 {strides = array<i32>} : memref<128x128xbf16, #tpu.memory_space<vmem>>, vector<128x128xbf16>,
      %c0_i32_19 = arith.constant 0 : i32
      %c1_i32 = arith.constant 1 : i32
      %24 = arith.muli %c0_i32_19, %c1_i32 : i32
      %c0_i32_20 = arith.constant 0 : i32
      %25 = arith.addi %c0_i32_20, %24 : i32
      %c128_i32 = arith.constant 128 : i32
      %26 = arith.muli %25, %c128_i32 : i32
      %27 = tpu.assume_multiple %26, 128 : i32
      %28 = arith.index_cast %27 : i32 to index
      %c0_21 = arith.constant 0 : index
      %29 = vector.load %arg9[%28, %c0_21] : memref<128x128xbf16, #tpu.memory_space<vmem>>, vector<128x128xbf16>
      %c0_22 = arith.constant 0 : index
      %c0_23 = arith.constant 0 : index
      %30 = vector.load %arg4[%c0_22, %c0_23] : memref<128x256xbf16, #tpu.memory_space<vmem>>, vector<128x256xbf16>
      %cst_24 = arith.constant dense<0.000000e+00> : vector<128x256xf32>
      %31 = tpu.matmul %29, %30, %cst_24 {dimension_numbers = #tpu.dot_dimension_numbers<[1], [0], [0], [1], [0, 0, 1, 1], [], []>} : vector<128x128xbf16>, vector<128x256xbf16>, vector<128x256xf32> -> vector<128x256xf32>
      %32 = vector.extract_strided_slice %31 {offsets = [0, 0], sizes = [128, 128], strides = [1, 1]} : vector<128x256xf32> to vector<128x128xf32>
      %33 = vector.extract_strided_slice %31 {offsets = [0, 128], sizes = [128, 128], strides = [1, 1]} : vector<128x256xf32> to vector<128x128xf32>
      %34 = tpu.concatenate %32, %33 in 0 : vector<128x128xf32>, vector<128x128xf32> -> vector<256x128xf32>
      %35 = arith.truncf %34 : vector<256x128xf32> to vector<256x128xbf16>
      %c0_25 = arith.constant 0 : index
      %c0_26 = arith.constant 0 : index
      %36 = vector.load %arg9[%c0_25, %c0_26] : memref<128x128xbf16, #tpu.memory_space<vmem>>, vector<128x128xbf16>
      %cst_27 = arith.constant dense<0.000000e+00> : vector<256x128xf32>
      %37 = tpu.matmul %35, %36, %cst_27 {dimension_numbers = #tpu.dot_dimension_numbers<[1], [1], [0], [0], [0, 0, 1, 0], [], []>} : vector<256x128xbf16>, vector<128x128xbf16>, vector<256x128xf32> -> vector<256x128xf32>
      %38 = vector.extract_strided_slice %37 {offsets = [0, 0], sizes = [128, 128], strides = [1, 1]} : vector<256x128xf32> to vector<128x128xf32>
      %c0_28 = arith.constant 0 : index
      %39 = memref.load %arg5[%c0_28] : memref<2xf32, #tpu.memory_space<smem>>
      %40 = vector.broadcast %39 : f32 to vector<128x128xf32>
      %41 = arith.addf %38, %40 : vector<128x128xf32>
      %42 = arith.negf %41 : vector<128x128xf32>
      %43 = math.exp %42 : vector<128x128xf32>
      %cst_29 = arith.constant 1.000000e+00 : f32
      %44 = vector.broadcast %cst_29 : f32 to vector<128x128xf32>
      %45 = arith.addf %44, %43 : vector<128x128xf32>
      %46 = arith.divf %44, %45 : vector<128x128xf32>
      %c0_30 = arith.constant 0 : index
      %47 = arith.index_cast %27 : i32 to index
      %c0_31 = arith.constant 0 : index
      %48 = vector.load %arg6[%c0_30, %47, %c0_31] : memref<1x128x128xf32, #tpu.memory_space<vmem>>, vector<1x128x128xf32>
      %49 = vector.shape_cast %48 : vector<1x128x128xf32> to vector<128x128xf32>
      %50 = vector.shape_cast %46 : vector<128x128xf32> to vector<1x128x128xf32>
      tpu.vector_store %arg6[%c0_30, %47, %c0_31], %50 {strides = array<i32>} : memref<1x128x128xf32, #tpu.memory_space<vmem>>, vector<1x128x128xf32>,
      %51 = vector.extract_strided_slice %37 {offsets = [128, 0], sizes = [128, 128], strides = [1, 1]} : vector<256x128xf32> to vector<128x128xf32>
      %c1 = arith.constant 1 : index
      %52 = memref.load %arg5[%c1] : memref<2xf32, #tpu.memory_space<smem>>
      %53 = vector.broadcast %52 : f32 to vector<128x128xf32>
      %54 = arith.addf %51, %53 : vector<128x128xf32>
      %cst_32 = arith.constant 0.000000e+00 : f32
      %55 = vector.broadcast %cst_32 : f32 to vector<128x128xf32>
      %56 = arith.maximumf %54, %55 : vector<128x128xf32>
      %c0_33 = arith.constant 0 : index
      %57 = arith.index_cast %27 : i32 to index
      %c0_34 = arith.constant 0 : index
      %58 = vector.load %arg7[%c0_33, %57, %c0_34] : memref<1x128x128xf32, #tpu.memory_space<vmem>>, vector<1x128x128xf32>
      %59 = vector.shape_cast %58 : vector<1x128x128xf32> to vector<128x128xf32>
      %60 = vector.shape_cast %56 : vector<128x128xf32> to vector<1x128x128xf32>
      tpu.vector_store %arg7[%c0_33, %57, %c0_34], %60 {strides = array<i32>} : memref<1x128x128xf32, #tpu.memory_space<vmem>>, vector<1x128x128xf32>,
      %c1_i32_35 = arith.constant 1 : i32
    } else {
    }
    return
  }
  func.func @transform_0(%arg0: i32, %arg1: i32) -> (i32, i32, i32) {
    %c0_i32 = arith.constant 0 : i32
    %c0_i32_0 = arith.constant 0 : i32
    %c0_i32_1 = arith.constant 0 : i32
    return %arg0, %c0_i32, %c0_i32_0 : i32, i32, i32
  }
  func.func @transform_1(%arg0: i32, %arg1: i32) -> (i32, i32, i32, i32) {
    %c0_i32 = arith.constant 0 : i32
    %c0_i32_0 = arith.constant 0 : i32
    %c0_i32_1 = arith.constant 0 : i32
    return %arg0, %arg1, %c0_i32, %c0_i32_0 : i32, i32, i32, i32
  }
  func.func @transform_2(%arg0: i32, %arg1: i32) -> (i32, i32) {
    %c0_i32 = arith.constant 0 : i32
    %c0_i32_0 = arith.constant 0 : i32
    %c0_i32_1 = arith.constant 0 : i32
    return %c0_i32, %c0_i32_0 : i32, i32
  }
  func.func @transform_3(%arg0: i32, %arg1: i32) -> i32 {
    %c0_i32 = arith.constant 0 : i32
    %c0_i32_0 = arith.constant 0 : i32
    return %c0_i32 : i32
  }
  func.func @transform_4(%arg0: i32, %arg1: i32) -> (i32, i32, i32) {
    %c0_i32 = arith.constant 0 : i32
    %c0_i32_0 = arith.constant 0 : i32
    %c0_i32_1 = arith.constant 0 : i32
    return %arg0, %c0_i32, %c0_i32_0 : i32, i32, i32
  }
  func.func @transform_5(%arg0: i32, %arg1: i32) -> (i32, i32, i32) {
    %c0_i32 = arith.constant 0 : i32
    %c0_i32_0 = arith.constant 0 : i32
    %c0_i32_1 = arith.constant 0 : i32
    return %arg0, %c0_i32, %c0_i32_0 : i32, i32, i32
  }
}

module attributes {stable_mosaic.version = 11 : i64} {
  func.func @_fusion_heads_kernel(%arg0: i32, %arg1: i32, %arg2: memref<1x128x128xbf16, #tpu.memory_space<vmem>>, %arg3: memref<1x4x128x128xbf16, #tpu.memory_space<vmem>>, %arg4: memref<128x256xbf16, #tpu.memory_space<vmem>>, %arg5: memref<2xf32, #tpu.memory_space<smem>>, %arg6: memref<1x128x128xf32, #tpu.memory_space<vmem>>, %arg7: memref<1x128x128xf32, #tpu.memory_space<vmem>>, %arg8: memref<128x128xf32, #tpu.memory_space<vmem>>, %arg9: memref<128x128xbf16, #tpu.memory_space<vmem>>) attributes {dimension_semantics = [#tpu.dimension_semantics<parallel>, #tpu.dimension_semantics<arbitrary>], iteration_bounds = array<i64: 2, 1>, scalar_prefetch = 0 : i64, scratch_operands = 2 : i64, tpu.core_type = #tpu.core_type<tc>, window_params = [{transform_indices = @transform_0, window_bounds = array<i64: 1, 128, 128>}, {transform_indices = @transform_1, window_bounds = array<i64: 1, 4, 128, 128>}, {pipeline_mode = #tpu.pipeline_mode<synchronous>, transform_indices = @transform_2, window_bounds = array<i64: 128, 256>}, {transform_indices = @transform_3, window_bounds = array<i64: 2>}, {transform_indices = @transform_4, window_bounds = array<i64: 1, 128, 128>}, {transform_indices = @transform_5, window_bounds = array<i64: 1, 128, 128>}]} {
    %c0_i32 = arith.constant 0 : i32
    %0 = arith.cmpi eq, %arg1, %c0_i32 : i32
    %1 = arith.extui %0 : i1 to i32
    %c0_i32_0 = arith.constant 0 : i32
    %2 = arith.cmpi ne, %1, %c0_i32_0 : i32
    scf.if %2 {
      %cst_10 = arith.constant 0.000000e+00 : f32
      %13 = vector.broadcast %cst_10 : f32 to vector<128x128xf32>
      %c0_11 = arith.constant 0 : index
      %c0_12 = arith.constant 0 : index
      %14 = vector.load %arg8[%c0_11, %c0_12] : memref<128x128xf32, #tpu.memory_space<vmem>>, vector<128x128xf32>
      tpu.vector_store %arg8[%c0_11, %c0_12], %13 {strides = array<i32>} : memref<128x128xf32, #tpu.memory_space<vmem>>, vector<128x128xf32>,
    } else {
    }
    %c0 = arith.constant 0 : index
    %c0_1 = arith.constant 0 : index
    %3 = vector.load %arg8[%c0, %c0_1] : memref<128x128xf32, #tpu.memory_space<vmem>>, vector<128x128xf32>
    %c0_2 = arith.constant 0 : index
    %c0_3 = arith.constant 0 : index
    %c0_4 = arith.constant 0 : index
    %c0_5 = arith.constant 0 : index
    %4 = vector.load %arg3[%c0_2, %c0_3, %c0_4, %c0_5] : memref<1x4x128x128xbf16, #tpu.memory_space<vmem>>, vector<1x4x128x128xbf16>
    %5 = vector.shape_cast %4 : vector<1x4x128x128xbf16> to vector<4x128x128xbf16>
    %6 = arith.extf %5 : vector<4x128x128xbf16> to vector<4x128x128xf32>
    %cst = arith.constant dense<0.000000e+00> : vector<128x128xf32>
    %7 = vector.multi_reduction <add>, %6, %cst [0] : vector<4x128x128xf32> to vector<128x128xf32>
    %8 = arith.addf %3, %7 : vector<128x128xf32>
    %c0_6 = arith.constant 0 : index
    %c0_7 = arith.constant 0 : index
    %9 = vector.load %arg8[%c0_6, %c0_7] : memref<128x128xf32, #tpu.memory_space<vmem>>, vector<128x128xf32>
    tpu.vector_store %arg8[%c0_6, %c0_7], %8 {strides = array<i32>} : memref<128x128xf32, #tpu.memory_space<vmem>>, vector<128x128xf32>,
    %c0_i32_8 = arith.constant 0 : i32
    %10 = arith.cmpi eq, %arg1, %c0_i32_8 : i32
    %11 = arith.extui %10 : i1 to i32
    %c0_i32_9 = arith.constant 0 : i32
    %12 = arith.cmpi ne, %11, %c0_i32_9 : i32
    scf.if %12 {
      %c0_10 = arith.constant 0 : index
      %c0_11 = arith.constant 0 : index
      %c0_12 = arith.constant 0 : index
      %13 = vector.load %arg2[%c0_10, %c0_11, %c0_12] : memref<1x128x128xbf16, #tpu.memory_space<vmem>>, vector<1x128x128xbf16>
      %14 = vector.shape_cast %13 : vector<1x128x128xbf16> to vector<128x128xbf16>
      %15 = arith.extf %14 : vector<128x128xbf16> to vector<128x128xf32>
      %cst_13 = arith.constant 5.000000e-01 : f32
      %16 = vector.broadcast %cst_13 : f32 to vector<128x128xf32>
      %17 = arith.mulf %15, %16 : vector<128x128xf32>
      %c0_14 = arith.constant 0 : index
      %c0_15 = arith.constant 0 : index
      %18 = vector.load %arg8[%c0_14, %c0_15] : memref<128x128xf32, #tpu.memory_space<vmem>>, vector<128x128xf32>
      %cst_16 = arith.constant 1.250000e-01 : f32
      %19 = vector.broadcast %cst_16 : f32 to vector<128x128xf32>
      %20 = arith.mulf %18, %19 : vector<128x128xf32>
      %21 = arith.addf %17, %20 : vector<128x128xf32>
      %22 = arith.truncf %21 : vector<128x128xf32> to vector<128x128xbf16>
      %c0_17 = arith.constant 0 : index
      %c0_18 = arith.constant 0 : index
      %23 = vector.load %arg9[%c0_17, %c0_18] : memref<128x128xbf16, #tpu.memory_space<vmem>>, vector<128x128xbf16>
      tpu.vector_store %arg9[%c0_17, %c0_18], %22 {strides = array<i32>} : memref<128x128xbf16, #tpu.memory_space<vmem>>, vector<128x128xbf16>,
      %c0_i32_19 = arith.constant 0 : i32
      %c1_i32 = arith.constant 1 : i32
      %24 = arith.muli %c0_i32_19, %c1_i32 : i32
      %c0_i32_20 = arith.constant 0 : i32
      %25 = arith.addi %c0_i32_20, %24 : i32
      %c128_i32 = arith.constant 128 : i32
      %26 = arith.muli %25, %c128_i32 : i32
      %27 = tpu.assume_multiple %26, 128 : i32
      %28 = arith.index_cast %27 : i32 to index
      %c0_21 = arith.constant 0 : index
      %29 = vector.load %arg9[%28, %c0_21] : memref<128x128xbf16, #tpu.memory_space<vmem>>, vector<128x128xbf16>
      %c0_22 = arith.constant 0 : index
      %c0_23 = arith.constant 0 : index
      %30 = vector.load %arg4[%c0_22, %c0_23] : memref<128x256xbf16, #tpu.memory_space<vmem>>, vector<128x256xbf16>
      %cst_24 = arith.constant dense<0.000000e+00> : vector<128x256xf32>
      %31 = tpu.matmul %29, %30, %cst_24 {dimension_numbers = #tpu.dot_dimension_numbers<[1], [0], [0], [1], [0, 0, 1, 1], [], []>} : vector<128x128xbf16>, vector<128x256xbf16>, vector<128x256xf32> -> vector<128x256xf32>
      %32 = vector.extract_strided_slice %31 {offsets = [0, 0], sizes = [128, 128], strides = [1, 1]} : vector<128x256xf32> to vector<128x128xf32>
      %33 = vector.extract_strided_slice %31 {offsets = [0, 128], sizes = [128, 128], strides = [1, 1]} : vector<128x256xf32> to vector<128x128xf32>
      %34 = tpu.concatenate %32, %33 in 0 : vector<128x128xf32>, vector<128x128xf32> -> vector<256x128xf32>
      %35 = arith.truncf %34 : vector<256x128xf32> to vector<256x128xbf16>
      %c0_25 = arith.constant 0 : index
      %c0_26 = arith.constant 0 : index
      %36 = vector.load %arg9[%c0_25, %c0_26] : memref<128x128xbf16, #tpu.memory_space<vmem>>, vector<128x128xbf16>
      %cst_27 = arith.constant dense<0.000000e+00> : vector<256x128xf32>
      %37 = tpu.matmul %35, %36, %cst_27 {dimension_numbers = #tpu.dot_dimension_numbers<[1], [1], [0], [0], [0, 0, 1, 0], [], []>} : vector<256x128xbf16>, vector<128x128xbf16>, vector<256x128xf32> -> vector<256x128xf32>
      %38 = vector.extract_strided_slice %37 {offsets = [0, 0], sizes = [128, 128], strides = [1, 1]} : vector<256x128xf32> to vector<128x128xf32>
      %c0_28 = arith.constant 0 : index
      %39 = memref.load %arg5[%c0_28] : memref<2xf32, #tpu.memory_space<smem>>
      %40 = vector.broadcast %39 : f32 to vector<128x128xf32>
      %41 = arith.addf %38, %40 : vector<128x128xf32>
      %42 = arith.negf %41 : vector<128x128xf32>
      %43 = math.exp %42 : vector<128x128xf32>
      %cst_29 = arith.constant 1.000000e+00 : f32
      %44 = vector.broadcast %cst_29 : f32 to vector<128x128xf32>
      %45 = arith.addf %44, %43 : vector<128x128xf32>
      %46 = arith.divf %44, %45 : vector<128x128xf32>
      %c0_30 = arith.constant 0 : index
      %47 = arith.index_cast %27 : i32 to index
      %c0_31 = arith.constant 0 : index
      %48 = vector.load %arg6[%c0_30, %47, %c0_31] : memref<1x128x128xf32, #tpu.memory_space<vmem>>, vector<1x128x128xf32>
      %49 = vector.shape_cast %48 : vector<1x128x128xf32> to vector<128x128xf32>
      %50 = vector.shape_cast %46 : vector<128x128xf32> to vector<1x128x128xf32>
      tpu.vector_store %arg6[%c0_30, %47, %c0_31], %50 {strides = array<i32>} : memref<1x128x128xf32, #tpu.memory_space<vmem>>, vector<1x128x128xf32>,
      %51 = vector.extract_strided_slice %37 {offsets = [128, 0], sizes = [128, 128], strides = [1, 1]} : vector<256x128xf32> to vector<128x128xf32>
      %c1 = arith.constant 1 : index
      %52 = memref.load %arg5[%c1] : memref<2xf32, #tpu.memory_space<smem>>
      %53 = vector.broadcast %52 : f32 to vector<128x128xf32>
      %54 = arith.addf %51, %53 : vector<128x128xf32>
      %cst_32 = arith.constant 0.000000e+00 : f32
      %55 = vector.broadcast %cst_32 : f32 to vector<128x128xf32>
      %56 = arith.maximumf %54, %55 : vector<128x128xf32>
      %c0_33 = arith.constant 0 : index
      %57 = arith.index_cast %27 : i32 to index
      %c0_34 = arith.constant 0 : index
      %58 = vector.load %arg7[%c0_33, %57, %c0_34] : memref<1x128x128xf32, #tpu.memory_space<vmem>>, vector<1x128x128xf32>
      %59 = vector.shape_cast %58 : vector<1x128x128xf32> to vector<128x128xf32>
      %60 = vector.shape_cast %56 : vector<128x128xf32> to vector<1x128x128xf32>
      tpu.vector_store %arg7[%c0_33, %57, %c0_34], %60 {strides = array<i32>} : memref<1x128x128xf32, #tpu.memory_space<vmem>>, vector<1x128x128xf32>,
      %c1_i32_35 = arith.constant 1 : i32
    } else {
    }
    return
  }
  func.func @transform_0(%arg0: i32, %arg1: i32) -> (i32, i32, i32) {
    %c0_i32 = arith.constant 0 : i32
    %c0_i32_0 = arith.constant 0 : i32
    %c0_i32_1 = arith.constant 0 : i32
    return %arg0, %c0_i32, %c0_i32_0 : i32, i32, i32
  }
  func.func @transform_1(%arg0: i32, %arg1: i32) -> (i32, i32, i32, i32) {
    %c0_i32 = arith.constant 0 : i32
    %c0_i32_0 = arith.constant 0 : i32
    %c0_i32_1 = arith.constant 0 : i32
    return %arg0, %arg1, %c0_i32, %c0_i32_0 : i32, i32, i32, i32
  }
  func.func @transform_2(%arg0: i32, %arg1: i32) -> (i32, i32) {
    %c0_i32 = arith.constant 0 : i32
    %c0_i32_0 = arith.constant 0 : i32
    %c0_i32_1 = arith.constant 0 : i32
    return %c0_i32, %c0_i32_0 : i32, i32
  }
  func.func @transform_3(%arg0: i32, %arg1: i32) -> i32 {
    %c0_i32 = arith.constant 0 : i32
    %c0_i32_0 = arith.constant 0 : i32
    return %c0_i32 : i32
  }
  func.func @transform_4(%arg0: i32, %arg1: i32) -> (i32, i32, i32) {
    %c0_i32 = arith.constant 0 : i32
    %c0_i32_0 = arith.constant 0 : i32
    %c0_i32_1 = arith.constant 0 : i32
    return %arg0, %c0_i32, %c0_i32_0 : i32, i32, i32
  }
  func.func @transform_5(%arg0: i32, %arg1: i32) -> (i32, i32, i32) {
    %c0_i32 = arith.constant 0 : i32
    %c0_i32_0 = arith.constant 0 : i32
    %c0_i32_1 = arith.constant 0 : i32
    return %arg0, %c0_i32, %c0_i32_0 : i32, i32, i32
  }
}

</mosaic_0001>

<llo_original>
// kernel: tpu_custom_call.1
$region0: #{tpu_custom_call.1}
  #allocation0 [shape = 'u32[]', space=smem, size = 0x4, offset = 0x4, fixed_abs, tag = 'smem constant byte address 0x4 - core index']
  #allocation1 [shape = 'u32[72,128]{1,0:T(1,128)}', space=vmem, size = 0x9000, scoped, tag = 'internal scratch']
  #allocation2 [shape = 'f32[128,128]{1,0:T(8,128)}', space=vmem, size = 0x10000, scoped, tag = 'scratch operand']
  #allocation3 [shape = 'bf16[128,128]{1,0:T(8,128)(2,1)}', space=vmem, size = 0x8000, scoped, tag = 'scratch operand']
  %s0 = inlined_call_operand.hbm [shape: bf16[2,128,128], index: 0, kind: input, shape index: {}]
  %s1 = inlined_call_operand.hbm [shape: bf16[2,4,128,128], index: 1, kind: input, shape index: {}]
  %s2 = inlined_call_operand.hbm [shape: bf16[128,256], index: 2, kind: input, shape index: {}]
  %s3 = inlined_call_operand.vmem [shape: f32[2], index: 3, kind: input, shape index: {}]
  %s4 = inlined_call_operand.hbm [shape: f32[2,128,128], index: 4, kind: output, shape index: {0}]
  %s5 = inlined_call_operand.hbm [shape: f32[2,128,128], index: 5, kind: output, shape index: {1}]
  %6 = xla_tuple %s4, %s5
  %s7 = sld [smem:[#allocation0]]
  $region81: #{tpu_custom_call.1} parent=0
    _
  %s9 = ssub.s32 1, %s7
  %s10 = scalar_select 0, %s9, %s7
  $region1: #{tpu_custom_call.1} parent=0
    #allocation4 [shape = 'u8[65536]{0}', space=vmem, size = 0x10000, scoped, tag = 'input window, operand 0']
    #allocation5 [shape = 's32[2]{0}', space=sflag, size = 0x8, scoped, tag = 'scoped memory for tpu_custom_call.1']
    #allocation6 [shape = 's32[2]{0}', space=sflag, size = 0x8, scoped, tag = 'scoped memory for tpu_custom_call.1']
    #allocation7 [shape = 's32[2]{0}', space=sflag, size = 0x8, scoped, tag = 'scoped memory for tpu_custom_call.1']
    #allocation8 [shape = 'u8[262144]{0}', space=vmem, size = 0x40000, scoped, tag = 'input window, operand 1']
    #allocation9 [shape = 's32[2]{0}', space=sflag, size = 0x8, scoped, tag = 'scoped memory for tpu_custom_call.1']
    #allocation10 [shape = 'u8[65536]{0}', space=vmem, size = 0x10000, scoped, tag = 'input window, operand 2, single buffered']
    #allocation11 [shape = 'u8[512]{0}', space=smem, size = 0x200, scoped, tag = 'input window, operand 3, single buffered']
    #allocation12 [shape = 'u8[65536]{0}', space=vmem, size = 0x10000, scoped, tag = 'output window, operand 0, single buffered']
    #allocation13 [shape = 'u8[65536]{0}', space=vmem, size = 0x10000, scoped, tag = 'output window, operand 1, single buffered']
    #allocation14 [shape = 's32[1]{0}', space=sflag, size = 0x4, scoped, tag = 'scoped memory for tpu_custom_call.1']
    %11 = vsyncpa [#allocation5], 0
    %s12 = scalar_lea.sflag [#allocation5], 1
    %13 = vsyncpa %s12, 0
    %14 = vsyncpa [#allocation9], 0
    %s15 = scalar_lea.sflag [#allocation9], 1
    %16 = vsyncpa %s15, 0
    %17 = vsyncpa [#allocation7], 0
    %18 = vsyncpa [#allocation6], 0
    %19 = vsyncpa [#allocation14], 0
    loop: start=0, step=1, limit=4
    $region2: #{tpu_custom_call.1} parent=1 // loop_pre_header
      _
    $region3: #{tpu_custom_call.1} parent=1 // loop_header
      %s21 = sphi 0, %s25
      %p22 = scmp.ge.s32.totalorder %s21, 4
      %s28 = sphi 0, %s40
      %s29 = sphi 0, %s36
      %s30 = sphi 0, %s28
      %s31 = sphi 0, %s29
      %s32 = sphi 0, %s30
      %s33 = sphi 0, %s31
      %s43 = sphi 0, %s45
      %s46 = sphi 0, %s43
      %s47 = sphi 0, %s46
      %s63 = sphi 0, %s47
      %s71 = sphi 0, %s73
      %s74 = sphi 0, %s71
      %s75 = sphi 0, %s74
      %s91 = sphi 0, %s75
      %s95 = sphi 0, %s95
      %s97 = sphi 0, %s95
      %s98 = sphi 0, %s97
      %s112 = sphi 0, %s98
      %s116 = sphi 0, %s116
      %s118 = sphi 0, %s116
      %s119 = sphi 0, %s118
      %s133 = sphi 0, %s119
      %s139 = sphi 0, %s141
      %s142 = sphi 0, %s139
      %s143 = sphi 0, %s142
      %s159 = sphi 0, %s143
      %s165 = sphi 0, %s167
      %s168 = sphi 0, %s165
      %s169 = sphi 0, %s168
      %s185 = sphi 0, %s169
    $region4: #{tpu_custom_call.1} parent=1 // loop_header_branch
      %24 = sbr.rel (%p22) target = $region8
    $region5: #{tpu_custom_call.1} parent=1 // loop_body
      %s26 = ssub.s32 %s21, 1
      %s27 = ssub.s32 %s21, 2
      %s34 = sadd.s32 1, %s29
      %p35 = scmp.ge.s32.totalorder %s34, 1
      %s36 = scalar_select %p35, 0, %s34
      %s37 = sadd.s32 1, %s28
      %s38 = scalar_select %p35, %s37, %s28
      %p39 = scmp.ge.s32.totalorder %s38, 2
      %s40 = scalar_select %p39, 0, %s38
      %s41 = ssub.s32 %s28, %s40
      %p42 = scmp.eq.s32.totalorder %s41, 0
      %s44 = sadd.s32 %s43, 1
      %s45 = scalar_select %p42, %s43, %s44
      %p48 = pneg %p42
      %p49 = scmp.eq.s32.totalorder %s21, 1
      %p50 = por %p48, %p49
      %p51 = scmp.ne.s32.totalorder %s43, %s46
      %p52 = scmp.eq.s32.totalorder %s21, 0
      %p53 = por %p51, %p52
      %p54 = scmp.ne.s32.totalorder %s43, %s46
      %p55 = scmp.eq.s32.totalorder %s26, 1
      %p56 = por %p54, %p55
      %p57 = scmp.ne.s32.totalorder %s46, %s47
      %p58 = scmp.eq.s32.totalorder %s26, 0
      %p59 = por %p57, %p58
      %p60 = scmp.ne.s32.totalorder %s46, %s47
      %p61 = scmp.eq.s32.totalorder %s27, 1
      %p62 = por %p60, %p61
      %p64 = scmp.ne.s32.totalorder %s47, %s63
      %p65 = scmp.eq.s32.totalorder %s27, 0
      %p66 = por %p64, %p65
      %s67 = ssub.s32 %s28, %s40
      %s68 = ssub.s32 %s29, %s36
      %s69 = sor.u32 %s67, %s68
      %p70 = scmp.eq.s32.totalorder %s69, 0
      %s72 = sadd.s32 %s71, 1
      %s73 = scalar_select %p70, %s71, %s72
      %p76 = pneg %p70
      %p77 = scmp.eq.s32.totalorder %s21, 1
      %p78 = por %p76, %p77
      %p79 = scmp.ne.s32.totalorder %s71, %s74
      %p80 = scmp.eq.s32.totalorder %s21, 0
      %p81 = por %p79, %p80
      %p82 = scmp.ne.s32.totalorder %s71, %s74
      %p83 = scmp.eq.s32.totalorder %s26, 1
      %p84 = por %p82, %p83
      %p85 = scmp.ne.s32.totalorder %s74, %s75
      %p86 = scmp.eq.s32.totalorder %s26, 0
      %p87 = por %p85, %p86
      %p88 = scmp.ne.s32.totalorder %s74, %s75
      %p89 = scmp.eq.s32.totalorder %s27, 1
      %p90 = por %p88, %p89
      %p92 = scmp.ne.s32.totalorder %s75, %s91
      %p93 = scmp.eq.s32.totalorder %s27, 0
      %p94 = por %p92, %p93
      %s96 = sadd.s32 %s95, 1
      %p99 = scmp.eq.s32.totalorder %s21, 1
      %p100 = scmp.ne.s32.totalorder %s95, %s97
      %p101 = scmp.eq.s32.totalorder %s21, 0
      %p102 = por %p100, %p101
      %p103 = scmp.ne.s32.totalorder %s95, %s97
      %p104 = scmp.eq.s32.totalorder %s26, 1
      %p105 = por %p103, %p104
      %p106 = scmp.ne.s32.totalorder %s97, %s98
      %p107 = scmp.eq.s32.totalorder %s26, 0
      %p108 = por %p106, %p107
      %p109 = scmp.ne.s32.totalorder %s97, %s98
      %p110 = scmp.eq.s32.totalorder %s27, 1
      %p111 = por %p109, %p110
      %p113 = scmp.ne.s32.totalorder %s98, %s112
      %p114 = scmp.eq.s32.totalorder %s27, 0
      %p115 = por %p113, %p114
      %s117 = sadd.s32 %s116, 1
      %p120 = scmp.eq.s32.totalorder %s21, 1
      %p121 = scmp.ne.s32.totalorder %s116, %s118
      %p122 = scmp.eq.s32.totalorder %s21, 0
      %p123 = por %p121, %p122
      %p124 = scmp.ne.s32.totalorder %s116, %s118
      %p125 = scmp.eq.s32.totalorder %s26, 1
      %p126 = por %p124, %p125
      %p127 = scmp.ne.s32.totalorder %s118, %s119
      %p128 = scmp.eq.s32.totalorder %s26, 0
      %p129 = por %p127, %p128
      %p130 = scmp.ne.s32.totalorder %s118, %s119
      %p131 = scmp.eq.s32.totalorder %s27, 1
      %p132 = por %p130, %p131
      %p134 = scmp.ne.s32.totalorder %s119, %s133
      %p135 = scmp.eq.s32.totalorder %s27, 0
      %p136 = por %p134, %p135
      %s137 = ssub.s32 %s28, %s40
      %p138 = scmp.eq.s32.totalorder %s137, 0
      %s140 = sadd.s32 %s139, 1
      %s141 = scalar_select %p138, %s139, %s140
      %p144 = pneg %p138
      %p145 = scmp.eq.s32.totalorder %s21, 1
      %p146 = por %p144, %p145
      %p147 = scmp.ne.s32.totalorder %s139, %s142
      %p148 = scmp.eq.s32.totalorder %s21, 0
      %p149 = por %p147, %p148
      %p150 = scmp.ne.s32.totalorder %s139, %s142
      %p151 = scmp.eq.s32.totalorder %s26, 1
      %p152 = por %p150, %p151
      %p153 = scmp.ne.s32.totalorder %s142, %s143
      %p154 = scmp.eq.s32.totalorder %s26, 0
      %p155 = por %p153, %p154
      %p156 = scmp.ne.s32.totalorder %s142, %s143
      %p157 = scmp.eq.s32.totalorder %s27, 1
      %p158 = por %p156, %p157
      %p160 = scmp.ne.s32.totalorder %s143, %s159
      %p161 = scmp.eq.s32.totalorder %s27, 0
      %p162 = por %p160, %p161
      %s163 = ssub.s32 %s28, %s40
      %p164 = scmp.eq.s32.totalorder %s163, 0
      %s166 = sadd.s32 %s165, 1
      %s167 = scalar_select %p164, %s165, %s166
      %p170 = pneg %p164
      %p171 = scmp.eq.s32.totalorder %s21, 1
      %p172 = por %p170, %p171
      %p173 = scmp.ne.s32.totalorder %s165, %s168
      %p174 = scmp.eq.s32.totalorder %s21, 0
      %p175 = por %p173, %p174
      %p176 = scmp.ne.s32.totalorder %s165, %s168
      %p177 = scmp.eq.s32.totalorder %s26, 1
      %p178 = por %p176, %p177
      %p179 = scmp.ne.s32.totalorder %s168, %s169
      %p180 = scmp.eq.s32.totalorder %s26, 0
      %p181 = por %p179, %p180
      %p182 = scmp.ne.s32.totalorder %s168, %s169
      %p183 = scmp.eq.s32.totalorder %s27, 1
      %p184 = por %p182, %p183
      %p186 = scmp.ne.s32.totalorder %s169, %s185
      %p187 = scmp.eq.s32.totalorder %s27, 0
      %p188 = por %p186, %p187
      %p189 = scmp.le.s32.totalorder 1, %s21
      %p190 = scmp.lt.s32.totalorder %s21, 3
      %p191 = pnand %p189, %p190
      %p192 = pneg %p191
      // Predicated region
      $region9: #{tpu_custom_call.1} parent=5 // pred_check
        _
      $region10: #{tpu_custom_call.1} parent=5 // pred_check_branch
        %194 = sbr.rel (%p191) target = $region12
      $region11: #{tpu_custom_call.1} parent=5 // pred_region
        %s195 = ssub.s32 %s21, 1
        // Predicated region
        $region13: #{tpu_custom_call.1} parent=11 // pred_check
          %p196 = pneg %p108
        $region14: #{tpu_custom_call.1} parent=11 // pred_check_branch
          %198 = sbr.rel (%p196) target = $region16
        $region15: #{tpu_custom_call.1} parent=11 // pred_region
          %200 = vsyncadd [#allocation9], 0
          %s201 = sshll.u32 %s2, 4
          %s202 = int_to_ptr.hbm [resolvable:$true] %s201
          %s203 = sshll.u32 [#allocation10], 4
          %s204 = int_to_ptr.vmem [resolvable:$true] %s203
          %209 = dma.hbm_to_vmem [thread:$0]  %s202, 2048, %s204, [#allocation9], 128, 128, 8
        $region16: #{tpu_custom_call.1} parent=11 // pred_fallthru
          _
        // Predicated region
        $region17: #{tpu_custom_call.1} parent=11 // pred_check
          %p210 = pneg %p129
        $region18: #{tpu_custom_call.1} parent=11 // pred_check_branch
          %212 = sbr.rel (%p210) target = $region20
        $region19: #{tpu_custom_call.1} parent=11 // pred_region
          %214 = vsyncadd [#allocation7], 0
          %s216 = sshll.u32 %s3, 4
          %s217 = int_to_ptr.vmem [resolvable:$true] %s216
          %219 = dma.vmem_to_smem %s217, 16, [#allocation11], [#allocation7]
        $region20: #{tpu_custom_call.1} parent=11 // pred_fallthru
          _
      $region12: #{tpu_custom_call.1} parent=5 // pred_fallthru
        _
      %p220 = scmp.lt.s32.totalorder %s21, 2
      // Predicated region
      $region21: #{tpu_custom_call.1} parent=5 // pred_check
        %p221 = pneg %p220
      $region22: #{tpu_custom_call.1} parent=5 // pred_check_branch
        %223 = sbr.rel (%p221) target = $region24
      $region23: #{tpu_custom_call.1} parent=5 // pred_region
        // Predicated region
        $region25: #{tpu_custom_call.1} parent=23 // pred_check
          %p224 = pneg %p53
        $region26: #{tpu_custom_call.1} parent=23 // pred_check_branch
          %226 = sbr.rel (%p224) target = $region28
        $region27: #{tpu_custom_call.1} parent=23 // pred_region
          %s227 = sand.u32 %s43, 1
          %s228 = scalar_lea.sflag [#allocation5], %s227
          %s229 = sand.u32 %s43, 1
          %s230 = smul.addr %s229, 64
          %s231 = scalar_lea.vmem [#allocation4], %s230
          %233 = vsyncadd %s228, 0
          %s234 = smul.addr %s28, 16
          %s235 = smul.addr %s234, 4
          %s236 = scalar_lea.hbm %s0, %s235
          %s237 = sshll.u32 %s236, 4
          %s238 = int_to_ptr.hbm [resolvable:$true] %s237
          %s239 = sshll.u32 %s231, 4
          %s240 = int_to_ptr.vmem [resolvable:$true] %s239
          %245 = dma.hbm_to_vmem [thread:$0]  %s238, 1024, %s240, %s228, 64, 64, 4
        $region28: #{tpu_custom_call.1} parent=23 // pred_fallthru
          _
        // Predicated region
        $region29: #{tpu_custom_call.1} parent=23 // pred_check
          %p246 = pneg %p81
        $region30: #{tpu_custom_call.1} parent=23 // pred_check_branch
          %248 = sbr.rel (%p246) target = $region32
        $region31: #{tpu_custom_call.1} parent=23 // pred_region
          %s249 = sand.u32 %s21, 1
          %s250 = scalar_lea.sflag [#allocation9], %s249
          %s251 = sand.u32 %s71, 1
          %s252 = smul.addr %s251, 256
          %s253 = scalar_lea.vmem [#allocation8], %s252
          %s254 = smul.u32 4, %s29
          %256 = vsyncadd %s250, 0
          %s257 = smul.addr %s254, 16
          %s258 = smul.addr %s28, 64
          %s259 = sadd.s32 %s257, %s258
          %s260 = smul.addr %s259, 4
          %s261 = scalar_lea.hbm %s1, %s260
          %s262 = sshll.u32 %s261, 4
          %s263 = int_to_ptr.hbm [resolvable:$true] %s262
          %s264 = sshll.u32 %s253, 4
          %s265 = int_to_ptr.vmem [resolvable:$true] %s264
          %270 = dma.hbm_to_vmem [thread:$0]  %s263, 4096, %s265, %s250, 64, 64, 4
        $region32: #{tpu_custom_call.1} parent=23 // pred_fallthru
          _
      $region24: #{tpu_custom_call.1} parent=5 // pred_fallthru
        _
      %p271 = scmp.le.s32.totalorder 1, %s21
      %p272 = scmp.lt.s32.totalorder %s21, 3
      %p273 = pnand %p271, %p272
      %p274 = pneg %p273
      // Predicated region
      $region33: #{tpu_custom_call.1} parent=5 // pred_check
        _
      $region34: #{tpu_custom_call.1} parent=5 // pred_check_branch
        %276 = sbr.rel (%p273) target = $region36
      $region35: #{tpu_custom_call.1} parent=5 // pred_region
        %s277 = ssub.s32 %s21, 1
        %s278 = sand.u32 %s46, 1
        %s279 = scalar_lea.sflag [#allocation5], %s278
        %s280 = sand.u32 %s46, 1
        %s281 = smul.addr %s280, 64
        %s282 = scalar_lea.vmem [#allocation4], %s281
        // Predicated region
        $region37: #{tpu_custom_call.1} parent=35 // pred_check
          %p283 = pneg %p59
        $region38: #{tpu_custom_call.1} parent=35 // pred_check_branch
          %285 = sbr.rel (%p283) target = $region40
        $region39: #{tpu_custom_call.1} parent=35 // pred_region
          %287 = dma.done %s279, 1024
        $region40: #{tpu_custom_call.1} parent=35 // pred_fallthru
          _
        %s288 = sand.u32 %s26, 1
        %s289 = scalar_lea.sflag [#allocation9], %s288
        %s290 = sand.u32 %s74, 1
        %s291 = smul.addr %s290, 256
        %s292 = scalar_lea.vmem [#allocation8], %s291
        // Predicated region
        $region41: #{tpu_custom_call.1} parent=35 // pred_check
          %p293 = pneg %p87
        $region42: #{tpu_custom_call.1} parent=35 // pred_check_branch
          %295 = sbr.rel (%p293) target = $region44
        $region43: #{tpu_custom_call.1} parent=35 // pred_region
          %297 = dma.done %s289, 4096
        $region44: #{tpu_custom_call.1} parent=35 // pred_fallthru
          _
        // Predicated region
        $region45: #{tpu_custom_call.1} parent=35 // pred_check
          %p298 = pneg %p108
        $region46: #{tpu_custom_call.1} parent=35 // pred_check_branch
          %300 = sbr.rel (%p298) target = $region48
        $region47: #{tpu_custom_call.1} parent=35 // pred_region
          %302 = dma.done [#allocation9], 2048
        $region48: #{tpu_custom_call.1} parent=35 // pred_fallthru
          _
        // Predicated region
        $region49: #{tpu_custom_call.1} parent=35 // pred_check
          %p303 = pneg %p129
        $region50: #{tpu_custom_call.1} parent=35 // pred_check_branch
          %305 = sbr.rel (%p303) target = $region52
        $region51: #{tpu_custom_call.1} parent=35 // pred_region
          %307 = dma.done [#allocation7], 16
        $region52: #{tpu_custom_call.1} parent=35 // pred_fallthru
          _
        %308 = sfence
        %s309 = sand.u32 %s46, 1
        %s310 = scalar_lea.sflag [#allocation5], %s309
        %s311 = sand.u32 %s46, 1
        %s312 = smul.addr %s311, 64
        %s313 = scalar_lea.vmem [#allocation4], %s312
        %p314 = pneg %p59
        %p315 = pneg %p56
        %s316 = sand.u32 %s26, 1
        %s317 = scalar_lea.sflag [#allocation9], %s316
        %s318 = sand.u32 %s74, 1
        %s319 = smul.addr %s318, 256
        %s320 = scalar_lea.vmem [#allocation8], %s319
        %p321 = pneg %p87
        %p322 = pneg %p84
        %p323 = pneg %p108
        %p324 = pneg %p105
        %p325 = pneg %p129
        %p326 = pneg %p126
        %p327 = pneg %p155
        %p328 = pneg %p152
        %p329 = pneg %p181
        %p330 = pneg %p178
        %s331 = smul.u32 4, %s31
        %p332 = scmp.eq.s32.totalorder %s31, 0
        // Predicated region
        $region53: #{tpu_custom_call.1} parent=35 // pred_check
          %p333 = pneg %p332
        $region54: #{tpu_custom_call.1} parent=35 // pred_check_branch
          %335 = sbr.rel (%p333) target = $region56
        $region55: #{tpu_custom_call.1} parent=35 // pred_region
          %336 = vst [vmem:[#allocation2] sm:$0xff] 0.0
          %337 = vst [vmem:[#allocation2 + $0x8] sm:$0xff] 0.0
          %338 = vst [vmem:[#allocation2 + $0x10] sm:$0xff] 0.0
          %339 = vst [vmem:[#allocation2 + $0x18] sm:$0xff] 0.0
          %340 = vst [vmem:[#allocation2 + $0x20] sm:$0xff] 0.0
          %341 = vst [vmem:[#allocation2 + $0x28] sm:$0xff] 0.0
          %342 = vst [vmem:[#allocation2 + $0x30] sm:$0xff] 0.0
          %343 = vst [vmem:[#allocation2 + $0x38] sm:$0xff] 0.0
          %344 = vst [vmem:[#allocation2 + $0x40] sm:$0xff] 0.0
          %345 = vst [vmem:[#allocation2 + $0x48] sm:$0xff] 0.0
          %346 = vst [vmem:[#allocation2 + $0x50] sm:$0xff] 0.0
          %347 = vst [vmem:[#allocation2 + $0x58] sm:$0xff] 0.0
          %348 = vst [vmem:[#allocation2 + $0x60] sm:$0xff] 0.0
          %349 = vst [vmem:[#allocation2 + $0x68] sm:$0xff] 0.0
          %350 = vst [vmem:[#allocation2 + $0x70] sm:$0xff] 0.0
          %351 = vst [vmem:[#allocation2 + $0x78] sm:$0xff] 0.0
        $region56: #{tpu_custom_call.1} parent=35 // pred_fallthru
          _
        %v352 = vld [vmem:[#allocation2] sm:$0xff]
        %v353 = vld [vmem:[#allocation2 + $0x8] sm:$0xff]
        %v354 = vld [vmem:[#allocation2 + $0x10] sm:$0xff]
        %v355 = vld [vmem:[#allocation2 + $0x18] sm:$0xff]
        %v356 = vld [vmem:[#allocation2 + $0x20] sm:$0xff]
        %v357 = vld [vmem:[#allocation2 + $0x28] sm:$0xff]
        %v358 = vld [vmem:[#allocation2 + $0x30] sm:$0xff]
        %v359 = vld [vmem:[#allocation2 + $0x38] sm:$0xff]
        %v360 = vld [vmem:[#allocation2 + $0x40] sm:$0xff]
        %v361 = vld [vmem:[#allocation2 + $0x48] sm:$0xff]
        %v362 = vld [vmem:[#allocation2 + $0x50] sm:$0xff]
        %v363 = vld [vmem:[#allocation2 + $0x58] sm:$0xff]
        %v364 = vld [vmem:[#allocation2 + $0x60] sm:$0xff]
        %v365 = vld [vmem:[#allocation2 + $0x68] sm:$0xff]
        %v366 = vld [vmem:[#allocation2 + $0x70] sm:$0xff]
        %v367 = vld [vmem:[#allocation2 + $0x78] sm:$0xff]
        %v368 = vld [vmem:[%s292] sm:$0xf]
        %v369 = vld [vmem:[%s292 + $0x4] sm:$0xf]
        %v370 = vld [vmem:[%s292 + $0x8] sm:$0xf]
        %v371 = vld [vmem:[%s292 + $0xc] sm:$0xf]
        %v372 = vld [vmem:[%s292 + $0x10] sm:$0xf]
        %v373 = vld [vmem:[%s292 + $0x14] sm:$0xf]
        %v374 = vld [vmem:[%s292 + $0x18] sm:$0xf]
        %v375 = vld [vmem:[%s292 + $0x1c] sm:$0xf]
        %v376 = vld [vmem:[%s292 + $0x20] sm:$0xf]
        %v377 = vld [vmem:[%s292 + $0x24] sm:$0xf]
        %v378 = vld [vmem:[%s292 + $0x28] sm:$0xf]
        %v379 = vld [vmem:[%s292 + $0x2c] sm:$0xf]
        %v380 = vld [vmem:[%s292 + $0x30] sm:$0xf]
        %v381 = vld [vmem:[%s292 + $0x34] sm:$0xf]
        %v382 = vld [vmem:[%s292 + $0x38] sm:$0xf]
        %v383 = vld [vmem:[%s292 + $0x3c] sm:$0xf]
        %v384 = vld [vmem:[%s292 + $0x40] sm:$0xf]
        %v385 = vld [vmem:[%s292 + $0x44] sm:$0xf]
        %v386 = vld [vmem:[%s292 + $0x48] sm:$0xf]
        %v387 = vld [vmem:[%s292 + $0x4c] sm:$0xf]
        %v388 = vld [vmem:[%s292 + $0x50] sm:$0xf]
        %v389 = vld [vmem:[%s292 + $0x54] sm:$0xf]
        %v390 = vld [vmem:[%s292 + $0x58] sm:$0xf]
        %v391 = vld [vmem:[%s292 + $0x5c] sm:$0xf]
        %v392 = vld [vmem:[%s292 + $0x60] sm:$0xf]
        %v393 = vld [vmem:[%s292 + $0x64] sm:$0xf]
        %v394 = vld [vmem:[%s292 + $0x68] sm:$0xf]
        %v395 = vld [vmem:[%s292 + $0x6c] sm:$0xf]
        %v396 = vld [vmem:[%s292 + $0x70] sm:$0xf]
        %v397 = vld [vmem:[%s292 + $0x74] sm:$0xf]
        %v398 = vld [vmem:[%s292 + $0x78] sm:$0xf]
        %v399 = vld [vmem:[%s292 + $0x7c] sm:$0xf]
        %v400 = vld [vmem:[%s292 + $0x80] sm:$0xf]
        %v401 = vld [vmem:[%s292 + $0x84] sm:$0xf]
        %v402 = vld [vmem:[%s292 + $0x88] sm:$0xf]
        %v403 = vld [vmem:[%s292 + $0x8c] sm:$0xf]
        %v404 = vld [vmem:[%s292 + $0x90] sm:$0xf]
        %v405 = vld [vmem:[%s292 + $0x94] sm:$0xf]
        %v406 = vld [vmem:[%s292 + $0x98] sm:$0xf]
        %v407 = vld [vmem:[%s292 + $0x9c] sm:$0xf]
        %v408 = vld [vmem:[%s292 + $0xa0] sm:$0xf]
        %v409 = vld [vmem:[%s292 + $0xa4] sm:$0xf]
        %v410 = vld [vmem:[%s292 + $0xa8] sm:$0xf]
        %v411 = vld [vmem:[%s292 + $0xac] sm:$0xf]
        %v412 = vld [vmem:[%s292 + $0xb0] sm:$0xf]
        %v413 = vld [vmem:[%s292 + $0xb4] sm:$0xf]
        %v414 = vld [vmem:[%s292 + $0xb8] sm:$0xf]
        %v415 = vld [vmem:[%s292 + $0xbc] sm:$0xf]
        %v416 = vld [vmem:[%s292 + $0xc0] sm:$0xf]
        %v417 = vld [vmem:[%s292 + $0xc4] sm:$0xf]
        %v418 = vld [vmem:[%s292 + $0xc8] sm:$0xf]
        %v419 = vld [vmem:[%s292 + $0xcc] sm:$0xf]
        %v420 = vld [vmem:[%s292 + $0xd0] sm:$0xf]
        %v421 = vld [vmem:[%s292 + $0xd4] sm:$0xf]
        %v422 = vld [vmem:[%s292 + $0xd8] sm:$0xf]
        %v423 = vld [vmem:[%s292 + $0xdc] sm:$0xf]
        %v424 = vld [vmem:[%s292 + $0xe0] sm:$0xf]
        %v425 = vld [vmem:[%s292 + $0xe4] sm:$0xf]
        %v426 = vld [vmem:[%s292 + $0xe8] sm:$0xf]
        %v427 = vld [vmem:[%s292 + $0xec] sm:$0xf]
        %v428 = vld [vmem:[%s292 + $0xf0] sm:$0xf]
        %v429 = vld [vmem:[%s292 + $0xf4] sm:$0xf]
        %v430 = vld [vmem:[%s292 + $0xf8] sm:$0xf]
        %v431 = vld [vmem:[%s292 + $0xfc] sm:$0xf]
        %v432 = vunpack.c.l.bf16 %v368
        %v433 = vunpack.c.l.bf16 %v369
        %v434 = vunpack.c.l.bf16 %v370
        %v435 = vunpack.c.l.bf16 %v371
        %v436 = vunpack.c.l.bf16 %v372
        %v437 = vunpack.c.l.bf16 %v373
        %v438 = vunpack.c.l.bf16 %v374
        %v439 = vunpack.c.l.bf16 %v375
        %v440 = vunpack.c.l.bf16 %v376
        %v441 = vunpack.c.l.bf16 %v377
        %v442 = vunpack.c.l.bf16 %v378
        %v443 = vunpack.c.l.bf16 %v379
        %v444 = vunpack.c.l.bf16 %v380
        %v445 = vunpack.c.l.bf16 %v381
        %v446 = vunpack.c.l.bf16 %v382
        %v447 = vunpack.c.l.bf16 %v383
        %v448 = vunpack.c.l.bf16 %v384
        %v449 = vunpack.c.l.bf16 %v385
        %v450 = vunpack.c.l.bf16 %v386
        %v451 = vunpack.c.l.bf16 %v387
        %v452 = vunpack.c.l.bf16 %v388
        %v453 = vunpack.c.l.bf16 %v389
        %v454 = vunpack.c.l.bf16 %v390
        %v455 = vunpack.c.l.bf16 %v391
        %v456 = vunpack.c.l.bf16 %v392
        %v457 = vunpack.c.l.bf16 %v393
        %v458 = vunpack.c.l.bf16 %v394
        %v459 = vunpack.c.l.bf16 %v395
        %v460 = vunpack.c.l.bf16 %v396
        %v461 = vunpack.c.l.bf16 %v397
        %v462 = vunpack.c.l.bf16 %v398
        %v463 = vunpack.c.l.bf16 %v399
        %v464 = vunpack.c.l.bf16 %v400
        %v465 = vunpack.c.l.bf16 %v401
        %v466 = vunpack.c.l.bf16 %v402
        %v467 = vunpack.c.l.bf16 %v403
        %v468 = vunpack.c.l.bf16 %v404
        %v469 = vunpack.c.l.bf16 %v405
        %v470 = vunpack.c.l.bf16 %v406
        %v471 = vunpack.c.l.bf16 %v407
        %v472 = vunpack.c.l.bf16 %v408
        %v473 = vunpack.c.l.bf16 %v409
        %v474 = vunpack.c.l.bf16 %v410
        %v475 = vunpack.c.l.bf16 %v411
        %v476 = vunpack.c.l.bf16 %v412
        %v477 = vunpack.c.l.bf16 %v413
        %v478 = vunpack.c.l.bf16 %v414
        %v479 = vunpack.c.l.bf16 %v415
        %v480 = vunpack.c.l.bf16 %v416
        %v481 = vunpack.c.l.bf16 %v417
        %v482 = vunpack.c.l.bf16 %v418
        %v483 = vunpack.c.l.bf16 %v419
        %v484 = vunpack.c.l.bf16 %v420
        %v485 = vunpack.c.l.bf16 %v421
        %v486 = vunpack.c.l.bf16 %v422
        %v487 = vunpack.c.l.bf16 %v423
        %v488 = vunpack.c.l.bf16 %v424
        %v489 = vunpack.c.l.bf16 %v425
        %v490 = vunpack.c.l.bf16 %v426
        %v491 = vunpack.c.l.bf16 %v427
        %v492 = vunpack.c.l.bf16 %v428
        %v493 = vunpack.c.l.bf16 %v429
        %v494 = vunpack.c.l.bf16 %v430
        %v495 = vunpack.c.l.bf16 %v431
        %v496 = vadd.f32 %v432, %v448
        %v497 = vadd.f32 %v496, %v464
        %v498 = vadd.f32 %v497, %v480
        %v499 = vadd.f32 %v433, %v449
        %v500 = vadd.f32 %v499, %v465
        %v501 = vadd.f32 %v500, %v481
        %v502 = vadd.f32 %v434, %v450
        %v503 = vadd.f32 %v502, %v466
        %v504 = vadd.f32 %v503, %v482
        %v505 = vadd.f32 %v435, %v451
        %v506 = vadd.f32 %v505, %v467
        %v507 = vadd.f32 %v506, %v483
        %v508 = vadd.f32 %v436, %v452
        %v509 = vadd.f32 %v508, %v468
        %v510 = vadd.f32 %v509, %v484
        %v511 = vadd.f32 %v437, %v453
        %v512 = vadd.f32 %v511, %v469
        %v513 = vadd.f32 %v512, %v485
        %v514 = vadd.f32 %v438, %v454
        %v515 = vadd.f32 %v514, %v470
        %v516 = vadd.f32 %v515, %v486
        %v517 = vadd.f32 %v439, %v455
        %v518 = vadd.f32 %v517, %v471
        %v519 = vadd.f32 %v518, %v487
        %v520 = vadd.f32 %v440, %v456
        %v521 = vadd.f32 %v520, %v472
        %v522 = vadd.f32 %v521, %v488
        %v523 = vadd.f32 %v441, %v457
        %v524 = vadd.f32 %v523, %v473
        %v525 = vadd.f32 %v524, %v489
        %v526 = vadd.f32 %v442, %v458
        %v527 = vadd.f32 %v526, %v474
        %v528 = vadd.f32 %v527, %v490
        %v529 = vadd.f32 %v443, %v459
        %v530 = vadd.f32 %v529, %v475
        %v531 = vadd.f32 %v530, %v491
        %v532 = vadd.f32 %v444, %v460
        %v533 = vadd.f32 %v532, %v476
        %v534 = vadd.f32 %v533, %v492
        %v535 = vadd.f32 %v445, %v461
        %v536 = vadd.f32 %v535, %v477
        %v537 = vadd.f32 %v536, %v493
        %v538 = vadd.f32 %v446, %v462
        %v539 = vadd.f32 %v538, %v478
        %v540 = vadd.f32 %v539, %v494
        %v541 = vadd.f32 %v447, %v463
        %v542 = vadd.f32 %v541, %v479
        %v543 = vadd.f32 %v542, %v495
        %v544 = vadd.f32 %v352, %v498
        %v545 = vadd.f32 %v353, %v501
        %v546 = vadd.f32 %v354, %v504
        %v547 = vadd.f32 %v355, %v507
        %v548 = vadd.f32 %v356, %v510
        %v549 = vadd.f32 %v357, %v513
        %v550 = vadd.f32 %v358, %v516
        %v551 = vadd.f32 %v359, %v519
        %v552 = vadd.f32 %v360, %v522
        %v553 = vadd.f32 %v361, %v525
        %v554 = vadd.f32 %v362, %v528
        %v555 = vadd.f32 %v363, %v531
        %v556 = vadd.f32 %v364, %v534
        %v557 = vadd.f32 %v365, %v537
        %v558 = vadd.f32 %v366, %v540
        %v559 = vadd.f32 %v367, %v543
        %560 = vst [vmem:[#allocation2] sm:$0xff] %v544
        %561 = vst [vmem:[#allocation2 + $0x8] sm:$0xff] %v545
        %562 = vst [vmem:[#allocation2 + $0x10] sm:$0xff] %v546
        %563 = vst [vmem:[#allocation2 + $0x18] sm:$0xff] %v547
        %564 = vst [vmem:[#allocation2 + $0x20] sm:$0xff] %v548
        %565 = vst [vmem:[#allocation2 + $0x28] sm:$0xff] %v549
        %566 = vst [vmem:[#allocation2 + $0x30] sm:$0xff] %v550
        %567 = vst [vmem:[#allocation2 + $0x38] sm:$0xff] %v551
        %568 = vst [vmem:[#allocation2 + $0x40] sm:$0xff] %v552
        %569 = vst [vmem:[#allocation2 + $0x48] sm:$0xff] %v553
        %570 = vst [vmem:[#allocation2 + $0x50] sm:$0xff] %v554
        %571 = vst [vmem:[#allocation2 + $0x58] sm:$0xff] %v555
        %572 = vst [vmem:[#allocation2 + $0x60] sm:$0xff] %v556
        %573 = vst [vmem:[#allocation2 + $0x68] sm:$0xff] %v557
        %574 = vst [vmem:[#allocation2 + $0x70] sm:$0xff] %v558
        %575 = vst [vmem:[#allocation2 + $0x78] sm:$0xff] %v559
        // Predicated region
        $region57: #{tpu_custom_call.1} parent=35 // pred_check
          %p576 = pneg %p332
        $region58: #{tpu_custom_call.1} parent=35 // pred_check_branch
          %578 = sbr.rel (%p576) target = $region60
        $region59: #{tpu_custom_call.1} parent=35 // pred_region
          %v579 = vld [vmem:[%s282] sm:$0xf]
          %v580 = vld [vmem:[%s282 + $0x4] sm:$0xf]
          %v581 = vld [vmem:[%s282 + $0x8] sm:$0xf]
          %v582 = vld [vmem:[%s282 + $0xc] sm:$0xf]
          %v583 = vld [vmem:[%s282 + $0x10] sm:$0xf]
          %v584 = vld [vmem:[%s282 + $0x14] sm:$0xf]
          %v585 = vld [vmem:[%s282 + $0x18] sm:$0xf]
          %v586 = vld [vmem:[%s282 + $0x1c] sm:$0xf]
          %v587 = vld [vmem:[%s282 + $0x20] sm:$0xf]
          %v588 = vld [vmem:[%s282 + $0x24] sm:$0xf]
          %v589 = vld [vmem:[%s282 + $0x28] sm:$0xf]
          %v590 = vld [vmem:[%s282 + $0x2c] sm:$0xf]
          %v591 = vld [vmem:[%s282 + $0x30] sm:$0xf]
          %v592 = vld [vmem:[%s282 + $0x34] sm:$0xf]
          %v593 = vld [vmem:[%s282 + $0x38] sm:$0xf]
          %v594 = vld [vmem:[%s282 + $0x3c] sm:$0xf]
          %v595 = vunpack.c.l.bf16 %v579
          %v596 = vunpack.c.l.bf16 %v580
          %v597 = vunpack.c.l.bf16 %v581
          %v598 = vunpack.c.l.bf16 %v582
          %v599 = vunpack.c.l.bf16 %v583
          %v600 = vunpack.c.l.bf16 %v584
          %v601 = vunpack.c.l.bf16 %v585
          %v602 = vunpack.c.l.bf16 %v586
          %v603 = vunpack.c.l.bf16 %v587
          %v604 = vunpack.c.l.bf16 %v588
          %v605 = vunpack.c.l.bf16 %v589
          %v606 = vunpack.c.l.bf16 %v590
          %v607 = vunpack.c.l.bf16 %v591
          %v608 = vunpack.c.l.bf16 %v592
          %v609 = vunpack.c.l.bf16 %v593
          %v610 = vunpack.c.l.bf16 %v594
          %v611 = vmul.f32 %v595, 0.5
          %v612 = vmul.f32 %v596, 0.5
          %v613 = vmul.f32 %v597, 0.5
          %v614 = vmul.f32 %v598, 0.5
          %v615 = vmul.f32 %v599, 0.5
          %v616 = vmul.f32 %v600, 0.5
          %v617 = vmul.f32 %v601, 0.5
          %v618 = vmul.f32 %v602, 0.5
          %v619 = vmul.f32 %v603, 0.5
          %v620 = vmul.f32 %v604, 0.5
          %v621 = vmul.f32 %v605, 0.5
          %v622 = vmul.f32 %v606, 0.5
          %v623 = vmul.f32 %v607, 0.5
          %v624 = vmul.f32 %v608, 0.5
          %v625 = vmul.f32 %v609, 0.5
          %v626 = vmul.f32 %v610, 0.5
          %v627 = vld [vmem:[#allocation2] sm:$0xff]
          %v628 = vld [vmem:[#allocation2 + $0x8] sm:$0xff]
          %v629 = vld [vmem:[#allocation2 + $0x10] sm:$0xff]
          %v630 = vld [vmem:[#allocation2 + $0x18] sm:$0xff]
          %v631 = vld [vmem:[#allocation2 + $0x20] sm:$0xff]
          %v632 = vld [vmem:[#allocation2 + $0x28] sm:$0xff]
          %v633 = vld [vmem:[#allocation2 + $0x30] sm:$0xff]
          %v634 = vld [vmem:[#allocation2 + $0x38] sm:$0xff]
          %v635 = vld [vmem:[#allocation2 + $0x40] sm:$0xff]
          %v636 = vld [vmem:[#allocation2 + $0x48] sm:$0xff]
          %v637 = vld [vmem:[#allocation2 + $0x50] sm:$0xff]
          %v638 = vld [vmem:[#allocation2 + $0x58] sm:$0xff]
          %v639 = vld [vmem:[#allocation2 + $0x60] sm:$0xff]
          %v640 = vld [vmem:[#allocation2 + $0x68] sm:$0xff]
          %v641 = vld [vmem:[#allocation2 + $0x70] sm:$0xff]
          %v642 = vld [vmem:[#allocation2 + $0x78] sm:$0xff]
          %v643 = vmul.f32 %v627, 0.125
          %v644 = vmul.f32 %v628, 0.125
          %v645 = vmul.f32 %v629, 0.125
          %v646 = vmul.f32 %v630, 0.125
          %v647 = vmul.f32 %v631, 0.125
          %v648 = vmul.f32 %v632, 0.125
          %v649 = vmul.f32 %v633, 0.125
          %v650 = vmul.f32 %v634, 0.125
          %v651 = vmul.f32 %v635, 0.125
          %v652 = vmul.f32 %v636, 0.125
          %v653 = vmul.f32 %v637, 0.125
          %v654 = vmul.f32 %v638, 0.125
          %v655 = vmul.f32 %v639, 0.125
          %v656 = vmul.f32 %v640, 0.125
          %v657 = vmul.f32 %v641, 0.125
          %v658 = vmul.f32 %v642, 0.125
          %v659 = vadd.f32 %v611, %v643
          %v660 = vadd.f32 %v612, %v644
          %v661 = vadd.f32 %v613, %v645
          %v662 = vadd.f32 %v614, %v646
          %v663 = vadd.f32 %v615, %v647
          %v664 = vadd.f32 %v616, %v648
          %v665 = vadd.f32 %v617, %v649
          %v666 = vadd.f32 %v618, %v650
          %v667 = vadd.f32 %v619, %v651
          %v668 = vadd.f32 %v620, %v652
          %v669 = vadd.f32 %v621, %v653
          %v670 = vadd.f32 %v622, %v654
          %v671 = vadd.f32 %v623, %v655
          %v672 = vadd.f32 %v624, %v656
          %v673 = vadd.f32 %v625, %v657
          %v674 = vadd.f32 %v626, %v658
          %v675 = vpack.c.bf16 %v659, %v659
          %v676 = vpack.c.bf16 %v660, %v660
          %v677 = vpack.c.bf16 %v661, %v661
          %v678 = vpack.c.bf16 %v662, %v662
          %v679 = vpack.c.bf16 %v663, %v663
          %v680 = vpack.c.bf16 %v664, %v664
          %v681 = vpack.c.bf16 %v665, %v665
          %v682 = vpack.c.bf16 %v666, %v666
          %v683 = vpack.c.bf16 %v667, %v667
          %v684 = vpack.c.bf16 %v668, %v668
          %v685 = vpack.c.bf16 %v669, %v669
          %v686 = vpack.c.bf16 %v670, %v670
          %v687 = vpack.c.bf16 %v671, %v671
          %v688 = vpack.c.bf16 %v672, %v672
          %v689 = vpack.c.bf16 %v673, %v673
          %v690 = vpack.c.bf16 %v674, %v674
          %691 = vst [vmem:[#allocation3] sm:$0xf] %v675
          %692 = vst [vmem:[#allocation3 + $0x4] sm:$0xf] %v676
          %693 = vst [vmem:[#allocation3 + $0x8] sm:$0xf] %v677
          %694 = vst [vmem:[#allocation3 + $0xc] sm:$0xf] %v678
          %695 = vst [vmem:[#allocation3 + $0x10] sm:$0xf] %v679
          %696 = vst [vmem:[#allocation3 + $0x14] sm:$0xf] %v680
          %697 = vst [vmem:[#allocation3 + $0x18] sm:$0xf] %v681
          %698 = vst [vmem:[#allocation3 + $0x1c] sm:$0xf] %v682
          %699 = vst [vmem:[#allocation3 + $0x20] sm:$0xf] %v683
          %700 = vst [vmem:[#allocation3 + $0x24] sm:$0xf] %v684
          %701 = vst [vmem:[#allocation3 + $0x28] sm:$0xf] %v685
          %702 = vst [vmem:[#allocation3 + $0x2c] sm:$0xf] %v686
          %703 = vst [vmem:[#allocation3 + $0x30] sm:$0xf] %v687
          %704 = vst [vmem:[#allocation3 + $0x34] sm:$0xf] %v688
          %705 = vst [vmem:[#allocation3 + $0x38] sm:$0xf] %v689
          %706 = vst [vmem:[#allocation3 + $0x3c] sm:$0xf] %v690
          %v707 = vld [vmem:[#allocation3] sm:$0xf]
          %v708 = vld [vmem:[#allocation3 + $0x4] sm:$0xf]
          %v709 = vld [vmem:[#allocation3 + $0x8] sm:$0xf]
          %v710 = vld [vmem:[#allocation3 + $0xc] sm:$0xf]
          %v711 = vld [vmem:[#allocation3 + $0x10] sm:$0xf]
          %v712 = vld [vmem:[#allocation3 + $0x14] sm:$0xf]
          %v713 = vld [vmem:[#allocation3 + $0x18] sm:$0xf]
          %v714 = vld [vmem:[#allocation3 + $0x1c] sm:$0xf]
          %v715 = vld [vmem:[#allocation3 + $0x20] sm:$0xf]
          %v716 = vld [vmem:[#allocation3 + $0x24] sm:$0xf]
          %v717 = vld [vmem:[#allocation3 + $0x28] sm:$0xf]
          %v718 = vld [vmem:[#allocation3 + $0x2c] sm:$0xf]
          %v719 = vld [vmem:[#allocation3 + $0x30] sm:$0xf]
          %v720 = vld [vmem:[#allocation3 + $0x34] sm:$0xf]
          %v721 = vld [vmem:[#allocation3 + $0x38] sm:$0xf]
          %v722 = vld [vmem:[#allocation3 + $0x3c] sm:$0xf]
          %v723 = vld [vmem:[#allocation10] sm:$0xff]
          %v724 = vld [vmem:[#allocation10 + $0x8] sm:$0xff]
          %v725 = vld [vmem:[#allocation10 + $0x10] sm:$0xff]
          %v726 = vld [vmem:[#allocation10 + $0x18] sm:$0xff]
          %v727 = vld [vmem:[#allocation10 + $0x20] sm:$0xff]
          %v728 = vld [vmem:[#allocation10 + $0x28] sm:$0xff]
          %v729 = vld [vmem:[#allocation10 + $0x30] sm:$0xff]
          %v730 = vld [vmem:[#allocation10 + $0x38] sm:$0xff]
          %v731 = vld [vmem:[#allocation10 + $0x40] sm:$0xff]
          %v732 = vld [vmem:[#allocation10 + $0x48] sm:$0xff]
          %v733 = vld [vmem:[#allocation10 + $0x50] sm:$0xff]
          %v734 = vld [vmem:[#allocation10 + $0x58] sm:$0xff]
          %v735 = vld [vmem:[#allocation10 + $0x60] sm:$0xff]
          %v736 = vld [vmem:[#allocation10 + $0x68] sm:$0xff]
          %v737 = vld [vmem:[#allocation10 + $0x70] sm:$0xff]
          %v738 = vld [vmem:[#allocation10 + $0x78] sm:$0xff]
          %v755 = vunpack.c.l.b16 %v707
          %v756 = vunpack.c.l.b16 %v708
          %v757 = vunpack.c.l.b16 %v709
          %v758 = vunpack.c.l.b16 %v710
          %v759 = vunpack.c.l.b16 %v711
          %v760 = vunpack.c.l.b16 %v712
          %v761 = vunpack.c.l.b16 %v713
          %v762 = vunpack.c.l.b16 %v714
          %v763 = vunpack.c.l.b16 %v715
          %v764 = vunpack.c.l.b16 %v716
          %v765 = vunpack.c.l.b16 %v717
          %v766 = vunpack.c.l.b16 %v718
          %v767 = vunpack.c.l.b16 %v719
          %v768 = vunpack.c.l.b16 %v720
          %v769 = vunpack.c.l.b16 %v721
          %v770 = vunpack.c.l.b16 %v722
          %v771 = vpack.c.b16 %v756, %v755
          %v772 = vpack.c.b16 %v758, %v757
          %v773 = vpack.c.b16 %v760, %v759
          %v774 = vpack.c.b16 %v762, %v761
          %v775 = vpack.c.b16 %v764, %v763
          %v776 = vpack.c.b16 %v766, %v765
          %v777 = vpack.c.b16 %v768, %v767
          %v778 = vpack.c.b16 %v770, %v769
          %v803 = vunpack.c.l.b16 %v723
          %v804 = vunpack.c.h.b16 %v723
          %v805 = vunpack.c.l.b16 %v724
          %v806 = vunpack.c.h.b16 %v724
          %v807 = vunpack.c.l.b16 %v725
          %v808 = vunpack.c.h.b16 %v725
          %v809 = vunpack.c.l.b16 %v726
          %v810 = vunpack.c.h.b16 %v726
          %v811 = vunpack.c.l.b16 %v727
          %v812 = vunpack.c.h.b16 %v727
          %v813 = vunpack.c.l.b16 %v728
          %v814 = vunpack.c.h.b16 %v728
          %v815 = vunpack.c.l.b16 %v729
          %v816 = vunpack.c.h.b16 %v729
          %v817 = vunpack.c.l.b16 %v730
          %v818 = vunpack.c.h.b16 %v730
          %v819 = vunpack.c.l.b16 %v731
          %v820 = vunpack.c.h.b16 %v731
          %v821 = vunpack.c.l.b16 %v732
          %v822 = vunpack.c.h.b16 %v732
          %v823 = vunpack.c.l.b16 %v733
          %v824 = vunpack.c.h.b16 %v733
          %v825 = vunpack.c.l.b16 %v734
          %v826 = vunpack.c.h.b16 %v734
          %v827 = vunpack.c.l.b16 %v735
          %v828 = vunpack.c.h.b16 %v735
          %v829 = vunpack.c.l.b16 %v736
          %v830 = vunpack.c.h.b16 %v736
          %v831 = vunpack.c.l.b16 %v737
          %v832 = vunpack.c.h.b16 %v737
          %v833 = vunpack.c.l.b16 %v738
          %v834 = vunpack.c.h.b16 %v738
          %v835 = vpack.c.b16 %v805, %v803
          %v836 = vpack.c.b16 %v806, %v804
          %v837 = vpack.c.b16 %v809, %v807
          %v838 = vpack.c.b16 %v810, %v808
          %v839 = vpack.c.b16 %v813, %v811
          %v840 = vpack.c.b16 %v814, %v812
          %v841 = vpack.c.b16 %v817, %v815
          %v842 = vpack.c.b16 %v818, %v816
          %v843 = vpack.c.b16 %v821, %v819
          %v844 = vpack.c.b16 %v822, %v820
          %v845 = vpack.c.b16 %v825, %v823
          %v846 = vpack.c.b16 %v826, %v824
          %v847 = vpack.c.b16 %v829, %v827
          %v848 = vpack.c.b16 %v830, %v828
          %v849 = vpack.c.b16 %v833, %v831
          %v850 = vpack.c.b16 %v834, %v832
          %867 = vmatpush.bf16.msra.mxu0 %v849
          %868 = vmatpush.bf16.msra.mxu0 %v847
          %869 = vmatpush.bf16.msra.mxu0 %v845
          %870 = vmatpush.bf16.msra.mxu0 %v843
          %871 = vmatpush.bf16.msra.mxu0 %v841
          %872 = vmatpush.bf16.msra.mxu0 %v839
          %873 = vmatpush.bf16.msra.mxu0 %v837
          %874 = vmatpush.bf16.msra.mxu0 %v835
          %875 = vmatmul.bf16.gmra.mxu0 %v771
          %v876 = vpop.f32.mrf.mxu0
          %v877 = vadd.f32 0.0, %v876
          %v878 = vpop.f32.mrf.mxu0
          %v879 = vadd.f32 0.0, %v878
          %880 = vmatmul.bf16.gmra.mxu0 %v772
          %v881 = vpop.f32.mrf.mxu0
          %v882 = vadd.f32 0.0, %v881
          %v883 = vpop.f32.mrf.mxu0
          %v884 = vadd.f32 0.0, %v883
          %885 = vmatmul.bf16.gmra.mxu0 %v773
          %v886 = vpop.f32.mrf.mxu0
          %v887 = vadd.f32 0.0, %v886
          %v888 = vpop.f32.mrf.mxu0
          %v889 = vadd.f32 0.0, %v888
          %890 = vmatmul.bf16.gmra.mxu0 %v774
          %v891 = vpop.f32.mrf.mxu0
          %v892 = vadd.f32 0.0, %v891
          %v893 = vpop.f32.mrf.mxu0
          %v894 = vadd.f32 0.0, %v893
          %895 = vmatmul.bf16.gmra.mxu0 %v775
          %v896 = vpop.f32.mrf.mxu0
          %v897 = vadd.f32 0.0, %v896
          %v898 = vpop.f32.mrf.mxu0
          %v899 = vadd.f32 0.0, %v898
          %900 = vmatmul.bf16.gmra.mxu0 %v776
          %v901 = vpop.f32.mrf.mxu0
          %v902 = vadd.f32 0.0, %v901
          %v903 = vpop.f32.mrf.mxu0
          %v904 = vadd.f32 0.0, %v903
          %905 = vmatmul.bf16.gmra.mxu0 %v777
          %v906 = vpop.f32.mrf.mxu0
          %v907 = vadd.f32 0.0, %v906
          %v908 = vpop.f32.mrf.mxu0
          %v909 = vadd.f32 0.0, %v908
          %910 = vmatmul.bf16.gmra.mxu0 %v778
          %v911 = vpop.f32.mrf.mxu0
          %v912 = vadd.f32 0.0, %v911
          %v913 = vpop.f32.mrf.mxu0
          %v914 = vadd.f32 0.0, %v913
          %915 = vdwg.mxu0
          %916 = vmatpush.bf16.msra.mxu0 %v850
          %917 = vmatpush.bf16.msra.mxu0 %v848
          %918 = vmatpush.bf16.msra.mxu0 %v846
          %919 = vmatpush.bf16.msra.mxu0 %v844
          %920 = vmatpush.bf16.msra.mxu0 %v842
          %921 = vmatpush.bf16.msra.mxu0 %v840
          %922 = vmatpush.bf16.msra.mxu0 %v838
          %923 = vmatpush.bf16.msra.mxu0 %v836
          %924 = vmatmul.bf16.gmra.mxu0 %v771
          %v925 = vpop.f32.mrf.mxu0
          %v926 = vadd.f32 0.0, %v925
          %v927 = vpop.f32.mrf.mxu0
          %v928 = vadd.f32 0.0, %v927
          %929 = vmatmul.bf16.gmra.mxu0 %v772
          %v930 = vpop.f32.mrf.mxu0
          %v931 = vadd.f32 0.0, %v930
          %v932 = vpop.f32.mrf.mxu0
          %v933 = vadd.f32 0.0, %v932
          %934 = vmatmul.bf16.gmra.mxu0 %v773
          %v935 = vpop.f32.mrf.mxu0
          %v936 = vadd.f32 0.0, %v935
          %v937 = vpop.f32.mrf.mxu0
          %v938 = vadd.f32 0.0, %v937
          %939 = vmatmul.bf16.gmra.mxu0 %v774
          %v940 = vpop.f32.mrf.mxu0
          %v941 = vadd.f32 0.0, %v940
          %v942 = vpop.f32.mrf.mxu0
          %v943 = vadd.f32 0.0, %v942
          %944 = vmatmul.bf16.gmra.mxu0 %v775
          %v945 = vpop.f32.mrf.mxu0
          %v946 = vadd.f32 0.0, %v945
          %v947 = vpop.f32.mrf.mxu0
          %v948 = vadd.f32 0.0, %v947
          %949 = vmatmul.bf16.gmra.mxu0 %v776
          %v950 = vpop.f32.mrf.mxu0
          %v951 = vadd.f32 0.0, %v950
          %v952 = vpop.f32.mrf.mxu0
          %v953 = vadd.f32 0.0, %v952
          %954 = vmatmul.bf16.gmra.mxu0 %v777
          %v955 = vpop.f32.mrf.mxu0
          %v956 = vadd.f32 0.0, %v955
          %v957 = vpop.f32.mrf.mxu0
          %v958 = vadd.f32 0.0, %v957
          %959 = vmatmul.bf16.gmra.mxu0 %v778
          %v960 = vpop.f32.mrf.mxu0
          %v961 = vadd.f32 0.0, %v960
          %v962 = vpop.f32.mrf.mxu0
          %v963 = vadd.f32 0.0, %v962
          %964 = vdwg.mxu0
          %v965 = vpack.c.bf16 %v879, %v877
          %v966 = vpack.c.bf16 %v884, %v882
          %v967 = vpack.c.bf16 %v889, %v887
          %v968 = vpack.c.bf16 %v894, %v892
          %v969 = vpack.c.bf16 %v899, %v897
          %v970 = vpack.c.bf16 %v904, %v902
          %v971 = vpack.c.bf16 %v909, %v907
          %v972 = vpack.c.bf16 %v914, %v912
          %v973 = vpack.c.bf16 %v928, %v926
          %v974 = vpack.c.bf16 %v933, %v931
          %v975 = vpack.c.bf16 %v938, %v936
          %v976 = vpack.c.bf16 %v943, %v941
          %v977 = vpack.c.bf16 %v948, %v946
          %v978 = vpack.c.bf16 %v953, %v951
          %v979 = vpack.c.bf16 %v958, %v956
          %v980 = vpack.c.bf16 %v963, %v961
          %v981 = vld [vmem:[#allocation3] sm:$0xf]
          %v982 = vld [vmem:[#allocation3 + $0x4] sm:$0xf]
          %v983 = vld [vmem:[#allocation3 + $0x8] sm:$0xf]
          %v984 = vld [vmem:[#allocation3 + $0xc] sm:$0xf]
          %v985 = vld [vmem:[#allocation3 + $0x10] sm:$0xf]
          %v986 = vld [vmem:[#allocation3 + $0x14] sm:$0xf]
          %v987 = vld [vmem:[#allocation3 + $0x18] sm:$0xf]
          %v988 = vld [vmem:[#allocation3 + $0x1c] sm:$0xf]
          %v989 = vld [vmem:[#allocation3 + $0x20] sm:$0xf]
          %v990 = vld [vmem:[#allocation3 + $0x24] sm:$0xf]
          %v991 = vld [vmem:[#allocation3 + $0x28] sm:$0xf]
          %v992 = vld [vmem:[#allocation3 + $0x2c] sm:$0xf]
          %v993 = vld [vmem:[#allocation3 + $0x30] sm:$0xf]
          %v994 = vld [vmem:[#allocation3 + $0x34] sm:$0xf]
          %v995 = vld [vmem:[#allocation3 + $0x38] sm:$0xf]
          %v996 = vld [vmem:[#allocation3 + $0x3c] sm:$0xf]
          %v1013 = vunpack.c.l.b16 %v981
          %v1014 = vunpack.c.l.b16 %v982
          %v1015 = vunpack.c.l.b16 %v983
          %v1016 = vunpack.c.l.b16 %v984
          %v1017 = vunpack.c.l.b16 %v985
          %v1018 = vunpack.c.l.b16 %v986
          %v1019 = vunpack.c.l.b16 %v987
          %v1020 = vunpack.c.l.b16 %v988
          %v1021 = vunpack.c.l.b16 %v989
          %v1022 = vunpack.c.l.b16 %v990
          %v1023 = vunpack.c.l.b16 %v991
          %v1024 = vunpack.c.l.b16 %v992
          %v1025 = vunpack.c.l.b16 %v993
          %v1026 = vunpack.c.l.b16 %v994
          %v1027 = vunpack.c.l.b16 %v995
          %v1028 = vunpack.c.l.b16 %v996
          %v1029 = vpack.c.b16 %v1014, %v1013
          %v1030 = vpack.c.b16 %v1016, %v1015
          %v1031 = vpack.c.b16 %v1018, %v1017
          %v1032 = vpack.c.b16 %v1020, %v1019
          %v1033 = vpack.c.b16 %v1022, %v1021
          %v1034 = vpack.c.b16 %v1024, %v1023
          %v1035 = vpack.c.b16 %v1026, %v1025
          %v1036 = vpack.c.b16 %v1028, %v1027
          %1045 = vmatpush.bf16.xpose.msra.mxu0 %v1036
          %1046 = vmatpush.bf16.xpose.msra.mxu0 %v1035
          %1047 = vmatpush.bf16.xpose.msra.mxu0 %v1034
          %1048 = vmatpush.bf16.xpose.msra.mxu0 %v1033
          %1049 = vmatpush.bf16.xpose.msra.mxu0 %v1032
          %1050 = vmatpush.bf16.xpose.msra.mxu0 %v1031
          %1051 = vmatpush.bf16.xpose.msra.mxu0 %v1030
          %1052 = vmatpush.bf16.xpose.msra.mxu0 %v1029
          %1053 = vmatmul.bf16.gmra.mxu0 %v965
          %v1054 = vpop.f32.mrf.mxu0
          %v1055 = vadd.f32 0.0, %v1054
          %v1056 = vpop.f32.mrf.mxu0
          %v1057 = vadd.f32 0.0, %v1056
          %1058 = vmatmul.bf16.gmra.mxu0 %v966
          %v1059 = vpop.f32.mrf.mxu0
          %v1060 = vadd.f32 0.0, %v1059
          %v1061 = vpop.f32.mrf.mxu0
          %v1062 = vadd.f32 0.0, %v1061
          %1063 = vmatmul.bf16.gmra.mxu0 %v967
          %v1064 = vpop.f32.mrf.mxu0
          %v1065 = vadd.f32 0.0, %v1064
          %v1066 = vpop.f32.mrf.mxu0
          %v1067 = vadd.f32 0.0, %v1066
          %1068 = vmatmul.bf16.gmra.mxu0 %v968
          %v1069 = vpop.f32.mrf.mxu0
          %v1070 = vadd.f32 0.0, %v1069
          %v1071 = vpop.f32.mrf.mxu0
          %v1072 = vadd.f32 0.0, %v1071
          %1073 = vmatmul.bf16.gmra.mxu0 %v969
          %v1074 = vpop.f32.mrf.mxu0
          %v1075 = vadd.f32 0.0, %v1074
          %v1076 = vpop.f32.mrf.mxu0
          %v1077 = vadd.f32 0.0, %v1076
          %1078 = vmatmul.bf16.gmra.mxu0 %v970
          %v1079 = vpop.f32.mrf.mxu0
          %v1080 = vadd.f32 0.0, %v1079
          %v1081 = vpop.f32.mrf.mxu0
          %v1082 = vadd.f32 0.0, %v1081
          %1083 = vmatmul.bf16.gmra.mxu0 %v971
          %v1084 = vpop.f32.mrf.mxu0
          %v1085 = vadd.f32 0.0, %v1084
          %v1086 = vpop.f32.mrf.mxu0
          %v1087 = vadd.f32 0.0, %v1086
          %1088 = vmatmul.bf16.gmra.mxu0 %v972
          %v1089 = vpop.f32.mrf.mxu0
          %v1090 = vadd.f32 0.0, %v1089
          %v1091 = vpop.f32.mrf.mxu0
          %v1092 = vadd.f32 0.0, %v1091
          %1093 = vmatmul.bf16.gmra.mxu0 %v973
          %v1094 = vpop.f32.mrf.mxu0
          %v1095 = vadd.f32 0.0, %v1094
          %v1096 = vpop.f32.mrf.mxu0
          %v1097 = vadd.f32 0.0, %v1096
          %1098 = vmatmul.bf16.gmra.mxu0 %v974
          %v1099 = vpop.f32.mrf.mxu0
          %v1100 = vadd.f32 0.0, %v1099
          %v1101 = vpop.f32.mrf.mxu0
          %v1102 = vadd.f32 0.0, %v1101
          %1103 = vmatmul.bf16.gmra.mxu0 %v975
          %v1104 = vpop.f32.mrf.mxu0
          %v1105 = vadd.f32 0.0, %v1104
          %v1106 = vpop.f32.mrf.mxu0
          %v1107 = vadd.f32 0.0, %v1106
          %1108 = vmatmul.bf16.gmra.mxu0 %v976
          %v1109 = vpop.f32.mrf.mxu0
          %v1110 = vadd.f32 0.0, %v1109
          %v1111 = vpop.f32.mrf.mxu0
          %v1112 = vadd.f32 0.0, %v1111
          %1113 = vmatmul.bf16.gmra.mxu0 %v977
          %v1114 = vpop.f32.mrf.mxu0
          %v1115 = vadd.f32 0.0, %v1114
          %v1116 = vpop.f32.mrf.mxu0
          %v1117 = vadd.f32 0.0, %v1116
          %1118 = vmatmul.bf16.gmra.mxu0 %v978
          %v1119 = vpop.f32.mrf.mxu0
          %v1120 = vadd.f32 0.0, %v1119
          %v1121 = vpop.f32.mrf.mxu0
          %v1122 = vadd.f32 0.0, %v1121
          %1123 = vmatmul.bf16.gmra.mxu0 %v979
          %v1124 = vpop.f32.mrf.mxu0
          %v1125 = vadd.f32 0.0, %v1124
          %v1126 = vpop.f32.mrf.mxu0
          %v1127 = vadd.f32 0.0, %v1126
          %1128 = vmatmul.bf16.gmra.mxu0 %v980
          %v1129 = vpop.f32.mrf.mxu0
          %v1130 = vadd.f32 0.0, %v1129
          %v1131 = vpop.f32.mrf.mxu0
          %v1132 = vadd.f32 0.0, %v1131
          %1133 = vdwg.mxu0
          %s1134 = sld [smem:[#allocation11]]
          %v1135 = vstv %s1134
          %v1136 = vadd.f32 %v1055, %v1135
          %v1137 = vadd.f32 %v1057, %v1135
          %v1138 = vadd.f32 %v1060, %v1135
          %v1139 = vadd.f32 %v1062, %v1135
          %v1140 = vadd.f32 %v1065, %v1135
          %v1141 = vadd.f32 %v1067, %v1135
          %v1142 = vadd.f32 %v1070, %v1135
          %v1143 = vadd.f32 %v1072, %v1135
          %v1144 = vadd.f32 %v1075, %v1135
          %v1145 = vadd.f32 %v1077, %v1135
          %v1146 = vadd.f32 %v1080, %v1135
          %v1147 = vadd.f32 %v1082, %v1135
          %v1148 = vadd.f32 %v1085, %v1135
          %v1149 = vadd.f32 %v1087, %v1135
          %v1150 = vadd.f32 %v1090, %v1135
          %v1151 = vadd.f32 %v1092, %v1135
          %v1152 = vxor.u32 %v1136, 2147483648
          %v1153 = vxor.u32 %v1137, 2147483648
          %v1154 = vxor.u32 %v1138, 2147483648
          %v1155 = vxor.u32 %v1139, 2147483648
          %v1156 = vxor.u32 %v1140, 2147483648
          %v1157 = vxor.u32 %v1141, 2147483648
          %v1158 = vxor.u32 %v1142, 2147483648
          %v1159 = vxor.u32 %v1143, 2147483648
          %v1160 = vxor.u32 %v1144, 2147483648
          %v1161 = vxor.u32 %v1145, 2147483648
          %v1162 = vxor.u32 %v1146, 2147483648
          %v1163 = vxor.u32 %v1147, 2147483648
          %v1164 = vxor.u32 %v1148, 2147483648
          %v1165 = vxor.u32 %v1149, 2147483648
          %v1166 = vxor.u32 %v1150, 2147483648
          %v1167 = vxor.u32 %v1151, 2147483648
          %v1168 = vmul.f32 %v1152, 1.442695
          %v1169 = vpow.pop %v1168
          %v1170 = vmul.f32 %v1153, 1.442695
          %v1171 = vpow.pop %v1170
          %v1172 = vmul.f32 %v1154, 1.442695
          %v1173 = vpow.pop %v1172
          %v1174 = vmul.f32 %v1155, 1.442695
          %v1175 = vpow.pop %v1174
          %v1176 = vmul.f32 %v1156, 1.442695
          %v1177 = vpow.pop %v1176
          %v1178 = vmul.f32 %v1157, 1.442695
          %v1179 = vpow.pop %v1178
          %v1180 = vmul.f32 %v1158, 1.442695
          %v1181 = vpow.pop %v1180
          %v1182 = vmul.f32 %v1159, 1.442695
          %v1183 = vpow.pop %v1182
          %v1184 = vmul.f32 %v1160, 1.442695
          %v1185 = vpow.pop %v1184
          %v1186 = vmul.f32 %v1161, 1.442695
          %v1187 = vpow.pop %v1186
          %v1188 = vmul.f32 %v1162, 1.442695
          %v1189 = vpow.pop %v1188
          %v1190 = vmul.f32 %v1163, 1.442695
          %v1191 = vpow.pop %v1190
          %v1192 = vmul.f32 %v1164, 1.442695
          %v1193 = vpow.pop %v1192
          %v1194 = vmul.f32 %v1165, 1.442695
          %v1195 = vpow.pop %v1194
          %v1196 = vmul.f32 %v1166, 1.442695
          %v1197 = vpow.pop %v1196
          %v1198 = vmul.f32 %v1167, 1.442695
          %v1199 = vpow.pop %v1198
          %v1200 = vadd.f32 %v1169, 1.0
          %v1201 = vadd.f32 %v1171, 1.0
          %v1202 = vadd.f32 %v1173, 1.0
          %v1203 = vadd.f32 %v1175, 1.0
          %v1204 = vadd.f32 %v1177, 1.0
          %v1205 = vadd.f32 %v1179, 1.0
          %v1206 = vadd.f32 %v1181, 1.0
          %v1207 = vadd.f32 %v1183, 1.0
          %v1208 = vadd.f32 %v1185, 1.0
          %v1209 = vadd.f32 %v1187, 1.0
          %v1210 = vadd.f32 %v1189, 1.0
          %v1211 = vadd.f32 %v1191, 1.0
          %v1212 = vadd.f32 %v1193, 1.0
          %v1213 = vadd.f32 %v1195, 1.0
          %v1214 = vadd.f32 %v1197, 1.0
          %v1215 = vadd.f32 %v1199, 1.0
          %v1216 = vrcp.pop %v1200
          %v1217 = vmul.f32 %v1200, %v1216
          %v1218 = vsub.f32 1.0, %v1217
          %v1219 = vmul.f32 %v1216, %v1218
          %v1220 = vadd.f32 %v1216, %v1219
          %vm1221 = vweird.f32 %v1200
          %vm1222 = vweird.f32 %v1216
          %vm1223 = vmor %vm1221, %vm1222
          %v1224 = vsel %vm1223, %v1216, %v1220
          %v1225 = vand.u32 2147483647, %v1200
          %vm1226 = vcmp.eq.f32.partialorder %v1225, 8.507059e+37
          %v1227 = vand.u32 %v1200, 2147483648
          %v1228 = vor.u32 1.1754944e-38, %v1227
          %v1229 = vsel %vm1226, %v1228, %v1224
          %v1230 = vmul.f32 1.0, %v1229
          %v1231 = vrcp.pop %v1201
          %v1232 = vmul.f32 %v1201, %v1231
          %v1233 = vsub.f32 1.0, %v1232
          %v1234 = vmul.f32 %v1231, %v1233
          %v1235 = vadd.f32 %v1231, %v1234
          %vm1236 = vweird.f32 %v1201
          %vm1237 = vweird.f32 %v1231
          %vm1238 = vmor %vm1236, %vm1237
          %v1239 = vsel %vm1238, %v1231, %v1235
          %v1240 = vand.u32 2147483647, %v1201
          %vm1241 = vcmp.eq.f32.partialorder %v1240, 8.507059e+37
          %v1242 = vand.u32 %v1201, 2147483648
          %v1243 = vor.u32 1.1754944e-38, %v1242
          %v1244 = vsel %vm1241, %v1243, %v1239
          %v1245 = vmul.f32 1.0, %v1244
          %v1246 = vrcp.pop %v1202
          %v1247 = vmul.f32 %v1202, %v1246
          %v1248 = vsub.f32 1.0, %v1247
          %v1249 = vmul.f32 %v1246, %v1248
          %v1250 = vadd.f32 %v1246, %v1249
          %vm1251 = vweird.f32 %v1202
          %vm1252 = vweird.f32 %v1246
          %vm1253 = vmor %vm1251, %vm1252
          %v1254 = vsel %vm1253, %v1246, %v1250
          %v1255 = vand.u32 2147483647, %v1202
          %vm1256 = vcmp.eq.f32.partialorder %v1255, 8.507059e+37
          %v1257 = vand.u32 %v1202, 2147483648
          %v1258 = vor.u32 1.1754944e-38, %v1257
          %v1259 = vsel %vm1256, %v1258, %v1254
          %v1260 = vmul.f32 1.0, %v1259
          %v1261 = vrcp.pop %v1203
          %v1262 = vmul.f32 %v1203, %v1261
          %v1263 = vsub.f32 1.0, %v1262
          %v1264 = vmul.f32 %v1261, %v1263
          %v1265 = vadd.f32 %v1261, %v1264
          %vm1266 = vweird.f32 %v1203
          %vm1267 = vweird.f32 %v1261
          %vm1268 = vmor %vm1266, %vm1267
          %v1269 = vsel %vm1268, %v1261, %v1265
          %v1270 = vand.u32 2147483647, %v1203
          %vm1271 = vcmp.eq.f32.partialorder %v1270, 8.507059e+37
          %v1272 = vand.u32 %v1203, 2147483648
          %v1273 = vor.u32 1.1754944e-38, %v1272
          %v1274 = vsel %vm1271, %v1273, %v1269
          %v1275 = vmul.f32 1.0, %v1274
          %v1276 = vrcp.pop %v1204
          %v1277 = vmul.f32 %v1204, %v1276
          %v1278 = vsub.f32 1.0, %v1277
          %v1279 = vmul.f32 %v1276, %v1278
          %v1280 = vadd.f32 %v1276, %v1279
          %vm1281 = vweird.f32 %v1204
          %vm1282 = vweird.f32 %v1276
          %vm1283 = vmor %vm1281, %vm1282
          %v1284 = vsel %vm1283, %v1276, %v1280
          %v1285 = vand.u32 2147483647, %v1204
          %vm1286 = vcmp.eq.f32.partialorder %v1285, 8.507059e+37
          %v1287 = vand.u32 %v1204, 2147483648
          %v1288 = vor.u32 1.1754944e-38, %v1287
          %v1289 = vsel %vm1286, %v1288, %v1284
          %v1290 = vmul.f32 1.0, %v1289
          %v1291 = vrcp.pop %v1205
          %v1292 = vmul.f32 %v1205, %v1291
          %v1293 = vsub.f32 1.0, %v1292
          %v1294 = vmul.f32 %v1291, %v1293
          %v1295 = vadd.f32 %v1291, %v1294
          %vm1296 = vweird.f32 %v1205
          %vm1297 = vweird.f32 %v1291
          %vm1298 = vmor %vm1296, %vm1297
          %v1299 = vsel %vm1298, %v1291, %v1295
          %v1300 = vand.u32 2147483647, %v1205
          %vm1301 = vcmp.eq.f32.partialorder %v1300, 8.507059e+37
          %v1302 = vand.u32 %v1205, 2147483648
          %v1303 = vor.u32 1.1754944e-38, %v1302
          %v1304 = vsel %vm1301, %v1303, %v1299
          %v1305 = vmul.f32 1.0, %v1304
          %v1306 = vrcp.pop %v1206
          %v1307 = vmul.f32 %v1206, %v1306
          %v1308 = vsub.f32 1.0, %v1307
          %v1309 = vmul.f32 %v1306, %v1308
          %v1310 = vadd.f32 %v1306, %v1309
          %vm1311 = vweird.f32 %v1206
          %vm1312 = vweird.f32 %v1306
          %vm1313 = vmor %vm1311, %vm1312
          %v1314 = vsel %vm1313, %v1306, %v1310
          %v1315 = vand.u32 2147483647, %v1206
          %vm1316 = vcmp.eq.f32.partialorder %v1315, 8.507059e+37
          %v1317 = vand.u32 %v1206, 2147483648
          %v1318 = vor.u32 1.1754944e-38, %v1317
          %v1319 = vsel %vm1316, %v1318, %v1314
          %v1320 = vmul.f32 1.0, %v1319
          %v1321 = vrcp.pop %v1207
          %v1322 = vmul.f32 %v1207, %v1321
          %v1323 = vsub.f32 1.0, %v1322
          %v1324 = vmul.f32 %v1321, %v1323
          %v1325 = vadd.f32 %v1321, %v1324
          %vm1326 = vweird.f32 %v1207
          %vm1327 = vweird.f32 %v1321
          %vm1328 = vmor %vm1326, %vm1327
          %v1329 = vsel %vm1328, %v1321, %v1325
          %v1330 = vand.u32 2147483647, %v1207
          %vm1331 = vcmp.eq.f32.partialorder %v1330, 8.507059e+37
          %v1332 = vand.u32 %v1207, 2147483648
          %v1333 = vor.u32 1.1754944e-38, %v1332
          %v1334 = vsel %vm1331, %v1333, %v1329
          %v1335 = vmul.f32 1.0, %v1334
          %v1336 = vrcp.pop %v1208
          %v1337 = vmul.f32 %v1208, %v1336
          %v1338 = vsub.f32 1.0, %v1337
          %v1339 = vmul.f32 %v1336, %v1338
          %v1340 = vadd.f32 %v1336, %v1339
          %vm1341 = vweird.f32 %v1208
          %vm1342 = vweird.f32 %v1336
          %vm1343 = vmor %vm1341, %vm1342
          %v1344 = vsel %vm1343, %v1336, %v1340
          %v1345 = vand.u32 2147483647, %v1208
          %vm1346 = vcmp.eq.f32.partialorder %v1345, 8.507059e+37
          %v1347 = vand.u32 %v1208, 2147483648
          %v1348 = vor.u32 1.1754944e-38, %v1347
          %v1349 = vsel %vm1346, %v1348, %v1344
          %v1350 = vmul.f32 1.0, %v1349
          %v1351 = vrcp.pop %v1209
          %v1352 = vmul.f32 %v1209, %v1351
          %v1353 = vsub.f32 1.0, %v1352
          %v1354 = vmul.f32 %v1351, %v1353
          %v1355 = vadd.f32 %v1351, %v1354
          %vm1356 = vweird.f32 %v1209
          %vm1357 = vweird.f32 %v1351
          %vm1358 = vmor %vm1356, %vm1357
          %v1359 = vsel %vm1358, %v1351, %v1355
          %v1360 = vand.u32 2147483647, %v1209
          %vm1361 = vcmp.eq.f32.partialorder %v1360, 8.507059e+37
          %v1362 = vand.u32 %v1209, 2147483648
          %v1363 = vor.u32 1.1754944e-38, %v1362
          %v1364 = vsel %vm1361, %v1363, %v1359
          %v1365 = vmul.f32 1.0, %v1364
          %v1366 = vrcp.pop %v1210
          %v1367 = vmul.f32 %v1210, %v1366
          %v1368 = vsub.f32 1.0, %v1367
          %v1369 = vmul.f32 %v1366, %v1368
          %v1370 = vadd.f32 %v1366, %v1369
          %vm1371 = vweird.f32 %v1210
          %vm1372 = vweird.f32 %v1366
          %vm1373 = vmor %vm1371, %vm1372
          %v1374 = vsel %vm1373, %v1366, %v1370
          %v1375 = vand.u32 2147483647, %v1210
          %vm1376 = vcmp.eq.f32.partialorder %v1375, 8.507059e+37
          %v1377 = vand.u32 %v1210, 2147483648
          %v1378 = vor.u32 1.1754944e-38, %v1377
          %v1379 = vsel %vm1376, %v1378, %v1374
          %v1380 = vmul.f32 1.0, %v1379
          %v1381 = vrcp.pop %v1211
          %v1382 = vmul.f32 %v1211, %v1381
          %v1383 = vsub.f32 1.0, %v1382
          %v1384 = vmul.f32 %v1381, %v1383
          %v1385 = vadd.f32 %v1381, %v1384
          %vm1386 = vweird.f32 %v1211
          %vm1387 = vweird.f32 %v1381
          %vm1388 = vmor %vm1386, %vm1387
          %v1389 = vsel %vm1388, %v1381, %v1385
          %v1390 = vand.u32 2147483647, %v1211
          %vm1391 = vcmp.eq.f32.partialorder %v1390, 8.507059e+37
          %v1392 = vand.u32 %v1211, 2147483648
          %v1393 = vor.u32 1.1754944e-38, %v1392
          %v1394 = vsel %vm1391, %v1393, %v1389
          %v1395 = vmul.f32 1.0, %v1394
          %v1396 = vrcp.pop %v1212
          %v1397 = vmul.f32 %v1212, %v1396
          %v1398 = vsub.f32 1.0, %v1397
          %v1399 = vmul.f32 %v1396, %v1398
          %v1400 = vadd.f32 %v1396, %v1399
          %vm1401 = vweird.f32 %v1212
          %vm1402 = vweird.f32 %v1396
          %vm1403 = vmor %vm1401, %vm1402
          %v1404 = vsel %vm1403, %v1396, %v1400
          %v1405 = vand.u32 2147483647, %v1212
          %vm1406 = vcmp.eq.f32.partialorder %v1405, 8.507059e+37
          %v1407 = vand.u32 %v1212, 2147483648
          %v1408 = vor.u32 1.1754944e-38, %v1407
          %v1409 = vsel %vm1406, %v1408, %v1404
          %v1410 = vmul.f32 1.0, %v1409
          %v1411 = vrcp.pop %v1213
          %v1412 = vmul.f32 %v1213, %v1411
          %v1413 = vsub.f32 1.0, %v1412
          %v1414 = vmul.f32 %v1411, %v1413
          %v1415 = vadd.f32 %v1411, %v1414
          %vm1416 = vweird.f32 %v1213
          %vm1417 = vweird.f32 %v1411
          %vm1418 = vmor %vm1416, %vm1417
          %v1419 = vsel %vm1418, %v1411, %v1415
          %v1420 = vand.u32 2147483647, %v1213
          %vm1421 = vcmp.eq.f32.partialorder %v1420, 8.507059e+37
          %v1422 = vand.u32 %v1213, 2147483648
          %v1423 = vor.u32 1.1754944e-38, %v1422
          %v1424 = vsel %vm1421, %v1423, %v1419
          %v1425 = vmul.f32 1.0, %v1424
          %v1426 = vrcp.pop %v1214
          %v1427 = vmul.f32 %v1214, %v1426
          %v1428 = vsub.f32 1.0, %v1427
          %v1429 = vmul.f32 %v1426, %v1428
          %v1430 = vadd.f32 %v1426, %v1429
          %vm1431 = vweird.f32 %v1214
          %vm1432 = vweird.f32 %v1426
          %vm1433 = vmor %vm1431, %vm1432
          %v1434 = vsel %vm1433, %v1426, %v1430
          %v1435 = vand.u32 2147483647, %v1214
          %vm1436 = vcmp.eq.f32.partialorder %v1435, 8.507059e+37
          %v1437 = vand.u32 %v1214, 2147483648
          %v1438 = vor.u32 1.1754944e-38, %v1437
          %v1439 = vsel %vm1436, %v1438, %v1434
          %v1440 = vmul.f32 1.0, %v1439
          %v1441 = vrcp.pop %v1215
          %v1442 = vmul.f32 %v1215, %v1441
          %v1443 = vsub.f32 1.0, %v1442
          %v1444 = vmul.f32 %v1441, %v1443
          %v1445 = vadd.f32 %v1441, %v1444
          %vm1446 = vweird.f32 %v1215
          %vm1447 = vweird.f32 %v1441
          %vm1448 = vmor %vm1446, %vm1447
          %v1449 = vsel %vm1448, %v1441, %v1445
          %v1450 = vand.u32 2147483647, %v1215
          %vm1451 = vcmp.eq.f32.partialorder %v1450, 8.507059e+37
          %v1452 = vand.u32 %v1215, 2147483648
          %v1453 = vor.u32 1.1754944e-38, %v1452
          %v1454 = vsel %vm1451, %v1453, %v1449
          %v1455 = vmul.f32 1.0, %v1454
          %1456 = vst [vmem:[#allocation12] sm:$0xff] %v1230
          %1457 = vst [vmem:[#allocation12 + $0x8] sm:$0xff] %v1245
          %1458 = vst [vmem:[#allocation12 + $0x10] sm:$0xff] %v1260
          %1459 = vst [vmem:[#allocation12 + $0x18] sm:$0xff] %v1275
          %1460 = vst [vmem:[#allocation12 + $0x20] sm:$0xff] %v1290
          %1461 = vst [vmem:[#allocation12 + $0x28] sm:$0xff] %v1305
          %1462 = vst [vmem:[#allocation12 + $0x30] sm:$0xff] %v1320
          %1463 = vst [vmem:[#allocation12 + $0x38] sm:$0xff] %v1335
          %1464 = vst [vmem:[#allocation12 + $0x40] sm:$0xff] %v1350
          %1465 = vst [vmem:[#allocation12 + $0x48] sm:$0xff] %v1365
          %1466 = vst [vmem:[#allocation12 + $0x50] sm:$0xff] %v1380
          %1467 = vst [vmem:[#allocation12 + $0x58] sm:$0xff] %v1395
          %1468 = vst [vmem:[#allocation12 + $0x60] sm:$0xff] %v1410
          %1469 = vst [vmem:[#allocation12 + $0x68] sm:$0xff] %v1425
          %1470 = vst [vmem:[#allocation12 + $0x70] sm:$0xff] %v1440
          %1471 = vst [vmem:[#allocation12 + $0x78] sm:$0xff] %v1455
          %s1472 = sld [smem:[#allocation11 + $0x1]]
          %v1473 = vstv %s1472
          %v1474 = vadd.f32 %v1095, %v1473
          %v1475 = vadd.f32 %v1097, %v1473
          %v1476 = vadd.f32 %v1100, %v1473
          %v1477 = vadd.f32 %v1102, %v1473
          %v1478 = vadd.f32 %v1105, %v1473
          %v1479 = vadd.f32 %v1107, %v1473
          %v1480 = vadd.f32 %v1110, %v1473
          %v1481 = vadd.f32 %v1112, %v1473
          %v1482 = vadd.f32 %v1115, %v1473
          %v1483 = vadd.f32 %v1117, %v1473
          %v1484 = vadd.f32 %v1120, %v1473
          %v1485 = vadd.f32 %v1122, %v1473
          %v1486 = vadd.f32 %v1125, %v1473
          %v1487 = vadd.f32 %v1127, %v1473
          %v1488 = vadd.f32 %v1130, %v1473
          %v1489 = vadd.f32 %v1132, %v1473
          %v1490 = vmax.f32 %v1474, 0.0
          %v1491 = vmax.f32 %v1475, 0.0
          %v1492 = vmax.f32 %v1476, 0.0
          %v1493 = vmax.f32 %v1477, 0.0
          %v1494 = vmax.f32 %v1478, 0.0
          %v1495 = vmax.f32 %v1479, 0.0
          %v1496 = vmax.f32 %v1480, 0.0
          %v1497 = vmax.f32 %v1481, 0.0
          %v1498 = vmax.f32 %v1482, 0.0
          %v1499 = vmax.f32 %v1483, 0.0
          %v1500 = vmax.f32 %v1484, 0.0
          %v1501 = vmax.f32 %v1485, 0.0
          %v1502 = vmax.f32 %v1486, 0.0
          %v1503 = vmax.f32 %v1487, 0.0
          %v1504 = vmax.f32 %v1488, 0.0
          %v1505 = vmax.f32 %v1489, 0.0
          %1506 = vst [vmem:[#allocation13] sm:$0xff] %v1490
          %1507 = vst [vmem:[#allocation13 + $0x8] sm:$0xff] %v1491
          %1508 = vst [vmem:[#allocation13 + $0x10] sm:$0xff] %v1492
          %1509 = vst [vmem:[#allocation13 + $0x18] sm:$0xff] %v1493
          %1510 = vst [vmem:[#allocation13 + $0x20] sm:$0xff] %v1494
          %1511 = vst [vmem:[#allocation13 + $0x28] sm:$0xff] %v1495
          %1512 = vst [vmem:[#allocation13 + $0x30] sm:$0xff] %v1496
          %1513 = vst [vmem:[#allocation13 + $0x38] sm:$0xff] %v1497
          %1514 = vst [vmem:[#allocation13 + $0x40] sm:$0xff] %v1498
          %1515 = vst [vmem:[#allocation13 + $0x48] sm:$0xff] %v1499
          %1516 = vst [vmem:[#allocation13 + $0x50] sm:$0xff] %v1500
          %1517 = vst [vmem:[#allocation13 + $0x58] sm:$0xff] %v1501
          %1518 = vst [vmem:[#allocation13 + $0x60] sm:$0xff] %v1502
          %1519 = vst [vmem:[#allocation13 + $0x68] sm:$0xff] %v1503
          %1520 = vst [vmem:[#allocation13 + $0x70] sm:$0xff] %v1504
          %1521 = vst [vmem:[#allocation13 + $0x78] sm:$0xff] %v1505
        $region60: #{tpu_custom_call.1} parent=35 // pred_fallthru
          _
        // Predicated region
        $region61: #{tpu_custom_call.1} parent=35 // pred_check
          %p1522 = pneg %p152
        $region62: #{tpu_custom_call.1} parent=35 // pred_check_branch
          %1524 = sbr.rel (%p1522) target = $region64
        $region63: #{tpu_custom_call.1} parent=35 // pred_region
          %1526 = vsyncadd [#allocation6], 0
          %s1527 = smul.addr %s30, 16
          %s1528 = smul.addr %s1527, 8
          %s1529 = scalar_lea.hbm %s4, %s1528
          %s1530 = sshll.u32 [#allocation12], 4
          %s1531 = int_to_ptr.vmem [resolvable:$true] %s1530
          %s1532 = sshll.u32 %s1529, 4
          %s1533 = int_to_ptr.hbm [resolvable:$true] %s1532
          %1538 = dma.vmem_to_hbm [thread:$0]  %s1531, 2048, %s1533, [#allocation6], 128, 128, 8
        $region64: #{tpu_custom_call.1} parent=35 // pred_fallthru
          _
        // Predicated region
        $region65: #{tpu_custom_call.1} parent=35 // pred_check
          %p1539 = pneg %p178
        $region66: #{tpu_custom_call.1} parent=35 // pred_check_branch
          %1541 = sbr.rel (%p1539) target = $region68
        $region67: #{tpu_custom_call.1} parent=35 // pred_region
          %1543 = vsyncadd [#allocation14], 0
          %s1544 = smul.addr %s30, 16
          %s1545 = smul.addr %s1544, 8
          %s1546 = scalar_lea.hbm %s5, %s1545
          %s1547 = sshll.u32 [#allocation13], 4
          %s1548 = int_to_ptr.vmem [resolvable:$true] %s1547
          %s1549 = sshll.u32 %s1546, 4
          %s1550 = int_to_ptr.hbm [resolvable:$true] %s1549
          %1555 = dma.vmem_to_hbm [thread:$0]  %s1548, 2048, %s1550, [#allocation14], 128, 128, 8
        $region68: #{tpu_custom_call.1} parent=35 // pred_fallthru
          _
        // Predicated region
        $region69: #{tpu_custom_call.1} parent=35 // pred_check
          %p1556 = pneg %p152
        $region70: #{tpu_custom_call.1} parent=35 // pred_check_branch
          %1558 = sbr.rel (%p1556) target = $region72
        $region71: #{tpu_custom_call.1} parent=35 // pred_region
          %1560 = dma.done [#allocation6], 2048
        $region72: #{tpu_custom_call.1} parent=35 // pred_fallthru
          _
        // Predicated region
        $region73: #{tpu_custom_call.1} parent=35 // pred_check
          %p1561 = pneg %p178
        $region74: #{tpu_custom_call.1} parent=35 // pred_check_branch
          %1563 = sbr.rel (%p1561) target = $region76
        $region75: #{tpu_custom_call.1} parent=35 // pred_region
          %1565 = dma.done [#allocation14], 2048
        $region76: #{tpu_custom_call.1} parent=35 // pred_fallthru
          _
      $region36: #{tpu_custom_call.1} parent=5 // pred_fallthru
        _
      %p1566 = scmp.le.s32.totalorder 2, %s21
      // Predicated region
      $region77: #{tpu_custom_call.1} parent=5 // pred_check
        %p1567 = pneg %p1566
      $region78: #{tpu_custom_call.1} parent=5 // pred_check_branch
        %1569 = sbr.rel (%p1567) target = $region80
      $region79: #{tpu_custom_call.1} parent=5 // pred_region
        %s1570 = ssub.s32 %s21, 2
      $region80: #{tpu_custom_call.1} parent=5 // pred_fallthru
        _
    $region6: #{tpu_custom_call.1} parent=1 // loop_footer
      %s25 = sadd.s32 1, %s21
    $region7: #{tpu_custom_call.1} parent=1 // loop_footer_branch
      %20 = sbr.rel target = $region3
    $region8: #{tpu_custom_call.1} parent=1 // loop_exit
      _
    %1571 = vsyncpa [#allocation5], 1
    %s1572 = scalar_lea.sflag [#allocation5], 1
    %1573 = vsyncpa %s1572, 1
    %1574 = vsyncpa [#allocation9], 1
    %s1575 = scalar_lea.sflag [#allocation9], 1
    %1576 = vsyncpa %s1575, 1
    %1577 = vsyncpa [#allocation6], 1
    %s1578 = scalar_lea.sflag [#allocation6], 1
    %1579 = vsyncpa %s1578, 1
    %1580 = vsyncpa [#allocation14], 1
    %1581 = vsyncpa [#allocation7], 1
    %s1582 = scalar_lea.sflag [#allocation7], 1
    %1583 = vsyncpa %s1582, 1

// kernel: tpu_custom_call.1
$region0: #{tpu_custom_call.1}
  #allocation0 [shape = 'u32[]', space=smem, size = 0x4, offset = 0x4, fixed_abs, tag = 'smem constant byte address 0x4 - core index']
  #allocation1 [shape = 'u32[72,128]{1,0:T(1,128)}', space=vmem, size = 0x9000, scoped, tag = 'internal scratch']
  #allocation2 [shape = 'f32[128,128]{1,0:T(8,128)}', space=vmem, size = 0x10000, scoped, tag = 'scratch operand']
  #allocation3 [shape = 'bf16[128,128]{1,0:T(8,128)(2,1)}', space=vmem, size = 0x8000, scoped, tag = 'scratch operand']
  %s0 = inlined_call_operand.hbm [shape: bf16[2,128,128], index: 0, kind: input, shape index: {}]
  %s1 = inlined_call_operand.hbm [shape: bf16[2,4,128,128], index: 1, kind: input, shape index: {}]
  %s2 = inlined_call_operand.hbm [shape: bf16[128,256], index: 2, kind: input, shape index: {}]
  %s3 = inlined_call_operand.vmem [shape: f32[2], index: 3, kind: input, shape index: {}]
  %s4 = inlined_call_operand.hbm [shape: f32[2,128,128], index: 4, kind: output, shape index: {0}]
  %s5 = inlined_call_operand.hbm [shape: f32[2,128,128], index: 5, kind: output, shape index: {1}]
  %6 = xla_tuple %s4, %s5
  %s7 = sld [smem:[#allocation0]]
  $region81: #{tpu_custom_call.1} parent=0
    _
  %s9 = ssub.s32 1, %s7
  %s10 = scalar_select 0, %s9, %s7
  $region1: #{tpu_custom_call.1} parent=0
    #allocation4 [shape = 'u8[65536]{0}', space=vmem, size = 0x10000, scoped, tag = 'input window, operand 0']
    #allocation5 [shape = 's32[2]{0}', space=sflag, size = 0x8, scoped, tag = 'scoped memory for tpu_custom_call.1']
    #allocation6 [shape = 's32[2]{0}', space=sflag, size = 0x8, scoped, tag = 'scoped memory for tpu_custom_call.1']
    #allocation7 [shape = 's32[2]{0}', space=sflag, size = 0x8, scoped, tag = 'scoped memory for tpu_custom_call.1']
    #allocation8 [shape = 'u8[262144]{0}', space=vmem, size = 0x40000, scoped, tag = 'input window, operand 1']
    #allocation9 [shape = 's32[2]{0}', space=sflag, size = 0x8, scoped, tag = 'scoped memory for tpu_custom_call.1']
    #allocation10 [shape = 'u8[65536]{0}', space=vmem, size = 0x10000, scoped, tag = 'input window, operand 2, single buffered']
    #allocation11 [shape = 'u8[512]{0}', space=smem, size = 0x200, scoped, tag = 'input window, operand 3, single buffered']
    #allocation12 [shape = 'u8[131072]{0}', space=vmem, size = 0x20000, scoped, tag = 'output window, operand 0']
    #allocation13 [shape = 'u8[131072]{0}', space=vmem, size = 0x20000, scoped, tag = 'output window, operand 1']
    #allocation14 [shape = 's32[2]{0}', space=sflag, size = 0x8, scoped, tag = 'scoped memory for tpu_custom_call.1']
    %11 = vsyncpa [#allocation5], 0
    %s12 = scalar_lea.sflag [#allocation5], 1
    %13 = vsyncpa %s12, 0
    %14 = vsyncpa [#allocation9], 0
    %s15 = scalar_lea.sflag [#allocation9], 1
    %16 = vsyncpa %s15, 0
    %17 = vsyncpa [#allocation7], 0
    %18 = vsyncpa [#allocation6], 0
    %s19 = scalar_lea.sflag [#allocation6], 1
    %20 = vsyncpa %s19, 0
    %21 = vsyncpa [#allocation14], 0
    %s22 = scalar_lea.sflag [#allocation14], 1
    %23 = vsyncpa %s22, 0
    loop: start=0, step=1, limit=4
    $region2: #{tpu_custom_call.1} parent=1 // loop_pre_header
      _
    $region3: #{tpu_custom_call.1} parent=1 // loop_header
      %s25 = sphi 0, %s29
      %p26 = scmp.ge.s32.totalorder %s25, 4
      %s32 = sphi 0, %s44
      %s33 = sphi 0, %s40
      %s34 = sphi 0, %s32
      %s35 = sphi 0, %s33
      %s36 = sphi 0, %s34
      %s37 = sphi 0, %s35
      %s47 = sphi 0, %s49
      %s50 = sphi 0, %s47
      %s51 = sphi 0, %s50
      %s67 = sphi 0, %s51
      %s75 = sphi 0, %s77
      %s78 = sphi 0, %s75
      %s79 = sphi 0, %s78
      %s95 = sphi 0, %s79
      %s99 = sphi 0, %s99
      %s101 = sphi 0, %s99
      %s102 = sphi 0, %s101
      %s116 = sphi 0, %s102
      %s120 = sphi 0, %s120
      %s122 = sphi 0, %s120
      %s123 = sphi 0, %s122
      %s137 = sphi 0, %s123
      %s143 = sphi 0, %s145
      %s146 = sphi 0, %s143
      %s147 = sphi 0, %s146
      %s163 = sphi 0, %s147
      %s169 = sphi 0, %s171
      %s172 = sphi 0, %s169
      %s173 = sphi 0, %s172
      %s189 = sphi 0, %s173
    $region4: #{tpu_custom_call.1} parent=1 // loop_header_branch
      %28 = sbr.rel (%p26) target = $region8
    $region5: #{tpu_custom_call.1} parent=1 // loop_body
      %s30 = ssub.s32 %s25, 1
      %s31 = ssub.s32 %s25, 2
      %s38 = sadd.s32 1, %s33
      %p39 = scmp.ge.s32.totalorder %s38, 1
      %s40 = scalar_select %p39, 0, %s38
      %s41 = sadd.s32 1, %s32
      %s42 = scalar_select %p39, %s41, %s32
      %p43 = scmp.ge.s32.totalorder %s42, 2
      %s44 = scalar_select %p43, 0, %s42
      %s45 = ssub.s32 %s32, %s44
      %p46 = scmp.eq.s32.totalorder %s45, 0
      %s48 = sadd.s32 %s47, 1
      %s49 = scalar_select %p46, %s47, %s48
      %p52 = pneg %p46
      %p53 = scmp.eq.s32.totalorder %s25, 1
      %p54 = por %p52, %p53
      %p55 = scmp.ne.s32.totalorder %s47, %s50
      %p56 = scmp.eq.s32.totalorder %s25, 0
      %p57 = por %p55, %p56
      %p58 = scmp.ne.s32.totalorder %s47, %s50
      %p59 = scmp.eq.s32.totalorder %s30, 1
      %p60 = por %p58, %p59
      %p61 = scmp.ne.s32.totalorder %s50, %s51
      %p62 = scmp.eq.s32.totalorder %s30, 0
      %p63 = por %p61, %p62
      %p64 = scmp.ne.s32.totalorder %s50, %s51
      %p65 = scmp.eq.s32.totalorder %s31, 1
      %p66 = por %p64, %p65
      %p68 = scmp.ne.s32.totalorder %s51, %s67
      %p69 = scmp.eq.s32.totalorder %s31, 0
      %p70 = por %p68, %p69
      %s71 = ssub.s32 %s32, %s44
      %s72 = ssub.s32 %s33, %s40
      %s73 = sor.u32 %s71, %s72
      %p74 = scmp.eq.s32.totalorder %s73, 0
      %s76 = sadd.s32 %s75, 1
      %s77 = scalar_select %p74, %s75, %s76
      %p80 = pneg %p74
      %p81 = scmp.eq.s32.totalorder %s25, 1
      %p82 = por %p80, %p81
      %p83 = scmp.ne.s32.totalorder %s75, %s78
      %p84 = scmp.eq.s32.totalorder %s25, 0
      %p85 = por %p83, %p84
      %p86 = scmp.ne.s32.totalorder %s75, %s78
      %p87 = scmp.eq.s32.totalorder %s30, 1
      %p88 = por %p86, %p87
      %p89 = scmp.ne.s32.totalorder %s78, %s79
      %p90 = scmp.eq.s32.totalorder %s30, 0
      %p91 = por %p89, %p90
      %p92 = scmp.ne.s32.totalorder %s78, %s79
      %p93 = scmp.eq.s32.totalorder %s31, 1
      %p94 = por %p92, %p93
      %p96 = scmp.ne.s32.totalorder %s79, %s95
      %p97 = scmp.eq.s32.totalorder %s31, 0
      %p98 = por %p96, %p97
      %s100 = sadd.s32 %s99, 1
      %p103 = scmp.eq.s32.totalorder %s25, 1
      %p104 = scmp.ne.s32.totalorder %s99, %s101
      %p105 = scmp.eq.s32.totalorder %s25, 0
      %p106 = por %p104, %p105
      %p107 = scmp.ne.s32.totalorder %s99, %s101
      %p108 = scmp.eq.s32.totalorder %s30, 1
      %p109 = por %p107, %p108
      %p110 = scmp.ne.s32.totalorder %s101, %s102
      %p111 = scmp.eq.s32.totalorder %s30, 0
      %p112 = por %p110, %p111
      %p113 = scmp.ne.s32.totalorder %s101, %s102
      %p114 = scmp.eq.s32.totalorder %s31, 1
      %p115 = por %p113, %p114
      %p117 = scmp.ne.s32.totalorder %s102, %s116
      %p118 = scmp.eq.s32.totalorder %s31, 0
      %p119 = por %p117, %p118
      %s121 = sadd.s32 %s120, 1
      %p124 = scmp.eq.s32.totalorder %s25, 1
      %p125 = scmp.ne.s32.totalorder %s120, %s122
      %p126 = scmp.eq.s32.totalorder %s25, 0
      %p127 = por %p125, %p126
      %p128 = scmp.ne.s32.totalorder %s120, %s122
      %p129 = scmp.eq.s32.totalorder %s30, 1
      %p130 = por %p128, %p129
      %p131 = scmp.ne.s32.totalorder %s122, %s123
      %p132 = scmp.eq.s32.totalorder %s30, 0
      %p133 = por %p131, %p132
      %p134 = scmp.ne.s32.totalorder %s122, %s123
      %p135 = scmp.eq.s32.totalorder %s31, 1
      %p136 = por %p134, %p135
      %p138 = scmp.ne.s32.totalorder %s123, %s137
      %p139 = scmp.eq.s32.totalorder %s31, 0
      %p140 = por %p138, %p139
      %s141 = ssub.s32 %s32, %s44
      %p142 = scmp.eq.s32.totalorder %s141, 0
      %s144 = sadd.s32 %s143, 1
      %s145 = scalar_select %p142, %s143, %s144
      %p148 = pneg %p142
      %p149 = scmp.eq.s32.totalorder %s25, 1
      %p150 = por %p148, %p149
      %p151 = scmp.ne.s32.totalorder %s143, %s146
      %p152 = scmp.eq.s32.totalorder %s25, 0
      %p153 = por %p151, %p152
      %p154 = scmp.ne.s32.totalorder %s143, %s146
      %p155 = scmp.eq.s32.totalorder %s30, 1
      %p156 = por %p154, %p155
      %p157 = scmp.ne.s32.totalorder %s146, %s147
      %p158 = scmp.eq.s32.totalorder %s30, 0
      %p159 = por %p157, %p158
      %p160 = scmp.ne.s32.totalorder %s146, %s147
      %p161 = scmp.eq.s32.totalorder %s31, 1
      %p162 = por %p160, %p161
      %p164 = scmp.ne.s32.totalorder %s147, %s163
      %p165 = scmp.eq.s32.totalorder %s31, 0
      %p166 = por %p164, %p165
      %s167 = ssub.s32 %s32, %s44
      %p168 = scmp.eq.s32.totalorder %s167, 0
      %s170 = sadd.s32 %s169, 1
      %s171 = scalar_select %p168, %s169, %s170
      %p174 = pneg %p168
      %p175 = scmp.eq.s32.totalorder %s25, 1
      %p176 = por %p174, %p175
      %p177 = scmp.ne.s32.totalorder %s169, %s172
      %p178 = scmp.eq.s32.totalorder %s25, 0
      %p179 = por %p177, %p178
      %p180 = scmp.ne.s32.totalorder %s169, %s172
      %p181 = scmp.eq.s32.totalorder %s30, 1
      %p182 = por %p180, %p181
      %p183 = scmp.ne.s32.totalorder %s172, %s173
      %p184 = scmp.eq.s32.totalorder %s30, 0
      %p185 = por %p183, %p184
      %p186 = scmp.ne.s32.totalorder %s172, %s173
      %p187 = scmp.eq.s32.totalorder %s31, 1
      %p188 = por %p186, %p187
      %p190 = scmp.ne.s32.totalorder %s173, %s189
      %p191 = scmp.eq.s32.totalorder %s31, 0
      %p192 = por %p190, %p191
      %p193 = scmp.le.s32.totalorder 1, %s25
      %p194 = scmp.lt.s32.totalorder %s25, 3
      %p195 = pnand %p193, %p194
      %p196 = pneg %p195
      // Predicated region
      $region9: #{tpu_custom_call.1} parent=5 // pred_check
        _
      $region10: #{tpu_custom_call.1} parent=5 // pred_check_branch
        %198 = sbr.rel (%p195) target = $region12
      $region11: #{tpu_custom_call.1} parent=5 // pred_region
        %s199 = ssub.s32 %s25, 1
        // Predicated region
        $region13: #{tpu_custom_call.1} parent=11 // pred_check
          %p200 = pneg %p112
        $region14: #{tpu_custom_call.1} parent=11 // pred_check_branch
          %202 = sbr.rel (%p200) target = $region16
        $region15: #{tpu_custom_call.1} parent=11 // pred_region
          %204 = vsyncadd [#allocation9], 0
          %s205 = sshll.u32 %s2, 4
          %s206 = int_to_ptr.hbm [resolvable:$true] %s205
          %s207 = sshll.u32 [#allocation10], 4
          %s208 = int_to_ptr.vmem [resolvable:$true] %s207
          %213 = dma.hbm_to_vmem [thread:$0]  %s206, 2048, %s208, [#allocation9], 128, 128, 8
        $region16: #{tpu_custom_call.1} parent=11 // pred_fallthru
          _
        // Predicated region
        $region17: #{tpu_custom_call.1} parent=11 // pred_check
          %p214 = pneg %p133
        $region18: #{tpu_custom_call.1} parent=11 // pred_check_branch
          %216 = sbr.rel (%p214) target = $region20
        $region19: #{tpu_custom_call.1} parent=11 // pred_region
          %218 = vsyncadd [#allocation7], 0
          %s220 = sshll.u32 %s3, 4
          %s221 = int_to_ptr.vmem [resolvable:$true] %s220
          %223 = dma.vmem_to_smem %s221, 16, [#allocation11], [#allocation7]
        $region20: #{tpu_custom_call.1} parent=11 // pred_fallthru
          _
      $region12: #{tpu_custom_call.1} parent=5 // pred_fallthru
        _
      %p224 = scmp.lt.s32.totalorder %s25, 2
      // Predicated region
      $region21: #{tpu_custom_call.1} parent=5 // pred_check
        %p225 = pneg %p224
      $region22: #{tpu_custom_call.1} parent=5 // pred_check_branch
        %227 = sbr.rel (%p225) target = $region24
      $region23: #{tpu_custom_call.1} parent=5 // pred_region
        // Predicated region
        $region25: #{tpu_custom_call.1} parent=23 // pred_check
          %p228 = pneg %p57
        $region26: #{tpu_custom_call.1} parent=23 // pred_check_branch
          %230 = sbr.rel (%p228) target = $region28
        $region27: #{tpu_custom_call.1} parent=23 // pred_region
          %s231 = sand.u32 %s47, 1
          %s232 = scalar_lea.sflag [#allocation5], %s231
          %s233 = sand.u32 %s47, 1
          %s234 = smul.addr %s233, 64
          %s235 = scalar_lea.vmem [#allocation4], %s234
          %237 = vsyncadd %s232, 0
          %s238 = smul.addr %s32, 16
          %s239 = smul.addr %s238, 4
          %s240 = scalar_lea.hbm %s0, %s239
          %s241 = sshll.u32 %s240, 4
          %s242 = int_to_ptr.hbm [resolvable:$true] %s241
          %s243 = sshll.u32 %s235, 4
          %s244 = int_to_ptr.vmem [resolvable:$true] %s243
          %249 = dma.hbm_to_vmem [thread:$0]  %s242, 1024, %s244, %s232, 64, 64, 4
        $region28: #{tpu_custom_call.1} parent=23 // pred_fallthru
          _
        // Predicated region
        $region29: #{tpu_custom_call.1} parent=23 // pred_check
          %p250 = pneg %p85
        $region30: #{tpu_custom_call.1} parent=23 // pred_check_branch
          %252 = sbr.rel (%p250) target = $region32
        $region31: #{tpu_custom_call.1} parent=23 // pred_region
          %s253 = sand.u32 %s25, 1
          %s254 = scalar_lea.sflag [#allocation9], %s253
          %s255 = sand.u32 %s75, 1
          %s256 = smul.addr %s255, 256
          %s257 = scalar_lea.vmem [#allocation8], %s256
          %s258 = smul.u32 4, %s33
          %260 = vsyncadd %s254, 0
          %s261 = smul.addr %s258, 16
          %s262 = smul.addr %s32, 64
          %s263 = sadd.s32 %s261, %s262
          %s264 = smul.addr %s263, 4
          %s265 = scalar_lea.hbm %s1, %s264
          %s266 = sshll.u32 %s265, 4
          %s267 = int_to_ptr.hbm [resolvable:$true] %s266
          %s268 = sshll.u32 %s257, 4
          %s269 = int_to_ptr.vmem [resolvable:$true] %s268
          %274 = dma.hbm_to_vmem [thread:$0]  %s267, 4096, %s269, %s254, 64, 64, 4
        $region32: #{tpu_custom_call.1} parent=23 // pred_fallthru
          _
      $region24: #{tpu_custom_call.1} parent=5 // pred_fallthru
        _
      %p275 = scmp.le.s32.totalorder 1, %s25
      %p276 = scmp.lt.s32.totalorder %s25, 3
      %p277 = pnand %p275, %p276
      %p278 = pneg %p277
      // Predicated region
      $region33: #{tpu_custom_call.1} parent=5 // pred_check
        _
      $region34: #{tpu_custom_call.1} parent=5 // pred_check_branch
        %280 = sbr.rel (%p277) target = $region36
      $region35: #{tpu_custom_call.1} parent=5 // pred_region
        %s281 = ssub.s32 %s25, 1
        %s282 = sand.u32 %s50, 1
        %s283 = scalar_lea.sflag [#allocation5], %s282
        %s284 = sand.u32 %s50, 1
        %s285 = smul.addr %s284, 64
        %s286 = scalar_lea.vmem [#allocation4], %s285
        // Predicated region
        $region37: #{tpu_custom_call.1} parent=35 // pred_check
          %p287 = pneg %p63
        $region38: #{tpu_custom_call.1} parent=35 // pred_check_branch
          %289 = sbr.rel (%p287) target = $region40
        $region39: #{tpu_custom_call.1} parent=35 // pred_region
          %291 = dma.done %s283, 1024
        $region40: #{tpu_custom_call.1} parent=35 // pred_fallthru
          _
        %s292 = sand.u32 %s30, 1
        %s293 = scalar_lea.sflag [#allocation9], %s292
        %s294 = sand.u32 %s78, 1
        %s295 = smul.addr %s294, 256
        %s296 = scalar_lea.vmem [#allocation8], %s295
        // Predicated region
        $region41: #{tpu_custom_call.1} parent=35 // pred_check
          %p297 = pneg %p91
        $region42: #{tpu_custom_call.1} parent=35 // pred_check_branch
          %299 = sbr.rel (%p297) target = $region44
        $region43: #{tpu_custom_call.1} parent=35 // pred_region
          %301 = dma.done %s293, 4096
        $region44: #{tpu_custom_call.1} parent=35 // pred_fallthru
          _
        // Predicated region
        $region45: #{tpu_custom_call.1} parent=35 // pred_check
          %p302 = pneg %p112
        $region46: #{tpu_custom_call.1} parent=35 // pred_check_branch
          %304 = sbr.rel (%p302) target = $region48
        $region47: #{tpu_custom_call.1} parent=35 // pred_region
          %306 = dma.done [#allocation9], 2048
        $region48: #{tpu_custom_call.1} parent=35 // pred_fallthru
          _
        // Predicated region
        $region49: #{tpu_custom_call.1} parent=35 // pred_check
          %p307 = pneg %p133
        $region50: #{tpu_custom_call.1} parent=35 // pred_check_branch
          %309 = sbr.rel (%p307) target = $region52
        $region51: #{tpu_custom_call.1} parent=35 // pred_region
          %311 = dma.done [#allocation7], 16
        $region52: #{tpu_custom_call.1} parent=35 // pred_fallthru
          _
        %312 = sfence
        %s313 = sand.u32 %s50, 1
        %s314 = scalar_lea.sflag [#allocation5], %s313
        %s315 = sand.u32 %s50, 1
        %s316 = smul.addr %s315, 64
        %s317 = scalar_lea.vmem [#allocation4], %s316
        %p318 = pneg %p63
        %p319 = pneg %p60
        %s320 = sand.u32 %s30, 1
        %s321 = scalar_lea.sflag [#allocation9], %s320
        %s322 = sand.u32 %s78, 1
        %s323 = smul.addr %s322, 256
        %s324 = scalar_lea.vmem [#allocation8], %s323
        %p325 = pneg %p91
        %p326 = pneg %p88
        %p327 = pneg %p112
        %p328 = pneg %p109
        %p329 = pneg %p133
        %p330 = pneg %p130
        %p331 = pneg %p159
        %p332 = pneg %p156
        %s333 = sand.u32 %s146, 1
        %s334 = scalar_lea.sflag [#allocation6], %s333
        %s335 = sand.u32 %s146, 1
        %s336 = smul.addr %s335, 128
        %s337 = scalar_lea.vmem [#allocation12], %s336
        %p338 = pneg %p185
        %p339 = pneg %p182
        %s340 = sand.u32 %s172, 1
        %s341 = scalar_lea.sflag [#allocation14], %s340
        %s342 = sand.u32 %s172, 1
        %s343 = smul.addr %s342, 128
        %s344 = scalar_lea.vmem [#allocation13], %s343
        %s345 = smul.u32 4, %s35
        %p346 = scmp.eq.s32.totalorder %s35, 0
        // Predicated region
        $region53: #{tpu_custom_call.1} parent=35 // pred_check
          %p347 = pneg %p346
        $region54: #{tpu_custom_call.1} parent=35 // pred_check_branch
          %349 = sbr.rel (%p347) target = $region56
        $region55: #{tpu_custom_call.1} parent=35 // pred_region
          %350 = vst [vmem:[#allocation2] sm:$0xff] 0.0
          %351 = vst [vmem:[#allocation2 + $0x8] sm:$0xff] 0.0
          %352 = vst [vmem:[#allocation2 + $0x10] sm:$0xff] 0.0
          %353 = vst [vmem:[#allocation2 + $0x18] sm:$0xff] 0.0
          %354 = vst [vmem:[#allocation2 + $0x20] sm:$0xff] 0.0
          %355 = vst [vmem:[#allocation2 + $0x28] sm:$0xff] 0.0
          %356 = vst [vmem:[#allocation2 + $0x30] sm:$0xff] 0.0
          %357 = vst [vmem:[#allocation2 + $0x38] sm:$0xff] 0.0
          %358 = vst [vmem:[#allocation2 + $0x40] sm:$0xff] 0.0
          %359 = vst [vmem:[#allocation2 + $0x48] sm:$0xff] 0.0
          %360 = vst [vmem:[#allocation2 + $0x50] sm:$0xff] 0.0
          %361 = vst [vmem:[#allocation2 + $0x58] sm:$0xff] 0.0
          %362 = vst [vmem:[#allocation2 + $0x60] sm:$0xff] 0.0
          %363 = vst [vmem:[#allocation2 + $0x68] sm:$0xff] 0.0
          %364 = vst [vmem:[#allocation2 + $0x70] sm:$0xff] 0.0
          %365 = vst [vmem:[#allocation2 + $0x78] sm:$0xff] 0.0
        $region56: #{tpu_custom_call.1} parent=35 // pred_fallthru
          _
        %v366 = vld [vmem:[#allocation2] sm:$0xff]
        %v367 = vld [vmem:[#allocation2 + $0x8] sm:$0xff]
        %v368 = vld [vmem:[#allocation2 + $0x10] sm:$0xff]
        %v369 = vld [vmem:[#allocation2 + $0x18] sm:$0xff]
        %v370 = vld [vmem:[#allocation2 + $0x20] sm:$0xff]
        %v371 = vld [vmem:[#allocation2 + $0x28] sm:$0xff]
        %v372 = vld [vmem:[#allocation2 + $0x30] sm:$0xff]
        %v373 = vld [vmem:[#allocation2 + $0x38] sm:$0xff]
        %v374 = vld [vmem:[#allocation2 + $0x40] sm:$0xff]
        %v375 = vld [vmem:[#allocation2 + $0x48] sm:$0xff]
        %v376 = vld [vmem:[#allocation2 + $0x50] sm:$0xff]
        %v377 = vld [vmem:[#allocation2 + $0x58] sm:$0xff]
        %v378 = vld [vmem:[#allocation2 + $0x60] sm:$0xff]
        %v379 = vld [vmem:[#allocation2 + $0x68] sm:$0xff]
        %v380 = vld [vmem:[#allocation2 + $0x70] sm:$0xff]
        %v381 = vld [vmem:[#allocation2 + $0x78] sm:$0xff]
        %v382 = vld [vmem:[%s296] sm:$0xf]
        %v383 = vld [vmem:[%s296 + $0x4] sm:$0xf]
        %v384 = vld [vmem:[%s296 + $0x8] sm:$0xf]
        %v385 = vld [vmem:[%s296 + $0xc] sm:$0xf]
        %v386 = vld [vmem:[%s296 + $0x10] sm:$0xf]
        %v387 = vld [vmem:[%s296 + $0x14] sm:$0xf]
        %v388 = vld [vmem:[%s296 + $0x18] sm:$0xf]
        %v389 = vld [vmem:[%s296 + $0x1c] sm:$0xf]
        %v390 = vld [vmem:[%s296 + $0x20] sm:$0xf]
        %v391 = vld [vmem:[%s296 + $0x24] sm:$0xf]
        %v392 = vld [vmem:[%s296 + $0x28] sm:$0xf]
        %v393 = vld [vmem:[%s296 + $0x2c] sm:$0xf]
        %v394 = vld [vmem:[%s296 + $0x30] sm:$0xf]
        %v395 = vld [vmem:[%s296 + $0x34] sm:$0xf]
        %v396 = vld [vmem:[%s296 + $0x38] sm:$0xf]
        %v397 = vld [vmem:[%s296 + $0x3c] sm:$0xf]
        %v398 = vld [vmem:[%s296 + $0x40] sm:$0xf]
        %v399 = vld [vmem:[%s296 + $0x44] sm:$0xf]
        %v400 = vld [vmem:[%s296 + $0x48] sm:$0xf]
        %v401 = vld [vmem:[%s296 + $0x4c] sm:$0xf]
        %v402 = vld [vmem:[%s296 + $0x50] sm:$0xf]
        %v403 = vld [vmem:[%s296 + $0x54] sm:$0xf]
        %v404 = vld [vmem:[%s296 + $0x58] sm:$0xf]
        %v405 = vld [vmem:[%s296 + $0x5c] sm:$0xf]
        %v406 = vld [vmem:[%s296 + $0x60] sm:$0xf]
        %v407 = vld [vmem:[%s296 + $0x64] sm:$0xf]
        %v408 = vld [vmem:[%s296 + $0x68] sm:$0xf]
        %v409 = vld [vmem:[%s296 + $0x6c] sm:$0xf]
        %v410 = vld [vmem:[%s296 + $0x70] sm:$0xf]
        %v411 = vld [vmem:[%s296 + $0x74] sm:$0xf]
        %v412 = vld [vmem:[%s296 + $0x78] sm:$0xf]
        %v413 = vld [vmem:[%s296 + $0x7c] sm:$0xf]
        %v414 = vld [vmem:[%s296 + $0x80] sm:$0xf]
        %v415 = vld [vmem:[%s296 + $0x84] sm:$0xf]
        %v416 = vld [vmem:[%s296 + $0x88] sm:$0xf]
        %v417 = vld [vmem:[%s296 + $0x8c] sm:$0xf]
        %v418 = vld [vmem:[%s296 + $0x90] sm:$0xf]
        %v419 = vld [vmem:[%s296 + $0x94] sm:$0xf]
        %v420 = vld [vmem:[%s296 + $0x98] sm:$0xf]
        %v421 = vld [vmem:[%s296 + $0x9c] sm:$0xf]
        %v422 = vld [vmem:[%s296 + $0xa0] sm:$0xf]
        %v423 = vld [vmem:[%s296 + $0xa4] sm:$0xf]
        %v424 = vld [vmem:[%s296 + $0xa8] sm:$0xf]
        %v425 = vld [vmem:[%s296 + $0xac] sm:$0xf]
        %v426 = vld [vmem:[%s296 + $0xb0] sm:$0xf]
        %v427 = vld [vmem:[%s296 + $0xb4] sm:$0xf]
        %v428 = vld [vmem:[%s296 + $0xb8] sm:$0xf]
        %v429 = vld [vmem:[%s296 + $0xbc] sm:$0xf]
        %v430 = vld [vmem:[%s296 + $0xc0] sm:$0xf]
        %v431 = vld [vmem:[%s296 + $0xc4] sm:$0xf]
        %v432 = vld [vmem:[%s296 + $0xc8] sm:$0xf]
        %v433 = vld [vmem:[%s296 + $0xcc] sm:$0xf]
        %v434 = vld [vmem:[%s296 + $0xd0] sm:$0xf]
        %v435 = vld [vmem:[%s296 + $0xd4] sm:$0xf]
        %v436 = vld [vmem:[%s296 + $0xd8] sm:$0xf]
        %v437 = vld [vmem:[%s296 + $0xdc] sm:$0xf]
        %v438 = vld [vmem:[%s296 + $0xe0] sm:$0xf]
        %v439 = vld [vmem:[%s296 + $0xe4] sm:$0xf]
        %v440 = vld [vmem:[%s296 + $0xe8] sm:$0xf]
        %v441 = vld [vmem:[%s296 + $0xec] sm:$0xf]
        %v442 = vld [vmem:[%s296 + $0xf0] sm:$0xf]
        %v443 = vld [vmem:[%s296 + $0xf4] sm:$0xf]
        %v444 = vld [vmem:[%s296 + $0xf8] sm:$0xf]
        %v445 = vld [vmem:[%s296 + $0xfc] sm:$0xf]
        %v446 = vunpack.c.l.bf16 %v382
        %v447 = vunpack.c.l.bf16 %v383
        %v448 = vunpack.c.l.bf16 %v384
        %v449 = vunpack.c.l.bf16 %v385
        %v450 = vunpack.c.l.bf16 %v386
        %v451 = vunpack.c.l.bf16 %v387
        %v452 = vunpack.c.l.bf16 %v388
        %v453 = vunpack.c.l.bf16 %v389
        %v454 = vunpack.c.l.bf16 %v390
        %v455 = vunpack.c.l.bf16 %v391
        %v456 = vunpack.c.l.bf16 %v392
        %v457 = vunpack.c.l.bf16 %v393
        %v458 = vunpack.c.l.bf16 %v394
        %v459 = vunpack.c.l.bf16 %v395
        %v460 = vunpack.c.l.bf16 %v396
        %v461 = vunpack.c.l.bf16 %v397
        %v462 = vunpack.c.l.bf16 %v398
        %v463 = vunpack.c.l.bf16 %v399
        %v464 = vunpack.c.l.bf16 %v400
        %v465 = vunpack.c.l.bf16 %v401
        %v466 = vunpack.c.l.bf16 %v402
        %v467 = vunpack.c.l.bf16 %v403
        %v468 = vunpack.c.l.bf16 %v404
        %v469 = vunpack.c.l.bf16 %v405
        %v470 = vunpack.c.l.bf16 %v406
        %v471 = vunpack.c.l.bf16 %v407
        %v472 = vunpack.c.l.bf16 %v408
        %v473 = vunpack.c.l.bf16 %v409
        %v474 = vunpack.c.l.bf16 %v410
        %v475 = vunpack.c.l.bf16 %v411
        %v476 = vunpack.c.l.bf16 %v412
        %v477 = vunpack.c.l.bf16 %v413
        %v478 = vunpack.c.l.bf16 %v414
        %v479 = vunpack.c.l.bf16 %v415
        %v480 = vunpack.c.l.bf16 %v416
        %v481 = vunpack.c.l.bf16 %v417
        %v482 = vunpack.c.l.bf16 %v418
        %v483 = vunpack.c.l.bf16 %v419
        %v484 = vunpack.c.l.bf16 %v420
        %v485 = vunpack.c.l.bf16 %v421
        %v486 = vunpack.c.l.bf16 %v422
        %v487 = vunpack.c.l.bf16 %v423
        %v488 = vunpack.c.l.bf16 %v424
        %v489 = vunpack.c.l.bf16 %v425
        %v490 = vunpack.c.l.bf16 %v426
        %v491 = vunpack.c.l.bf16 %v427
        %v492 = vunpack.c.l.bf16 %v428
        %v493 = vunpack.c.l.bf16 %v429
        %v494 = vunpack.c.l.bf16 %v430
        %v495 = vunpack.c.l.bf16 %v431
        %v496 = vunpack.c.l.bf16 %v432
        %v497 = vunpack.c.l.bf16 %v433
        %v498 = vunpack.c.l.bf16 %v434
        %v499 = vunpack.c.l.bf16 %v435
        %v500 = vunpack.c.l.bf16 %v436
        %v501 = vunpack.c.l.bf16 %v437
        %v502 = vunpack.c.l.bf16 %v438
        %v503 = vunpack.c.l.bf16 %v439
        %v504 = vunpack.c.l.bf16 %v440
        %v505 = vunpack.c.l.bf16 %v441
        %v506 = vunpack.c.l.bf16 %v442
        %v507 = vunpack.c.l.bf16 %v443
        %v508 = vunpack.c.l.bf16 %v444
        %v509 = vunpack.c.l.bf16 %v445
        %v510 = vadd.f32 %v446, %v462
        %v511 = vadd.f32 %v510, %v478
        %v512 = vadd.f32 %v511, %v494
        %v513 = vadd.f32 %v447, %v463
        %v514 = vadd.f32 %v513, %v479
        %v515 = vadd.f32 %v514, %v495
        %v516 = vadd.f32 %v448, %v464
        %v517 = vadd.f32 %v516, %v480
        %v518 = vadd.f32 %v517, %v496
        %v519 = vadd.f32 %v449, %v465
        %v520 = vadd.f32 %v519, %v481
        %v521 = vadd.f32 %v520, %v497
        %v522 = vadd.f32 %v450, %v466
        %v523 = vadd.f32 %v522, %v482
        %v524 = vadd.f32 %v523, %v498
        %v525 = vadd.f32 %v451, %v467
        %v526 = vadd.f32 %v525, %v483
        %v527 = vadd.f32 %v526, %v499
        %v528 = vadd.f32 %v452, %v468
        %v529 = vadd.f32 %v528, %v484
        %v530 = vadd.f32 %v529, %v500
        %v531 = vadd.f32 %v453, %v469
        %v532 = vadd.f32 %v531, %v485
        %v533 = vadd.f32 %v532, %v501
        %v534 = vadd.f32 %v454, %v470
        %v535 = vadd.f32 %v534, %v486
        %v536 = vadd.f32 %v535, %v502
        %v537 = vadd.f32 %v455, %v471
        %v538 = vadd.f32 %v537, %v487
        %v539 = vadd.f32 %v538, %v503
        %v540 = vadd.f32 %v456, %v472
        %v541 = vadd.f32 %v540, %v488
        %v542 = vadd.f32 %v541, %v504
        %v543 = vadd.f32 %v457, %v473
        %v544 = vadd.f32 %v543, %v489
        %v545 = vadd.f32 %v544, %v505
        %v546 = vadd.f32 %v458, %v474
        %v547 = vadd.f32 %v546, %v490
        %v548 = vadd.f32 %v547, %v506
        %v549 = vadd.f32 %v459, %v475
        %v550 = vadd.f32 %v549, %v491
        %v551 = vadd.f32 %v550, %v507
        %v552 = vadd.f32 %v460, %v476
        %v553 = vadd.f32 %v552, %v492
        %v554 = vadd.f32 %v553, %v508
        %v555 = vadd.f32 %v461, %v477
        %v556 = vadd.f32 %v555, %v493
        %v557 = vadd.f32 %v556, %v509
        %v558 = vadd.f32 %v366, %v512
        %v559 = vadd.f32 %v367, %v515
        %v560 = vadd.f32 %v368, %v518
        %v561 = vadd.f32 %v369, %v521
        %v562 = vadd.f32 %v370, %v524
        %v563 = vadd.f32 %v371, %v527
        %v564 = vadd.f32 %v372, %v530
        %v565 = vadd.f32 %v373, %v533
        %v566 = vadd.f32 %v374, %v536
        %v567 = vadd.f32 %v375, %v539
        %v568 = vadd.f32 %v376, %v542
        %v569 = vadd.f32 %v377, %v545
        %v570 = vadd.f32 %v378, %v548
        %v571 = vadd.f32 %v379, %v551
        %v572 = vadd.f32 %v380, %v554
        %v573 = vadd.f32 %v381, %v557
        %574 = vst [vmem:[#allocation2] sm:$0xff] %v558
        %575 = vst [vmem:[#allocation2 + $0x8] sm:$0xff] %v559
        %576 = vst [vmem:[#allocation2 + $0x10] sm:$0xff] %v560
        %577 = vst [vmem:[#allocation2 + $0x18] sm:$0xff] %v561
        %578 = vst [vmem:[#allocation2 + $0x20] sm:$0xff] %v562
        %579 = vst [vmem:[#allocation2 + $0x28] sm:$0xff] %v563
        %580 = vst [vmem:[#allocation2 + $0x30] sm:$0xff] %v564
        %581 = vst [vmem:[#allocation2 + $0x38] sm:$0xff] %v565
        %582 = vst [vmem:[#allocation2 + $0x40] sm:$0xff] %v566
        %583 = vst [vmem:[#allocation2 + $0x48] sm:$0xff] %v567
        %584 = vst [vmem:[#allocation2 + $0x50] sm:$0xff] %v568
        %585 = vst [vmem:[#allocation2 + $0x58] sm:$0xff] %v569
        %586 = vst [vmem:[#allocation2 + $0x60] sm:$0xff] %v570
        %587 = vst [vmem:[#allocation2 + $0x68] sm:$0xff] %v571
        %588 = vst [vmem:[#allocation2 + $0x70] sm:$0xff] %v572
        %589 = vst [vmem:[#allocation2 + $0x78] sm:$0xff] %v573
        // Predicated region
        $region57: #{tpu_custom_call.1} parent=35 // pred_check
          %p590 = pneg %p346
        $region58: #{tpu_custom_call.1} parent=35 // pred_check_branch
          %592 = sbr.rel (%p590) target = $region60
        $region59: #{tpu_custom_call.1} parent=35 // pred_region
          %v593 = vld [vmem:[%s286] sm:$0xf]
          %v594 = vld [vmem:[%s286 + $0x4] sm:$0xf]
          %v595 = vld [vmem:[%s286 + $0x8] sm:$0xf]
          %v596 = vld [vmem:[%s286 + $0xc] sm:$0xf]
          %v597 = vld [vmem:[%s286 + $0x10] sm:$0xf]
          %v598 = vld [vmem:[%s286 + $0x14] sm:$0xf]
          %v599 = vld [vmem:[%s286 + $0x18] sm:$0xf]
          %v600 = vld [vmem:[%s286 + $0x1c] sm:$0xf]
          %v601 = vld [vmem:[%s286 + $0x20] sm:$0xf]
          %v602 = vld [vmem:[%s286 + $0x24] sm:$0xf]
          %v603 = vld [vmem:[%s286 + $0x28] sm:$0xf]
          %v604 = vld [vmem:[%s286 + $0x2c] sm:$0xf]
          %v605 = vld [vmem:[%s286 + $0x30] sm:$0xf]
          %v606 = vld [vmem:[%s286 + $0x34] sm:$0xf]
          %v607 = vld [vmem:[%s286 + $0x38] sm:$0xf]
          %v608 = vld [vmem:[%s286 + $0x3c] sm:$0xf]
          %v609 = vunpack.c.l.bf16 %v593
          %v610 = vunpack.c.l.bf16 %v594
          %v611 = vunpack.c.l.bf16 %v595
          %v612 = vunpack.c.l.bf16 %v596
          %v613 = vunpack.c.l.bf16 %v597
          %v614 = vunpack.c.l.bf16 %v598
          %v615 = vunpack.c.l.bf16 %v599
          %v616 = vunpack.c.l.bf16 %v600
          %v617 = vunpack.c.l.bf16 %v601
          %v618 = vunpack.c.l.bf16 %v602
          %v619 = vunpack.c.l.bf16 %v603
          %v620 = vunpack.c.l.bf16 %v604
          %v621 = vunpack.c.l.bf16 %v605
          %v622 = vunpack.c.l.bf16 %v606
          %v623 = vunpack.c.l.bf16 %v607
          %v624 = vunpack.c.l.bf16 %v608
          %v625 = vmul.f32 %v609, 0.5
          %v626 = vmul.f32 %v610, 0.5
          %v627 = vmul.f32 %v611, 0.5
          %v628 = vmul.f32 %v612, 0.5
          %v629 = vmul.f32 %v613, 0.5
          %v630 = vmul.f32 %v614, 0.5
          %v631 = vmul.f32 %v615, 0.5
          %v632 = vmul.f32 %v616, 0.5
          %v633 = vmul.f32 %v617, 0.5
          %v634 = vmul.f32 %v618, 0.5
          %v635 = vmul.f32 %v619, 0.5
          %v636 = vmul.f32 %v620, 0.5
          %v637 = vmul.f32 %v621, 0.5
          %v638 = vmul.f32 %v622, 0.5
          %v639 = vmul.f32 %v623, 0.5
          %v640 = vmul.f32 %v624, 0.5
          %v641 = vld [vmem:[#allocation2] sm:$0xff]
          %v642 = vld [vmem:[#allocation2 + $0x8] sm:$0xff]
          %v643 = vld [vmem:[#allocation2 + $0x10] sm:$0xff]
          %v644 = vld [vmem:[#allocation2 + $0x18] sm:$0xff]
          %v645 = vld [vmem:[#allocation2 + $0x20] sm:$0xff]
          %v646 = vld [vmem:[#allocation2 + $0x28] sm:$0xff]
          %v647 = vld [vmem:[#allocation2 + $0x30] sm:$0xff]
          %v648 = vld [vmem:[#allocation2 + $0x38] sm:$0xff]
          %v649 = vld [vmem:[#allocation2 + $0x40] sm:$0xff]
          %v650 = vld [vmem:[#allocation2 + $0x48] sm:$0xff]
          %v651 = vld [vmem:[#allocation2 + $0x50] sm:$0xff]
          %v652 = vld [vmem:[#allocation2 + $0x58] sm:$0xff]
          %v653 = vld [vmem:[#allocation2 + $0x60] sm:$0xff]
          %v654 = vld [vmem:[#allocation2 + $0x68] sm:$0xff]
          %v655 = vld [vmem:[#allocation2 + $0x70] sm:$0xff]
          %v656 = vld [vmem:[#allocation2 + $0x78] sm:$0xff]
          %v657 = vmul.f32 %v641, 0.125
          %v658 = vmul.f32 %v642, 0.125
          %v659 = vmul.f32 %v643, 0.125
          %v660 = vmul.f32 %v644, 0.125
          %v661 = vmul.f32 %v645, 0.125
          %v662 = vmul.f32 %v646, 0.125
          %v663 = vmul.f32 %v647, 0.125
          %v664 = vmul.f32 %v648, 0.125
          %v665 = vmul.f32 %v649, 0.125
          %v666 = vmul.f32 %v650, 0.125
          %v667 = vmul.f32 %v651, 0.125
          %v668 = vmul.f32 %v652, 0.125
          %v669 = vmul.f32 %v653, 0.125
          %v670 = vmul.f32 %v654, 0.125
          %v671 = vmul.f32 %v655, 0.125
          %v672 = vmul.f32 %v656, 0.125
          %v673 = vadd.f32 %v625, %v657
          %v674 = vadd.f32 %v626, %v658
          %v675 = vadd.f32 %v627, %v659
          %v676 = vadd.f32 %v628, %v660
          %v677 = vadd.f32 %v629, %v661
          %v678 = vadd.f32 %v630, %v662
          %v679 = vadd.f32 %v631, %v663
          %v680 = vadd.f32 %v632, %v664
          %v681 = vadd.f32 %v633, %v665
          %v682 = vadd.f32 %v634, %v666
          %v683 = vadd.f32 %v635, %v667
          %v684 = vadd.f32 %v636, %v668
          %v685 = vadd.f32 %v637, %v669
          %v686 = vadd.f32 %v638, %v670
          %v687 = vadd.f32 %v639, %v671
          %v688 = vadd.f32 %v640, %v672
          %v689 = vpack.c.bf16 %v673, %v673
          %v690 = vpack.c.bf16 %v674, %v674
          %v691 = vpack.c.bf16 %v675, %v675
          %v692 = vpack.c.bf16 %v676, %v676
          %v693 = vpack.c.bf16 %v677, %v677
          %v694 = vpack.c.bf16 %v678, %v678
          %v695 = vpack.c.bf16 %v679, %v679
          %v696 = vpack.c.bf16 %v680, %v680
          %v697 = vpack.c.bf16 %v681, %v681
          %v698 = vpack.c.bf16 %v682, %v682
          %v699 = vpack.c.bf16 %v683, %v683
          %v700 = vpack.c.bf16 %v684, %v684
          %v701 = vpack.c.bf16 %v685, %v685
          %v702 = vpack.c.bf16 %v686, %v686
          %v703 = vpack.c.bf16 %v687, %v687
          %v704 = vpack.c.bf16 %v688, %v688
          %705 = vst [vmem:[#allocation3] sm:$0xf] %v689
          %706 = vst [vmem:[#allocation3 + $0x4] sm:$0xf] %v690
          %707 = vst [vmem:[#allocation3 + $0x8] sm:$0xf] %v691
          %708 = vst [vmem:[#allocation3 + $0xc] sm:$0xf] %v692
          %709 = vst [vmem:[#allocation3 + $0x10] sm:$0xf] %v693
          %710 = vst [vmem:[#allocation3 + $0x14] sm:$0xf] %v694
          %711 = vst [vmem:[#allocation3 + $0x18] sm:$0xf] %v695
          %712 = vst [vmem:[#allocation3 + $0x1c] sm:$0xf] %v696
          %713 = vst [vmem:[#allocation3 + $0x20] sm:$0xf] %v697
          %714 = vst [vmem:[#allocation3 + $0x24] sm:$0xf] %v698
          %715 = vst [vmem:[#allocation3 + $0x28] sm:$0xf] %v699
          %716 = vst [vmem:[#allocation3 + $0x2c] sm:$0xf] %v700
          %717 = vst [vmem:[#allocation3 + $0x30] sm:$0xf] %v701
          %718 = vst [vmem:[#allocation3 + $0x34] sm:$0xf] %v702
          %719 = vst [vmem:[#allocation3 + $0x38] sm:$0xf] %v703
          %720 = vst [vmem:[#allocation3 + $0x3c] sm:$0xf] %v704
          %v721 = vld [vmem:[#allocation3] sm:$0xf]
          %v722 = vld [vmem:[#allocation3 + $0x4] sm:$0xf]
          %v723 = vld [vmem:[#allocation3 + $0x8] sm:$0xf]
          %v724 = vld [vmem:[#allocation3 + $0xc] sm:$0xf]
          %v725 = vld [vmem:[#allocation3 + $0x10] sm:$0xf]
          %v726 = vld [vmem:[#allocation3 + $0x14] sm:$0xf]
          %v727 = vld [vmem:[#allocation3 + $0x18] sm:$0xf]
          %v728 = vld [vmem:[#allocation3 + $0x1c] sm:$0xf]
          %v729 = vld [vmem:[#allocation3 + $0x20] sm:$0xf]
          %v730 = vld [vmem:[#allocation3 + $0x24] sm:$0xf]
          %v731 = vld [vmem:[#allocation3 + $0x28] sm:$0xf]
          %v732 = vld [vmem:[#allocation3 + $0x2c] sm:$0xf]
          %v733 = vld [vmem:[#allocation3 + $0x30] sm:$0xf]
          %v734 = vld [vmem:[#allocation3 + $0x34] sm:$0xf]
          %v735 = vld [vmem:[#allocation3 + $0x38] sm:$0xf]
          %v736 = vld [vmem:[#allocation3 + $0x3c] sm:$0xf]
          %v737 = vld [vmem:[#allocation10] sm:$0xff]
          %v738 = vld [vmem:[#allocation10 + $0x8] sm:$0xff]
          %v739 = vld [vmem:[#allocation10 + $0x10] sm:$0xff]
          %v740 = vld [vmem:[#allocation10 + $0x18] sm:$0xff]
          %v741 = vld [vmem:[#allocation10 + $0x20] sm:$0xff]
          %v742 = vld [vmem:[#allocation10 + $0x28] sm:$0xff]
          %v743 = vld [vmem:[#allocation10 + $0x30] sm:$0xff]
          %v744 = vld [vmem:[#allocation10 + $0x38] sm:$0xff]
          %v745 = vld [vmem:[#allocation10 + $0x40] sm:$0xff]
          %v746 = vld [vmem:[#allocation10 + $0x48] sm:$0xff]
          %v747 = vld [vmem:[#allocation10 + $0x50] sm:$0xff]
          %v748 = vld [vmem:[#allocation10 + $0x58] sm:$0xff]
          %v749 = vld [vmem:[#allocation10 + $0x60] sm:$0xff]
          %v750 = vld [vmem:[#allocation10 + $0x68] sm:$0xff]
          %v751 = vld [vmem:[#allocation10 + $0x70] sm:$0xff]
          %v752 = vld [vmem:[#allocation10 + $0x78] sm:$0xff]
          %v769 = vunpack.c.l.b16 %v721
          %v770 = vunpack.c.l.b16 %v722
          %v771 = vunpack.c.l.b16 %v723
          %v772 = vunpack.c.l.b16 %v724
          %v773 = vunpack.c.l.b16 %v725
          %v774 = vunpack.c.l.b16 %v726
          %v775 = vunpack.c.l.b16 %v727
          %v776 = vunpack.c.l.b16 %v728
          %v777 = vunpack.c.l.b16 %v729
          %v778 = vunpack.c.l.b16 %v730
          %v779 = vunpack.c.l.b16 %v731
          %v780 = vunpack.c.l.b16 %v732
          %v781 = vunpack.c.l.b16 %v733
          %v782 = vunpack.c.l.b16 %v734
          %v783 = vunpack.c.l.b16 %v735
          %v784 = vunpack.c.l.b16 %v736
          %v785 = vpack.c.b16 %v770, %v769
          %v786 = vpack.c.b16 %v772, %v771
          %v787 = vpack.c.b16 %v774, %v773
          %v788 = vpack.c.b16 %v776, %v775
          %v789 = vpack.c.b16 %v778, %v777
          %v790 = vpack.c.b16 %v780, %v779
          %v791 = vpack.c.b16 %v782, %v781
          %v792 = vpack.c.b16 %v784, %v783
          %v817 = vunpack.c.l.b16 %v737
          %v818 = vunpack.c.h.b16 %v737
          %v819 = vunpack.c.l.b16 %v738
          %v820 = vunpack.c.h.b16 %v738
          %v821 = vunpack.c.l.b16 %v739
          %v822 = vunpack.c.h.b16 %v739
          %v823 = vunpack.c.l.b16 %v740
          %v824 = vunpack.c.h.b16 %v740
          %v825 = vunpack.c.l.b16 %v741
          %v826 = vunpack.c.h.b16 %v741
          %v827 = vunpack.c.l.b16 %v742
          %v828 = vunpack.c.h.b16 %v742
          %v829 = vunpack.c.l.b16 %v743
          %v830 = vunpack.c.h.b16 %v743
          %v831 = vunpack.c.l.b16 %v744
          %v832 = vunpack.c.h.b16 %v744
          %v833 = vunpack.c.l.b16 %v745
          %v834 = vunpack.c.h.b16 %v745
          %v835 = vunpack.c.l.b16 %v746
          %v836 = vunpack.c.h.b16 %v746
          %v837 = vunpack.c.l.b16 %v747
          %v838 = vunpack.c.h.b16 %v747
          %v839 = vunpack.c.l.b16 %v748
          %v840 = vunpack.c.h.b16 %v748
          %v841 = vunpack.c.l.b16 %v749
          %v842 = vunpack.c.h.b16 %v749
          %v843 = vunpack.c.l.b16 %v750
          %v844 = vunpack.c.h.b16 %v750
          %v845 = vunpack.c.l.b16 %v751
          %v846 = vunpack.c.h.b16 %v751
          %v847 = vunpack.c.l.b16 %v752
          %v848 = vunpack.c.h.b16 %v752
          %v849 = vpack.c.b16 %v819, %v817
          %v850 = vpack.c.b16 %v820, %v818
          %v851 = vpack.c.b16 %v823, %v821
          %v852 = vpack.c.b16 %v824, %v822
          %v853 = vpack.c.b16 %v827, %v825
          %v854 = vpack.c.b16 %v828, %v826
          %v855 = vpack.c.b16 %v831, %v829
          %v856 = vpack.c.b16 %v832, %v830
          %v857 = vpack.c.b16 %v835, %v833
          %v858 = vpack.c.b16 %v836, %v834
          %v859 = vpack.c.b16 %v839, %v837
          %v860 = vpack.c.b16 %v840, %v838
          %v861 = vpack.c.b16 %v843, %v841
          %v862 = vpack.c.b16 %v844, %v842
          %v863 = vpack.c.b16 %v847, %v845
          %v864 = vpack.c.b16 %v848, %v846
          %881 = vmatpush.bf16.msra.mxu0 %v863
          %882 = vmatpush.bf16.msra.mxu0 %v861
          %883 = vmatpush.bf16.msra.mxu0 %v859
          %884 = vmatpush.bf16.msra.mxu0 %v857
          %885 = vmatpush.bf16.msra.mxu0 %v855
          %886 = vmatpush.bf16.msra.mxu0 %v853
          %887 = vmatpush.bf16.msra.mxu0 %v851
          %888 = vmatpush.bf16.msra.mxu0 %v849
          %889 = vmatmul.bf16.gmra.mxu0 %v785
          %v890 = vpop.f32.mrf.mxu0
          %v891 = vadd.f32 0.0, %v890
          %v892 = vpop.f32.mrf.mxu0
          %v893 = vadd.f32 0.0, %v892
          %894 = vmatmul.bf16.gmra.mxu0 %v786
          %v895 = vpop.f32.mrf.mxu0
          %v896 = vadd.f32 0.0, %v895
          %v897 = vpop.f32.mrf.mxu0
          %v898 = vadd.f32 0.0, %v897
          %899 = vmatmul.bf16.gmra.mxu0 %v787
          %v900 = vpop.f32.mrf.mxu0
          %v901 = vadd.f32 0.0, %v900
          %v902 = vpop.f32.mrf.mxu0
          %v903 = vadd.f32 0.0, %v902
          %904 = vmatmul.bf16.gmra.mxu0 %v788
          %v905 = vpop.f32.mrf.mxu0
          %v906 = vadd.f32 0.0, %v905
          %v907 = vpop.f32.mrf.mxu0
          %v908 = vadd.f32 0.0, %v907
          %909 = vmatmul.bf16.gmra.mxu0 %v789
          %v910 = vpop.f32.mrf.mxu0
          %v911 = vadd.f32 0.0, %v910
          %v912 = vpop.f32.mrf.mxu0
          %v913 = vadd.f32 0.0, %v912
          %914 = vmatmul.bf16.gmra.mxu0 %v790
          %v915 = vpop.f32.mrf.mxu0
          %v916 = vadd.f32 0.0, %v915
          %v917 = vpop.f32.mrf.mxu0
          %v918 = vadd.f32 0.0, %v917
          %919 = vmatmul.bf16.gmra.mxu0 %v791
          %v920 = vpop.f32.mrf.mxu0
          %v921 = vadd.f32 0.0, %v920
          %v922 = vpop.f32.mrf.mxu0
          %v923 = vadd.f32 0.0, %v922
          %924 = vmatmul.bf16.gmra.mxu0 %v792
          %v925 = vpop.f32.mrf.mxu0
          %v926 = vadd.f32 0.0, %v925
          %v927 = vpop.f32.mrf.mxu0
          %v928 = vadd.f32 0.0, %v927
          %929 = vdwg.mxu0
          %930 = vmatpush.bf16.msra.mxu0 %v864
          %931 = vmatpush.bf16.msra.mxu0 %v862
          %932 = vmatpush.bf16.msra.mxu0 %v860
          %933 = vmatpush.bf16.msra.mxu0 %v858
          %934 = vmatpush.bf16.msra.mxu0 %v856
          %935 = vmatpush.bf16.msra.mxu0 %v854
          %936 = vmatpush.bf16.msra.mxu0 %v852
          %937 = vmatpush.bf16.msra.mxu0 %v850
          %938 = vmatmul.bf16.gmra.mxu0 %v785
          %v939 = vpop.f32.mrf.mxu0
          %v940 = vadd.f32 0.0, %v939
          %v941 = vpop.f32.mrf.mxu0
          %v942 = vadd.f32 0.0, %v941
          %943 = vmatmul.bf16.gmra.mxu0 %v786
          %v944 = vpop.f32.mrf.mxu0
          %v945 = vadd.f32 0.0, %v944
          %v946 = vpop.f32.mrf.mxu0
          %v947 = vadd.f32 0.0, %v946
          %948 = vmatmul.bf16.gmra.mxu0 %v787
          %v949 = vpop.f32.mrf.mxu0
          %v950 = vadd.f32 0.0, %v949
          %v951 = vpop.f32.mrf.mxu0
          %v952 = vadd.f32 0.0, %v951
          %953 = vmatmul.bf16.gmra.mxu0 %v788
          %v954 = vpop.f32.mrf.mxu0
          %v955 = vadd.f32 0.0, %v954
          %v956 = vpop.f32.mrf.mxu0
          %v957 = vadd.f32 0.0, %v956
          %958 = vmatmul.bf16.gmra.mxu0 %v789
          %v959 = vpop.f32.mrf.mxu0
          %v960 = vadd.f32 0.0, %v959
          %v961 = vpop.f32.mrf.mxu0
          %v962 = vadd.f32 0.0, %v961
          %963 = vmatmul.bf16.gmra.mxu0 %v790
          %v964 = vpop.f32.mrf.mxu0
          %v965 = vadd.f32 0.0, %v964
          %v966 = vpop.f32.mrf.mxu0
          %v967 = vadd.f32 0.0, %v966
          %968 = vmatmul.bf16.gmra.mxu0 %v791
          %v969 = vpop.f32.mrf.mxu0
          %v970 = vadd.f32 0.0, %v969
          %v971 = vpop.f32.mrf.mxu0
          %v972 = vadd.f32 0.0, %v971
          %973 = vmatmul.bf16.gmra.mxu0 %v792
          %v974 = vpop.f32.mrf.mxu0
          %v975 = vadd.f32 0.0, %v974
          %v976 = vpop.f32.mrf.mxu0
          %v977 = vadd.f32 0.0, %v976
          %978 = vdwg.mxu0
          %v979 = vpack.c.bf16 %v893, %v891
          %v980 = vpack.c.bf16 %v898, %v896
          %v981 = vpack.c.bf16 %v903, %v901
          %v982 = vpack.c.bf16 %v908, %v906
          %v983 = vpack.c.bf16 %v913, %v911
          %v984 = vpack.c.bf16 %v918, %v916
          %v985 = vpack.c.bf16 %v923, %v921
          %v986 = vpack.c.bf16 %v928, %v926
          %v987 = vpack.c.bf16 %v942, %v940
          %v988 = vpack.c.bf16 %v947, %v945
          %v989 = vpack.c.bf16 %v952, %v950
          %v990 = vpack.c.bf16 %v957, %v955
          %v991 = vpack.c.bf16 %v962, %v960
          %v992 = vpack.c.bf16 %v967, %v965
          %v993 = vpack.c.bf16 %v972, %v970
          %v994 = vpack.c.bf16 %v977, %v975
          %v995 = vld [vmem:[#allocation3] sm:$0xf]
          %v996 = vld [vmem:[#allocation3 + $0x4] sm:$0xf]
          %v997 = vld [vmem:[#allocation3 + $0x8] sm:$0xf]
          %v998 = vld [vmem:[#allocation3 + $0xc] sm:$0xf]
          %v999 = vld [vmem:[#allocation3 + $0x10] sm:$0xf]
          %v1000 = vld [vmem:[#allocation3 + $0x14] sm:$0xf]
          %v1001 = vld [vmem:[#allocation3 + $0x18] sm:$0xf]
          %v1002 = vld [vmem:[#allocation3 + $0x1c] sm:$0xf]
          %v1003 = vld [vmem:[#allocation3 + $0x20] sm:$0xf]
          %v1004 = vld [vmem:[#allocation3 + $0x24] sm:$0xf]
          %v1005 = vld [vmem:[#allocation3 + $0x28] sm:$0xf]
          %v1006 = vld [vmem:[#allocation3 + $0x2c] sm:$0xf]
          %v1007 = vld [vmem:[#allocation3 + $0x30] sm:$0xf]
          %v1008 = vld [vmem:[#allocation3 + $0x34] sm:$0xf]
          %v1009 = vld [vmem:[#allocation3 + $0x38] sm:$0xf]
          %v1010 = vld [vmem:[#allocation3 + $0x3c] sm:$0xf]
          %v1027 = vunpack.c.l.b16 %v995
          %v1028 = vunpack.c.l.b16 %v996
          %v1029 = vunpack.c.l.b16 %v997
          %v1030 = vunpack.c.l.b16 %v998
          %v1031 = vunpack.c.l.b16 %v999
          %v1032 = vunpack.c.l.b16 %v1000
          %v1033 = vunpack.c.l.b16 %v1001
          %v1034 = vunpack.c.l.b16 %v1002
          %v1035 = vunpack.c.l.b16 %v1003
          %v1036 = vunpack.c.l.b16 %v1004
          %v1037 = vunpack.c.l.b16 %v1005
          %v1038 = vunpack.c.l.b16 %v1006
          %v1039 = vunpack.c.l.b16 %v1007
          %v1040 = vunpack.c.l.b16 %v1008
          %v1041 = vunpack.c.l.b16 %v1009
          %v1042 = vunpack.c.l.b16 %v1010
          %v1043 = vpack.c.b16 %v1028, %v1027
          %v1044 = vpack.c.b16 %v1030, %v1029
          %v1045 = vpack.c.b16 %v1032, %v1031
          %v1046 = vpack.c.b16 %v1034, %v1033
          %v1047 = vpack.c.b16 %v1036, %v1035
          %v1048 = vpack.c.b16 %v1038, %v1037
          %v1049 = vpack.c.b16 %v1040, %v1039
          %v1050 = vpack.c.b16 %v1042, %v1041
          %1059 = vmatpush.bf16.xpose.msra.mxu0 %v1050
          %1060 = vmatpush.bf16.xpose.msra.mxu0 %v1049
          %1061 = vmatpush.bf16.xpose.msra.mxu0 %v1048
          %1062 = vmatpush.bf16.xpose.msra.mxu0 %v1047
          %1063 = vmatpush.bf16.xpose.msra.mxu0 %v1046
          %1064 = vmatpush.bf16.xpose.msra.mxu0 %v1045
          %1065 = vmatpush.bf16.xpose.msra.mxu0 %v1044
          %1066 = vmatpush.bf16.xpose.msra.mxu0 %v1043
          %1067 = vmatmul.bf16.gmra.mxu0 %v979
          %v1068 = vpop.f32.mrf.mxu0
          %v1069 = vadd.f32 0.0, %v1068
          %v1070 = vpop.f32.mrf.mxu0
          %v1071 = vadd.f32 0.0, %v1070
          %1072 = vmatmul.bf16.gmra.mxu0 %v980
          %v1073 = vpop.f32.mrf.mxu0
          %v1074 = vadd.f32 0.0, %v1073
          %v1075 = vpop.f32.mrf.mxu0
          %v1076 = vadd.f32 0.0, %v1075
          %1077 = vmatmul.bf16.gmra.mxu0 %v981
          %v1078 = vpop.f32.mrf.mxu0
          %v1079 = vadd.f32 0.0, %v1078
          %v1080 = vpop.f32.mrf.mxu0
          %v1081 = vadd.f32 0.0, %v1080
          %1082 = vmatmul.bf16.gmra.mxu0 %v982
          %v1083 = vpop.f32.mrf.mxu0
          %v1084 = vadd.f32 0.0, %v1083
          %v1085 = vpop.f32.mrf.mxu0
          %v1086 = vadd.f32 0.0, %v1085
          %1087 = vmatmul.bf16.gmra.mxu0 %v983
          %v1088 = vpop.f32.mrf.mxu0
          %v1089 = vadd.f32 0.0, %v1088
          %v1090 = vpop.f32.mrf.mxu0
          %v1091 = vadd.f32 0.0, %v1090
          %1092 = vmatmul.bf16.gmra.mxu0 %v984
          %v1093 = vpop.f32.mrf.mxu0
          %v1094 = vadd.f32 0.0, %v1093
          %v1095 = vpop.f32.mrf.mxu0
          %v1096 = vadd.f32 0.0, %v1095
          %1097 = vmatmul.bf16.gmra.mxu0 %v985
          %v1098 = vpop.f32.mrf.mxu0
          %v1099 = vadd.f32 0.0, %v1098
          %v1100 = vpop.f32.mrf.mxu0
          %v1101 = vadd.f32 0.0, %v1100
          %1102 = vmatmul.bf16.gmra.mxu0 %v986
          %v1103 = vpop.f32.mrf.mxu0
          %v1104 = vadd.f32 0.0, %v1103
          %v1105 = vpop.f32.mrf.mxu0
          %v1106 = vadd.f32 0.0, %v1105
          %1107 = vmatmul.bf16.gmra.mxu0 %v987
          %v1108 = vpop.f32.mrf.mxu0
          %v1109 = vadd.f32 0.0, %v1108
          %v1110 = vpop.f32.mrf.mxu0
          %v1111 = vadd.f32 0.0, %v1110
          %1112 = vmatmul.bf16.gmra.mxu0 %v988
          %v1113 = vpop.f32.mrf.mxu0
          %v1114 = vadd.f32 0.0, %v1113
          %v1115 = vpop.f32.mrf.mxu0
          %v1116 = vadd.f32 0.0, %v1115
          %1117 = vmatmul.bf16.gmra.mxu0 %v989
          %v1118 = vpop.f32.mrf.mxu0
          %v1119 = vadd.f32 0.0, %v1118
          %v1120 = vpop.f32.mrf.mxu0
          %v1121 = vadd.f32 0.0, %v1120
          %1122 = vmatmul.bf16.gmra.mxu0 %v990
          %v1123 = vpop.f32.mrf.mxu0
          %v1124 = vadd.f32 0.0, %v1123
          %v1125 = vpop.f32.mrf.mxu0
          %v1126 = vadd.f32 0.0, %v1125
          %1127 = vmatmul.bf16.gmra.mxu0 %v991
          %v1128 = vpop.f32.mrf.mxu0
          %v1129 = vadd.f32 0.0, %v1128
          %v1130 = vpop.f32.mrf.mxu0
          %v1131 = vadd.f32 0.0, %v1130
          %1132 = vmatmul.bf16.gmra.mxu0 %v992
          %v1133 = vpop.f32.mrf.mxu0
          %v1134 = vadd.f32 0.0, %v1133
          %v1135 = vpop.f32.mrf.mxu0
          %v1136 = vadd.f32 0.0, %v1135
          %1137 = vmatmul.bf16.gmra.mxu0 %v993
          %v1138 = vpop.f32.mrf.mxu0
          %v1139 = vadd.f32 0.0, %v1138
          %v1140 = vpop.f32.mrf.mxu0
          %v1141 = vadd.f32 0.0, %v1140
          %1142 = vmatmul.bf16.gmra.mxu0 %v994
          %v1143 = vpop.f32.mrf.mxu0
          %v1144 = vadd.f32 0.0, %v1143
          %v1145 = vpop.f32.mrf.mxu0
          %v1146 = vadd.f32 0.0, %v1145
          %1147 = vdwg.mxu0
          %s1148 = sld [smem:[#allocation11]]
          %v1149 = vstv %s1148
          %v1150 = vadd.f32 %v1069, %v1149
          %v1151 = vadd.f32 %v1071, %v1149
          %v1152 = vadd.f32 %v1074, %v1149
          %v1153 = vadd.f32 %v1076, %v1149
          %v1154 = vadd.f32 %v1079, %v1149
          %v1155 = vadd.f32 %v1081, %v1149
          %v1156 = vadd.f32 %v1084, %v1149
          %v1157 = vadd.f32 %v1086, %v1149
          %v1158 = vadd.f32 %v1089, %v1149
          %v1159 = vadd.f32 %v1091, %v1149
          %v1160 = vadd.f32 %v1094, %v1149
          %v1161 = vadd.f32 %v1096, %v1149
          %v1162 = vadd.f32 %v1099, %v1149
          %v1163 = vadd.f32 %v1101, %v1149
          %v1164 = vadd.f32 %v1104, %v1149
          %v1165 = vadd.f32 %v1106, %v1149
          %v1166 = vxor.u32 %v1150, 2147483648
          %v1167 = vxor.u32 %v1151, 2147483648
          %v1168 = vxor.u32 %v1152, 2147483648
          %v1169 = vxor.u32 %v1153, 2147483648
          %v1170 = vxor.u32 %v1154, 2147483648
          %v1171 = vxor.u32 %v1155, 2147483648
          %v1172 = vxor.u32 %v1156, 2147483648
          %v1173 = vxor.u32 %v1157, 2147483648
          %v1174 = vxor.u32 %v1158, 2147483648
          %v1175 = vxor.u32 %v1159, 2147483648
          %v1176 = vxor.u32 %v1160, 2147483648
          %v1177 = vxor.u32 %v1161, 2147483648
          %v1178 = vxor.u32 %v1162, 2147483648
          %v1179 = vxor.u32 %v1163, 2147483648
          %v1180 = vxor.u32 %v1164, 2147483648
          %v1181 = vxor.u32 %v1165, 2147483648
          %v1182 = vmul.f32 %v1166, 1.442695
          %v1183 = vpow.pop %v1182
          %v1184 = vmul.f32 %v1167, 1.442695
          %v1185 = vpow.pop %v1184
          %v1186 = vmul.f32 %v1168, 1.442695
          %v1187 = vpow.pop %v1186
          %v1188 = vmul.f32 %v1169, 1.442695
          %v1189 = vpow.pop %v1188
          %v1190 = vmul.f32 %v1170, 1.442695
          %v1191 = vpow.pop %v1190
          %v1192 = vmul.f32 %v1171, 1.442695
          %v1193 = vpow.pop %v1192
          %v1194 = vmul.f32 %v1172, 1.442695
          %v1195 = vpow.pop %v1194
          %v1196 = vmul.f32 %v1173, 1.442695
          %v1197 = vpow.pop %v1196
          %v1198 = vmul.f32 %v1174, 1.442695
          %v1199 = vpow.pop %v1198
          %v1200 = vmul.f32 %v1175, 1.442695
          %v1201 = vpow.pop %v1200
          %v1202 = vmul.f32 %v1176, 1.442695
          %v1203 = vpow.pop %v1202
          %v1204 = vmul.f32 %v1177, 1.442695
          %v1205 = vpow.pop %v1204
          %v1206 = vmul.f32 %v1178, 1.442695
          %v1207 = vpow.pop %v1206
          %v1208 = vmul.f32 %v1179, 1.442695
          %v1209 = vpow.pop %v1208
          %v1210 = vmul.f32 %v1180, 1.442695
          %v1211 = vpow.pop %v1210
          %v1212 = vmul.f32 %v1181, 1.442695
          %v1213 = vpow.pop %v1212
          %v1214 = vadd.f32 %v1183, 1.0
          %v1215 = vadd.f32 %v1185, 1.0
          %v1216 = vadd.f32 %v1187, 1.0
          %v1217 = vadd.f32 %v1189, 1.0
          %v1218 = vadd.f32 %v1191, 1.0
          %v1219 = vadd.f32 %v1193, 1.0
          %v1220 = vadd.f32 %v1195, 1.0
          %v1221 = vadd.f32 %v1197, 1.0
          %v1222 = vadd.f32 %v1199, 1.0
          %v1223 = vadd.f32 %v1201, 1.0
          %v1224 = vadd.f32 %v1203, 1.0
          %v1225 = vadd.f32 %v1205, 1.0
          %v1226 = vadd.f32 %v1207, 1.0
          %v1227 = vadd.f32 %v1209, 1.0
          %v1228 = vadd.f32 %v1211, 1.0
          %v1229 = vadd.f32 %v1213, 1.0
          %v1230 = vrcp.pop %v1214
          %v1231 = vmul.f32 %v1214, %v1230
          %v1232 = vsub.f32 1.0, %v1231
          %v1233 = vmul.f32 %v1230, %v1232
          %v1234 = vadd.f32 %v1230, %v1233
          %vm1235 = vweird.f32 %v1214
          %vm1236 = vweird.f32 %v1230
          %vm1237 = vmor %vm1235, %vm1236
          %v1238 = vsel %vm1237, %v1230, %v1234
          %v1239 = vand.u32 2147483647, %v1214
          %vm1240 = vcmp.eq.f32.partialorder %v1239, 8.507059e+37
          %v1241 = vand.u32 %v1214, 2147483648
          %v1242 = vor.u32 1.1754944e-38, %v1241
          %v1243 = vsel %vm1240, %v1242, %v1238
          %v1244 = vmul.f32 1.0, %v1243
          %v1245 = vrcp.pop %v1215
          %v1246 = vmul.f32 %v1215, %v1245
          %v1247 = vsub.f32 1.0, %v1246
          %v1248 = vmul.f32 %v1245, %v1247
          %v1249 = vadd.f32 %v1245, %v1248
          %vm1250 = vweird.f32 %v1215
          %vm1251 = vweird.f32 %v1245
          %vm1252 = vmor %vm1250, %vm1251
          %v1253 = vsel %vm1252, %v1245, %v1249
          %v1254 = vand.u32 2147483647, %v1215
          %vm1255 = vcmp.eq.f32.partialorder %v1254, 8.507059e+37
          %v1256 = vand.u32 %v1215, 2147483648
          %v1257 = vor.u32 1.1754944e-38, %v1256
          %v1258 = vsel %vm1255, %v1257, %v1253
          %v1259 = vmul.f32 1.0, %v1258
          %v1260 = vrcp.pop %v1216
          %v1261 = vmul.f32 %v1216, %v1260
          %v1262 = vsub.f32 1.0, %v1261
          %v1263 = vmul.f32 %v1260, %v1262
          %v1264 = vadd.f32 %v1260, %v1263
          %vm1265 = vweird.f32 %v1216
          %vm1266 = vweird.f32 %v1260
          %vm1267 = vmor %vm1265, %vm1266
          %v1268 = vsel %vm1267, %v1260, %v1264
          %v1269 = vand.u32 2147483647, %v1216
          %vm1270 = vcmp.eq.f32.partialorder %v1269, 8.507059e+37
          %v1271 = vand.u32 %v1216, 2147483648
          %v1272 = vor.u32 1.1754944e-38, %v1271
          %v1273 = vsel %vm1270, %v1272, %v1268
          %v1274 = vmul.f32 1.0, %v1273
          %v1275 = vrcp.pop %v1217
          %v1276 = vmul.f32 %v1217, %v1275
          %v1277 = vsub.f32 1.0, %v1276
          %v1278 = vmul.f32 %v1275, %v1277
          %v1279 = vadd.f32 %v1275, %v1278
          %vm1280 = vweird.f32 %v1217
          %vm1281 = vweird.f32 %v1275
          %vm1282 = vmor %vm1280, %vm1281
          %v1283 = vsel %vm1282, %v1275, %v1279
          %v1284 = vand.u32 2147483647, %v1217
          %vm1285 = vcmp.eq.f32.partialorder %v1284, 8.507059e+37
          %v1286 = vand.u32 %v1217, 2147483648
          %v1287 = vor.u32 1.1754944e-38, %v1286
          %v1288 = vsel %vm1285, %v1287, %v1283
          %v1289 = vmul.f32 1.0, %v1288
          %v1290 = vrcp.pop %v1218
          %v1291 = vmul.f32 %v1218, %v1290
          %v1292 = vsub.f32 1.0, %v1291
          %v1293 = vmul.f32 %v1290, %v1292
          %v1294 = vadd.f32 %v1290, %v1293
          %vm1295 = vweird.f32 %v1218
          %vm1296 = vweird.f32 %v1290
          %vm1297 = vmor %vm1295, %vm1296
          %v1298 = vsel %vm1297, %v1290, %v1294
          %v1299 = vand.u32 2147483647, %v1218
          %vm1300 = vcmp.eq.f32.partialorder %v1299, 8.507059e+37
          %v1301 = vand.u32 %v1218, 2147483648
          %v1302 = vor.u32 1.1754944e-38, %v1301
          %v1303 = vsel %vm1300, %v1302, %v1298
          %v1304 = vmul.f32 1.0, %v1303
          %v1305 = vrcp.pop %v1219
          %v1306 = vmul.f32 %v1219, %v1305
          %v1307 = vsub.f32 1.0, %v1306
          %v1308 = vmul.f32 %v1305, %v1307
          %v1309 = vadd.f32 %v1305, %v1308
          %vm1310 = vweird.f32 %v1219
          %vm1311 = vweird.f32 %v1305
          %vm1312 = vmor %vm1310, %vm1311
          %v1313 = vsel %vm1312, %v1305, %v1309
          %v1314 = vand.u32 2147483647, %v1219
          %vm1315 = vcmp.eq.f32.partialorder %v1314, 8.507059e+37
          %v1316 = vand.u32 %v1219, 2147483648
          %v1317 = vor.u32 1.1754944e-38, %v1316
          %v1318 = vsel %vm1315, %v1317, %v1313
          %v1319 = vmul.f32 1.0, %v1318
          %v1320 = vrcp.pop %v1220
          %v1321 = vmul.f32 %v1220, %v1320
          %v1322 = vsub.f32 1.0, %v1321
          %v1323 = vmul.f32 %v1320, %v1322
          %v1324 = vadd.f32 %v1320, %v1323
          %vm1325 = vweird.f32 %v1220
          %vm1326 = vweird.f32 %v1320
          %vm1327 = vmor %vm1325, %vm1326
          %v1328 = vsel %vm1327, %v1320, %v1324
          %v1329 = vand.u32 2147483647, %v1220
          %vm1330 = vcmp.eq.f32.partialorder %v1329, 8.507059e+37
          %v1331 = vand.u32 %v1220, 2147483648
          %v1332 = vor.u32 1.1754944e-38, %v1331
          %v1333 = vsel %vm1330, %v1332, %v1328
          %v1334 = vmul.f32 1.0, %v1333
          %v1335 = vrcp.pop %v1221
          %v1336 = vmul.f32 %v1221, %v1335
          %v1337 = vsub.f32 1.0, %v1336
          %v1338 = vmul.f32 %v1335, %v1337
          %v1339 = vadd.f32 %v1335, %v1338
          %vm1340 = vweird.f32 %v1221
          %vm1341 = vweird.f32 %v1335
          %vm1342 = vmor %vm1340, %vm1341
          %v1343 = vsel %vm1342, %v1335, %v1339
          %v1344 = vand.u32 2147483647, %v1221
          %vm1345 = vcmp.eq.f32.partialorder %v1344, 8.507059e+37
          %v1346 = vand.u32 %v1221, 2147483648
          %v1347 = vor.u32 1.1754944e-38, %v1346
          %v1348 = vsel %vm1345, %v1347, %v1343
          %v1349 = vmul.f32 1.0, %v1348
          %v1350 = vrcp.pop %v1222
          %v1351 = vmul.f32 %v1222, %v1350
          %v1352 = vsub.f32 1.0, %v1351
          %v1353 = vmul.f32 %v1350, %v1352
          %v1354 = vadd.f32 %v1350, %v1353
          %vm1355 = vweird.f32 %v1222
          %vm1356 = vweird.f32 %v1350
          %vm1357 = vmor %vm1355, %vm1356
          %v1358 = vsel %vm1357, %v1350, %v1354
          %v1359 = vand.u32 2147483647, %v1222
          %vm1360 = vcmp.eq.f32.partialorder %v1359, 8.507059e+37
          %v1361 = vand.u32 %v1222, 2147483648
          %v1362 = vor.u32 1.1754944e-38, %v1361
          %v1363 = vsel %vm1360, %v1362, %v1358
          %v1364 = vmul.f32 1.0, %v1363
          %v1365 = vrcp.pop %v1223
          %v1366 = vmul.f32 %v1223, %v1365
          %v1367 = vsub.f32 1.0, %v1366
          %v1368 = vmul.f32 %v1365, %v1367
          %v1369 = vadd.f32 %v1365, %v1368
          %vm1370 = vweird.f32 %v1223
          %vm1371 = vweird.f32 %v1365
          %vm1372 = vmor %vm1370, %vm1371
          %v1373 = vsel %vm1372, %v1365, %v1369
          %v1374 = vand.u32 2147483647, %v1223
          %vm1375 = vcmp.eq.f32.partialorder %v1374, 8.507059e+37
          %v1376 = vand.u32 %v1223, 2147483648
          %v1377 = vor.u32 1.1754944e-38, %v1376
          %v1378 = vsel %vm1375, %v1377, %v1373
          %v1379 = vmul.f32 1.0, %v1378
          %v1380 = vrcp.pop %v1224
          %v1381 = vmul.f32 %v1224, %v1380
          %v1382 = vsub.f32 1.0, %v1381
          %v1383 = vmul.f32 %v1380, %v1382
          %v1384 = vadd.f32 %v1380, %v1383
          %vm1385 = vweird.f32 %v1224
          %vm1386 = vweird.f32 %v1380
          %vm1387 = vmor %vm1385, %vm1386
          %v1388 = vsel %vm1387, %v1380, %v1384
          %v1389 = vand.u32 2147483647, %v1224
          %vm1390 = vcmp.eq.f32.partialorder %v1389, 8.507059e+37
          %v1391 = vand.u32 %v1224, 2147483648
          %v1392 = vor.u32 1.1754944e-38, %v1391
          %v1393 = vsel %vm1390, %v1392, %v1388
          %v1394 = vmul.f32 1.0, %v1393
          %v1395 = vrcp.pop %v1225
          %v1396 = vmul.f32 %v1225, %v1395
          %v1397 = vsub.f32 1.0, %v1396
          %v1398 = vmul.f32 %v1395, %v1397
          %v1399 = vadd.f32 %v1395, %v1398
          %vm1400 = vweird.f32 %v1225
          %vm1401 = vweird.f32 %v1395
          %vm1402 = vmor %vm1400, %vm1401
          %v1403 = vsel %vm1402, %v1395, %v1399
          %v1404 = vand.u32 2147483647, %v1225
          %vm1405 = vcmp.eq.f32.partialorder %v1404, 8.507059e+37
          %v1406 = vand.u32 %v1225, 2147483648
          %v1407 = vor.u32 1.1754944e-38, %v1406
          %v1408 = vsel %vm1405, %v1407, %v1403
          %v1409 = vmul.f32 1.0, %v1408
          %v1410 = vrcp.pop %v1226
          %v1411 = vmul.f32 %v1226, %v1410
          %v1412 = vsub.f32 1.0, %v1411
          %v1413 = vmul.f32 %v1410, %v1412
          %v1414 = vadd.f32 %v1410, %v1413
          %vm1415 = vweird.f32 %v1226
          %vm1416 = vweird.f32 %v1410
          %vm1417 = vmor %vm1415, %vm1416
          %v1418 = vsel %vm1417, %v1410, %v1414
          %v1419 = vand.u32 2147483647, %v1226
          %vm1420 = vcmp.eq.f32.partialorder %v1419, 8.507059e+37
          %v1421 = vand.u32 %v1226, 2147483648
          %v1422 = vor.u32 1.1754944e-38, %v1421
          %v1423 = vsel %vm1420, %v1422, %v1418
          %v1424 = vmul.f32 1.0, %v1423
          %v1425 = vrcp.pop %v1227
          %v1426 = vmul.f32 %v1227, %v1425
          %v1427 = vsub.f32 1.0, %v1426
          %v1428 = vmul.f32 %v1425, %v1427
          %v1429 = vadd.f32 %v1425, %v1428
          %vm1430 = vweird.f32 %v1227
          %vm1431 = vweird.f32 %v1425
          %vm1432 = vmor %vm1430, %vm1431
          %v1433 = vsel %vm1432, %v1425, %v1429
          %v1434 = vand.u32 2147483647, %v1227
          %vm1435 = vcmp.eq.f32.partialorder %v1434, 8.507059e+37
          %v1436 = vand.u32 %v1227, 2147483648
          %v1437 = vor.u32 1.1754944e-38, %v1436
          %v1438 = vsel %vm1435, %v1437, %v1433
          %v1439 = vmul.f32 1.0, %v1438
          %v1440 = vrcp.pop %v1228
          %v1441 = vmul.f32 %v1228, %v1440
          %v1442 = vsub.f32 1.0, %v1441
          %v1443 = vmul.f32 %v1440, %v1442
          %v1444 = vadd.f32 %v1440, %v1443
          %vm1445 = vweird.f32 %v1228
          %vm1446 = vweird.f32 %v1440
          %vm1447 = vmor %vm1445, %vm1446
          %v1448 = vsel %vm1447, %v1440, %v1444
          %v1449 = vand.u32 2147483647, %v1228
          %vm1450 = vcmp.eq.f32.partialorder %v1449, 8.507059e+37
          %v1451 = vand.u32 %v1228, 2147483648
          %v1452 = vor.u32 1.1754944e-38, %v1451
          %v1453 = vsel %vm1450, %v1452, %v1448
          %v1454 = vmul.f32 1.0, %v1453
          %v1455 = vrcp.pop %v1229
          %v1456 = vmul.f32 %v1229, %v1455
          %v1457 = vsub.f32 1.0, %v1456
          %v1458 = vmul.f32 %v1455, %v1457
          %v1459 = vadd.f32 %v1455, %v1458
          %vm1460 = vweird.f32 %v1229
          %vm1461 = vweird.f32 %v1455
          %vm1462 = vmor %vm1460, %vm1461
          %v1463 = vsel %vm1462, %v1455, %v1459
          %v1464 = vand.u32 2147483647, %v1229
          %vm1465 = vcmp.eq.f32.partialorder %v1464, 8.507059e+37
          %v1466 = vand.u32 %v1229, 2147483648
          %v1467 = vor.u32 1.1754944e-38, %v1466
          %v1468 = vsel %vm1465, %v1467, %v1463
          %v1469 = vmul.f32 1.0, %v1468
          %1470 = vst [vmem:[%s337] sm:$0xff] %v1244
          %1471 = vst [vmem:[%s337 + $0x8] sm:$0xff] %v1259
          %1472 = vst [vmem:[%s337 + $0x10] sm:$0xff] %v1274
          %1473 = vst [vmem:[%s337 + $0x18] sm:$0xff] %v1289
          %1474 = vst [vmem:[%s337 + $0x20] sm:$0xff] %v1304
          %1475 = vst [vmem:[%s337 + $0x28] sm:$0xff] %v1319
          %1476 = vst [vmem:[%s337 + $0x30] sm:$0xff] %v1334
          %1477 = vst [vmem:[%s337 + $0x38] sm:$0xff] %v1349
          %1478 = vst [vmem:[%s337 + $0x40] sm:$0xff] %v1364
          %1479 = vst [vmem:[%s337 + $0x48] sm:$0xff] %v1379
          %1480 = vst [vmem:[%s337 + $0x50] sm:$0xff] %v1394
          %1481 = vst [vmem:[%s337 + $0x58] sm:$0xff] %v1409
          %1482 = vst [vmem:[%s337 + $0x60] sm:$0xff] %v1424
          %1483 = vst [vmem:[%s337 + $0x68] sm:$0xff] %v1439
          %1484 = vst [vmem:[%s337 + $0x70] sm:$0xff] %v1454
          %1485 = vst [vmem:[%s337 + $0x78] sm:$0xff] %v1469
          %s1486 = sld [smem:[#allocation11 + $0x1]]
          %v1487 = vstv %s1486
          %v1488 = vadd.f32 %v1109, %v1487
          %v1489 = vadd.f32 %v1111, %v1487
          %v1490 = vadd.f32 %v1114, %v1487
          %v1491 = vadd.f32 %v1116, %v1487
          %v1492 = vadd.f32 %v1119, %v1487
          %v1493 = vadd.f32 %v1121, %v1487
          %v1494 = vadd.f32 %v1124, %v1487
          %v1495 = vadd.f32 %v1126, %v1487
          %v1496 = vadd.f32 %v1129, %v1487
          %v1497 = vadd.f32 %v1131, %v1487
          %v1498 = vadd.f32 %v1134, %v1487
          %v1499 = vadd.f32 %v1136, %v1487
          %v1500 = vadd.f32 %v1139, %v1487
          %v1501 = vadd.f32 %v1141, %v1487
          %v1502 = vadd.f32 %v1144, %v1487
          %v1503 = vadd.f32 %v1146, %v1487
          %v1504 = vmax.f32 %v1488, 0.0
          %v1505 = vmax.f32 %v1489, 0.0
          %v1506 = vmax.f32 %v1490, 0.0
          %v1507 = vmax.f32 %v1491, 0.0
          %v1508 = vmax.f32 %v1492, 0.0
          %v1509 = vmax.f32 %v1493, 0.0
          %v1510 = vmax.f32 %v1494, 0.0
          %v1511 = vmax.f32 %v1495, 0.0
          %v1512 = vmax.f32 %v1496, 0.0
          %v1513 = vmax.f32 %v1497, 0.0
          %v1514 = vmax.f32 %v1498, 0.0
          %v1515 = vmax.f32 %v1499, 0.0
          %v1516 = vmax.f32 %v1500, 0.0
          %v1517 = vmax.f32 %v1501, 0.0
          %v1518 = vmax.f32 %v1502, 0.0
          %v1519 = vmax.f32 %v1503, 0.0
          %1520 = vst [vmem:[%s344] sm:$0xff] %v1504
          %1521 = vst [vmem:[%s344 + $0x8] sm:$0xff] %v1505
          %1522 = vst [vmem:[%s344 + $0x10] sm:$0xff] %v1506
          %1523 = vst [vmem:[%s344 + $0x18] sm:$0xff] %v1507
          %1524 = vst [vmem:[%s344 + $0x20] sm:$0xff] %v1508
          %1525 = vst [vmem:[%s344 + $0x28] sm:$0xff] %v1509
          %1526 = vst [vmem:[%s344 + $0x30] sm:$0xff] %v1510
          %1527 = vst [vmem:[%s344 + $0x38] sm:$0xff] %v1511
          %1528 = vst [vmem:[%s344 + $0x40] sm:$0xff] %v1512
          %1529 = vst [vmem:[%s344 + $0x48] sm:$0xff] %v1513
          %1530 = vst [vmem:[%s344 + $0x50] sm:$0xff] %v1514
          %1531 = vst [vmem:[%s344 + $0x58] sm:$0xff] %v1515
          %1532 = vst [vmem:[%s344 + $0x60] sm:$0xff] %v1516
          %1533 = vst [vmem:[%s344 + $0x68] sm:$0xff] %v1517
          %1534 = vst [vmem:[%s344 + $0x70] sm:$0xff] %v1518
          %1535 = vst [vmem:[%s344 + $0x78] sm:$0xff] %v1519
        $region60: #{tpu_custom_call.1} parent=35 // pred_fallthru
          _
        %s1536 = sand.u32 %s146, 1
        %s1537 = scalar_lea.sflag [#allocation6], %s1536
        %s1538 = sand.u32 %s146, 1
        %s1539 = smul.addr %s1538, 128
        %s1540 = scalar_lea.vmem [#allocation12], %s1539
        %s1541 = sand.u32 %s172, 1
        %s1542 = scalar_lea.sflag [#allocation14], %s1541
        %s1543 = sand.u32 %s172, 1
        %s1544 = smul.addr %s1543, 128
        %s1545 = scalar_lea.vmem [#allocation13], %s1544
        // Predicated region
        $region61: #{tpu_custom_call.1} parent=35 // pred_check
          %p1546 = pneg %p156
        $region62: #{tpu_custom_call.1} parent=35 // pred_check_branch
          %1548 = sbr.rel (%p1546) target = $region64
        $region63: #{tpu_custom_call.1} parent=35 // pred_region
          %1550 = vsyncadd %s1537, 0
          %s1551 = smul.addr %s34, 16
          %s1552 = smul.addr %s1551, 8
          %s1553 = scalar_lea.hbm %s4, %s1552
          %s1554 = sshll.u32 %s1540, 4
          %s1555 = int_to_ptr.vmem [resolvable:$true] %s1554
          %s1556 = sshll.u32 %s1553, 4
          %s1557 = int_to_ptr.hbm [resolvable:$true] %s1556
          %1562 = dma.vmem_to_hbm [thread:$0]  %s1555, 2048, %s1557, %s1537, 128, 128, 8
        $region64: #{tpu_custom_call.1} parent=35 // pred_fallthru
          _
        // Predicated region
        $region65: #{tpu_custom_call.1} parent=35 // pred_check
          %p1563 = pneg %p182
        $region66: #{tpu_custom_call.1} parent=35 // pred_check_branch
          %1565 = sbr.rel (%p1563) target = $region68
        $region67: #{tpu_custom_call.1} parent=35 // pred_region
          %1567 = vsyncadd %s1542, 0
          %s1568 = smul.addr %s34, 16
          %s1569 = smul.addr %s1568, 8
          %s1570 = scalar_lea.hbm %s5, %s1569
          %s1571 = sshll.u32 %s1545, 4
          %s1572 = int_to_ptr.vmem [resolvable:$true] %s1571
          %s1573 = sshll.u32 %s1570, 4
          %s1574 = int_to_ptr.hbm [resolvable:$true] %s1573
          %1579 = dma.vmem_to_hbm [thread:$0]  %s1572, 2048, %s1574, %s1542, 128, 128, 8
        $region68: #{tpu_custom_call.1} parent=35 // pred_fallthru
          _
      $region36: #{tpu_custom_call.1} parent=5 // pred_fallthru
        _
      %p1580 = scmp.le.s32.totalorder 2, %s25
      // Predicated region
      $region69: #{tpu_custom_call.1} parent=5 // pred_check
        %p1581 = pneg %p1580
      $region70: #{tpu_custom_call.1} parent=5 // pred_check_branch
        %1583 = sbr.rel (%p1581) target = $region72
      $region71: #{tpu_custom_call.1} parent=5 // pred_region
        %s1584 = ssub.s32 %s25, 2
        // Predicated region
        $region73: #{tpu_custom_call.1} parent=71 // pred_check
          %p1585 = pneg %p162
        $region74: #{tpu_custom_call.1} parent=71 // pred_check_branch
          %1587 = sbr.rel (%p1585) target = $region76
        $region75: #{tpu_custom_call.1} parent=71 // pred_region
          %s1588 = sand.u32 %s147, 1
          %s1589 = scalar_lea.sflag [#allocation6], %s1588
          %s1590 = sand.u32 %s147, 1
          %s1591 = smul.addr %s1590, 128
          %s1592 = scalar_lea.vmem [#allocation12], %s1591
          %1594 = dma.done %s1589, 2048
        $region76: #{tpu_custom_call.1} parent=71 // pred_fallthru
          _
        // Predicated region
        $region77: #{tpu_custom_call.1} parent=71 // pred_check
          %p1595 = pneg %p188
        $region78: #{tpu_custom_call.1} parent=71 // pred_check_branch
          %1597 = sbr.rel (%p1595) target = $region80
        $region79: #{tpu_custom_call.1} parent=71 // pred_region
          %s1598 = sand.u32 %s173, 1
          %s1599 = scalar_lea.sflag [#allocation14], %s1598
          %s1600 = sand.u32 %s173, 1
          %s1601 = smul.addr %s1600, 128
          %s1602 = scalar_lea.vmem [#allocation13], %s1601
          %1604 = dma.done %s1599, 2048
        $region80: #{tpu_custom_call.1} parent=71 // pred_fallthru
          _
      $region72: #{tpu_custom_call.1} parent=5 // pred_fallthru
        _
    $region6: #{tpu_custom_call.1} parent=1 // loop_footer
      %s29 = sadd.s32 1, %s25
    $region7: #{tpu_custom_call.1} parent=1 // loop_footer_branch
      %24 = sbr.rel target = $region3
    $region8: #{tpu_custom_call.1} parent=1 // loop_exit
      _
    %1605 = vsyncpa [#allocation5], 1
    %s1606 = scalar_lea.sflag [#allocation5], 1
    %1607 = vsyncpa %s1606, 1
    %1608 = vsyncpa [#allocation9], 1
    %s1609 = scalar_lea.sflag [#allocation9], 1
    %1610 = vsyncpa %s1609, 1
    %1611 = vsyncpa [#allocation6], 1
    %s1612 = scalar_lea.sflag [#allocation6], 1
    %1613 = vsyncpa %s1612, 1
    %1614 = vsyncpa [#allocation14], 1
    %s1615 = scalar_lea.sflag [#allocation14], 1
    %1616 = vsyncpa %s1615, 1
    %1617 = vsyncpa [#allocation7], 1
    %s1618 = scalar_lea.sflag [#allocation7], 1
    %1619 = vsyncpa %s1618, 1

</llo_original>
